<compile_context>
chip_gen: v5e
topology: v5e:2x2
jax: 0.10.0
libtpu: 0.0.40
codegen_flags: <defaults>
</compile_context>

<pallas_src>
import math

import jax
import jax.numpy as jnp
from jax.experimental import pallas as pl
from jax.experimental.pallas import tpu as pltpu


# ----------------------------- Pallas kernel -----------------------------

def _gemm_bias_lrelu_kernel(a_ref, w_ref, b_ref, o_ref):
    # a_ref: (tm, Kp) bf16   w_ref: (Kp, Cp) bf16
    # b_ref: (1, Cp)  f32    o_ref: (tm, Cp) f32
    acc = jnp.dot(a_ref[...], w_ref[...], preferred_element_type=jnp.float32)
    acc = acc + b_ref[...]
    # LeakyReLU(negative_slope=0.2), f32 epilogue.
    o_ref[...] = jnp.where(acc >= 0.0, acc, 0.2 * acc).astype(o_ref.dtype)


def _round_up(x, m):
    return ((x + m - 1) // m) * m


def _choose_tm(m, tm_max=512, tm_min=128):
    """Biggest tile up to tm_max that still leaves >=2 grid steps (v7x TCs)."""
    tm = tm_max
    while tm > tm_min and -(-m // tm) < 2:
        tm //= 2
    return max(tm, tm_min)


def gemm_bias_lrelu(a, w, b):
    """out = leaky_relu(a @ w + b, 0.2) via a fused Pallas TPU kernel.

    a: (M, K), w: (K, Cout), b: (Cout,)  ->  (M, Cout) f32
    Operands are cast to bf16 (f32 accumulation); K is padded to a multiple
    of 128 and Cout is padded to 128 lanes for lane-dense stores.
    """
    M, K = a.shape
    K2, Cout = w.shape
    assert K == K2

    tm = _choose_tm(M)
    Mp = _round_up(M, tm)
    Kp = _round_up(K, 128)
    Cp = max(128, _round_up(Cout, 128))

    a_p = jnp.pad(a.astype(jnp.bfloat16), ((0, Mp - M), (0, Kp - K)))
    w_p = jnp.pad(w.astype(jnp.bfloat16), ((0, Kp - K), (0, Cp - Cout)))
    b_p = jnp.pad(b.astype(jnp.float32).reshape(1, Cout),
                  ((0, 0), (0, Cp - Cout)))

    out = pl.pallas_call(
        _gemm_bias_lrelu_kernel,
        out_shape=jax.ShapeDtypeStruct((Mp, Cp), jnp.float32),
        grid_spec=pltpu.PrefetchScalarGridSpec(
            num_scalar_prefetch=0,
            grid=(Mp // tm,),
            in_specs=[
                pl.BlockSpec((tm, Kp), lambda i: (i, 0)),
                pl.BlockSpec((Kp, Cp), lambda i: (0, 0)),
                pl.BlockSpec((1, Cp), lambda i: (0, 0)),
            ],
            out_specs=pl.BlockSpec((tm, Cp), lambda i: (i, 0)),
        ),
        compiler_params=pltpu.CompilerParams(
            dimension_semantics=("parallel",),
            vmem_limit_bytes=32 * 1024 * 1024,
        ),
    )(a_p, w_p, b_p)
    return out[:M, :Cout]


# --------------------------- conv_block forward ---------------------------

def conv_block_fwd(x, weight, bias, stride):
    """x: (N, D, H, W, Cin) channels-last; weight: (K, K, K, Cin, Cout)."""
    K = weight.shape[0]
    pad = 1
    N, D, H, W, Cin = x.shape
    Cout = weight.shape[-1]
    Do = (D + 2 * pad - K) // stride + 1
    Ho = (H + 2 * pad - K) // stride + 1
    Wo = (W + 2 * pad - K) // stride + 1

    # Pad, cast to bf16 so the materialized im2col patches are half-size.
    xp = jnp.pad(x, ((0, 0), (pad, pad), (pad, pad), (pad, pad),
                     (0, 0))).astype(jnp.bfloat16)

    # im2col: one strided slice per kernel tap (glue); concat on channel axis.
    # Tap ordering (kd, kh, kw outer, Cin inner) matches the weight reshape.
    taps = []
    for kd in range(K):
        for kh in range(K):
            for kw in range(K):
                taps.append(xp[:,
                               kd:kd + stride * Do:stride,
                               kh:kh + stride * Ho:stride,
                               kw:kw + stride * Wo:stride,
                               :])
    patches = jnp.concatenate(taps, axis=-1)               # (N,Do,Ho,Wo,K^3*Cin)
    a = patches.reshape(N * Do * Ho * Wo, K ** 3 * Cin)
    w_mat = weight.reshape(K ** 3 * Cin, Cout)

    out = gemm_bias_lrelu(a, w_mat, bias)                  # Pallas hot path
    return out.reshape(N, Do, Ho, Wo, Cout)


# ---------------------------- FeatureLearning -----------------------------

# Strides of the 6 conv_blocks in FeatureLearning.__init__ (static config).
STRIDES = (2, 1, 1, 2, 1, 1)


def init_conv_params(key, in_ch, out_ch, ksize):
    """PyTorch-like default Conv3d init (uniform +-1/sqrt(fan_in))."""
    fan_in = in_ch * ksize ** 3
    bound = 1.0 / math.sqrt(fan_in)
    kw_, kb_ = jax.random.split(key)
    w = jax.random.uniform(kw_, (ksize, ksize, ksize, in_ch, out_ch),
                           jnp.float32, -bound, bound)
    b = jax.random.uniform(kb_, (out_ch,), jnp.float32, -bound, bound)
    return w, b


def _feature_learning_impl(params, src, tgt):
    """params: list of (weight, bias).  src/tgt: (N, 1, D, H, W) NCDHW."""
    def to_cl(x):   # NCDHW -> NDHWC
        return jnp.transpose(x, (0, 2, 3, 4, 1))

    def to_cf(x):   # NDHWC -> NCDHW
        return jnp.transpose(x, (0, 4, 1, 2, 3))

    n = src.shape[0]
    # Batch src and tgt together: each layer runs once on 2x the rows.
    x = jnp.concatenate([to_cl(src), to_cl(tgt)], axis=0)

    for i in (0, 1, 2):
        w, b = params[i]
        x = conv_block_fwd(x, w, b, STRIDES[i])
    c1 = x                                    # (2N, 8, 8, 8, 16)

    for i in (3, 4, 5):
        w, b = params[i]
        x = conv_block_fwd(x, w, b, STRIDES[i])
    c2 = x                                    # (2N, 4, 4, 4, 32)

    c11, c21 = to_cf(c1[:n]), to_cf(c1[n:])
    c12, c22 = to_cf(c2[:n]), to_cf(c2[n:])
    return c11, c21, c12, c22


feature_learning = jax.jit(_feature_learning_impl)


# --------------------------------- main -----------------------------------

if __name__ == "__main__":
    key = jax.random.PRNGKey(0)
    keys = jax.random.split(key, 8)

    # (in_ch, out_ch, ksize, stride) matching FeatureLearning.__init__
    cfg = [(1, 16, 4, 2), (16, 16, 3, 1), (16, 16, 3, 1),
           (16, 32, 4, 2), (32, 32, 3, 1), (32, 32, 3, 1)]
    params = []
    for i, (ci, co, k, s) in enumerate(cfg):
        assert s == STRIDES[i]
        w, b = init_conv_params(keys[i], ci, co, k)
        params.append((w, b))

    # Small deterministic inputs: (N=2, C=1, D=H=W=16), NCDHW like PyTorch.
    src = jax.random.normal(keys[6], (2, 1, 16, 16, 16), jnp.float32)
    tgt = jax.random.normal(keys[7], (2, 1, 16, 16, 16), jnp.float32)

    c11, c21, c12, c22 = feature_learning(params, src, tgt)
    jax.block_until_ready((c11, c21, c12, c22))

    assert c11.shape == (2, 16, 8, 8, 8), c11.shape
    assert c21.shape == (2, 16, 8, 8, 8), c21.shape
    assert c12.shape == (2, 32, 4, 4, 4), c12.shape
    assert c22.shape == (2, 32, 4, 4, 4), c22.shape
    assert c11.dtype == jnp.float32
    assert jnp.all(jnp.isfinite(c12))

    print("KERNEL_OK")
</pallas_src>

<mosaic_0001>
module attributes {stable_mosaic.version = 11 : i64} {
  func.func @_gemm_bias_lrelu_kernel(%arg0: i32, %arg1: memref<512x128xbf16, #tpu.memory_space<vmem>>, %arg2: memref<128x128xbf16, #tpu.memory_space<vmem>>, %arg3: memref<1x128xf32, #tpu.memory_space<vmem>>, %arg4: memref<512x128xf32, #tpu.memory_space<vmem>>) attributes {dimension_semantics = [#tpu.dimension_semantics<parallel>], iteration_bounds = array<i64: 4>, scalar_prefetch = 0 : i64, scratch_operands = 0 : i64, tpu.core_type = #tpu.core_type<tc>, window_params = [{transform_indices = @transform_0, window_bounds = array<i64: 512, 128>}, {pipeline_mode = #tpu.pipeline_mode<synchronous>, transform_indices = @transform_1, window_bounds = array<i64: 128, 128>}, {pipeline_mode = #tpu.pipeline_mode<synchronous>, transform_indices = @transform_2, window_bounds = array<i64: 1, 128>}, {transform_indices = @transform_3, window_bounds = array<i64: 512, 128>}]} {
    %c0 = arith.constant 0 : index
    %c0_0 = arith.constant 0 : index
    %0 = vector.load %arg1[%c0, %c0_0] : memref<512x128xbf16, #tpu.memory_space<vmem>>, vector<512x128xbf16>
    %c0_1 = arith.constant 0 : index
    %c0_2 = arith.constant 0 : index
    %1 = vector.load %arg2[%c0_1, %c0_2] : memref<128x128xbf16, #tpu.memory_space<vmem>>, vector<128x128xbf16>
    %cst = arith.constant dense<0.000000e+00> : vector<512x128xf32>
    %2 = tpu.matmul %0, %1, %cst {dimension_numbers = #tpu.dot_dimension_numbers<[1], [0], [0], [1], [0, 0, 1, 1], [], []>} : vector<512x128xbf16>, vector<128x128xbf16>, vector<512x128xf32> -> vector<512x128xf32>
    %c0_3 = arith.constant 0 : index
    %c0_4 = arith.constant 0 : index
    %3 = vector.load %arg3[%c0_3, %c0_4] : memref<1x128xf32, #tpu.memory_space<vmem>>, vector<1x128xf32>
    %4 = vector.broadcast %3 : vector<1x128xf32> to vector<512x128xf32>
    %5 = arith.addf %2, %4 : vector<512x128xf32>
    %cst_5 = arith.constant 0.000000e+00 : f32
    %6 = vector.broadcast %cst_5 : f32 to vector<512x128xf32>
    %7 = arith.cmpf oge, %5, %6 : vector<512x128xf32>
    %cst_6 = arith.constant 2.000000e-01 : f32
    %8 = vector.broadcast %cst_6 : f32 to vector<512x128xf32>
    %9 = arith.mulf %8, %5 : vector<512x128xf32>
    %10 = arith.select %7, %5, %9 : vector<512x128xi1>, vector<512x128xf32>
    %c0_7 = arith.constant 0 : index
    %c0_8 = arith.constant 0 : index
    %11 = vector.load %arg4[%c0_7, %c0_8] : memref<512x128xf32, #tpu.memory_space<vmem>>, vector<512x128xf32>
    tpu.vector_store %arg4[%c0_7, %c0_8], %10 {strides = array<i32>} : memref<512x128xf32, #tpu.memory_space<vmem>>, vector<512x128xf32>,
    return
  }
  func.func @transform_0(%arg0: i32) -> (i32, i32) {
    %c0_i32 = arith.constant 0 : i32
    %c0_i32_0 = arith.constant 0 : i32
    return %arg0, %c0_i32 : i32, i32
  }
  func.func @transform_1(%arg0: i32) -> (i32, i32) {
    %c0_i32 = arith.constant 0 : i32
    %c0_i32_0 = arith.constant 0 : i32
    %c0_i32_1 = arith.constant 0 : i32
    return %c0_i32, %c0_i32_0 : i32, i32
  }
  func.func @transform_2(%arg0: i32) -> (i32, i32) {
    %c0_i32 = arith.constant 0 : i32
    %c0_i32_0 = arith.constant 0 : i32
    %c0_i32_1 = arith.constant 0 : i32
    return %c0_i32, %c0_i32_0 : i32, i32
  }
  func.func @transform_3(%arg0: i32) -> (i32, i32) {
    %c0_i32 = arith.constant 0 : i32
    %c0_i32_0 = arith.constant 0 : i32
    return %arg0, %c0_i32 : i32, i32
  }
}

module attributes {stable_mosaic.version = 11 : i64} {
  func.func @_gemm_bias_lrelu_kernel(%arg0: i32, %arg1: memref<512x512xbf16, #tpu.memory_space<vmem>>, %arg2: memref<512x128xbf16, #tpu.memory_space<vmem>>, %arg3: memref<1x128xf32, #tpu.memory_space<vmem>>, %arg4: memref<512x128xf32, #tpu.memory_space<vmem>>) attributes {dimension_semantics = [#tpu.dimension_semantics<parallel>], iteration_bounds = array<i64: 4>, scalar_prefetch = 0 : i64, scratch_operands = 0 : i64, tpu.core_type = #tpu.core_type<tc>, window_params = [{transform_indices = @transform_0, window_bounds = array<i64: 512, 512>}, {pipeline_mode = #tpu.pipeline_mode<synchronous>, transform_indices = @transform_1, window_bounds = array<i64: 512, 128>}, {pipeline_mode = #tpu.pipeline_mode<synchronous>, transform_indices = @transform_2, window_bounds = array<i64: 1, 128>}, {transform_indices = @transform_3, window_bounds = array<i64: 512, 128>}]} {
    %c0 = arith.constant 0 : index
    %c0_0 = arith.constant 0 : index
    %0 = vector.load %arg1[%c0, %c0_0] : memref<512x512xbf16, #tpu.memory_space<vmem>>, vector<512x512xbf16>
    %c0_1 = arith.constant 0 : index
    %c0_2 = arith.constant 0 : index
    %1 = vector.load %arg2[%c0_1, %c0_2] : memref<512x128xbf16, #tpu.memory_space<vmem>>, vector<512x128xbf16>
    %cst = arith.constant dense<0.000000e+00> : vector<512x128xf32>
    %2 = tpu.matmul %0, %1, %cst {dimension_numbers = #tpu.dot_dimension_numbers<[1], [0], [0], [1], [0, 0, 1, 1], [], []>} : vector<512x512xbf16>, vector<512x128xbf16>, vector<512x128xf32> -> vector<512x128xf32>
    %c0_3 = arith.constant 0 : index
    %c0_4 = arith.constant 0 : index
    %3 = vector.load %arg3[%c0_3, %c0_4] : memref<1x128xf32, #tpu.memory_space<vmem>>, vector<1x128xf32>
    %4 = vector.broadcast %3 : vector<1x128xf32> to vector<512x128xf32>
    %5 = arith.addf %2, %4 : vector<512x128xf32>
    %cst_5 = arith.constant 0.000000e+00 : f32
    %6 = vector.broadcast %cst_5 : f32 to vector<512x128xf32>
    %7 = arith.cmpf oge, %5, %6 : vector<512x128xf32>
    %cst_6 = arith.constant 2.000000e-01 : f32
    %8 = vector.broadcast %cst_6 : f32 to vector<512x128xf32>
    %9 = arith.mulf %8, %5 : vector<512x128xf32>
    %10 = arith.select %7, %5, %9 : vector<512x128xi1>, vector<512x128xf32>
    %c0_7 = arith.constant 0 : index
    %c0_8 = arith.constant 0 : index
    %11 = vector.load %arg4[%c0_7, %c0_8] : memref<512x128xf32, #tpu.memory_space<vmem>>, vector<512x128xf32>
    tpu.vector_store %arg4[%c0_7, %c0_8], %10 {strides = array<i32>} : memref<512x128xf32, #tpu.memory_space<vmem>>, vector<512x128xf32>,
    return
  }
  func.func @transform_0(%arg0: i32) -> (i32, i32) {
    %c0_i32 = arith.constant 0 : i32
    %c0_i32_0 = arith.constant 0 : i32
    return %arg0, %c0_i32 : i32, i32
  }
  func.func @transform_1(%arg0: i32) -> (i32, i32) {
    %c0_i32 = arith.constant 0 : i32
    %c0_i32_0 = arith.constant 0 : i32
    %c0_i32_1 = arith.constant 0 : i32
    return %c0_i32, %c0_i32_0 : i32, i32
  }
  func.func @transform_2(%arg0: i32) -> (i32, i32) {
    %c0_i32 = arith.constant 0 : i32
    %c0_i32_0 = arith.constant 0 : i32
    %c0_i32_1 = arith.constant 0 : i32
    return %c0_i32, %c0_i32_0 : i32, i32
  }
  func.func @transform_3(%arg0: i32) -> (i32, i32) {
    %c0_i32 = arith.constant 0 : i32
    %c0_i32_0 = arith.constant 0 : i32
    return %arg0, %c0_i32 : i32, i32
  }
}

module attributes {stable_mosaic.version = 11 : i64} {
  func.func @_gemm_bias_lrelu_kernel(%arg0: i32, %arg1: memref<128x1024xbf16, #tpu.memory_space<vmem>>, %arg2: memref<1024x128xbf16, #tpu.memory_space<vmem>>, %arg3: memref<1x128xf32, #tpu.memory_space<vmem>>, %arg4: memref<128x128xf32, #tpu.memory_space<vmem>>) attributes {dimension_semantics = [#tpu.dimension_semantics<parallel>], iteration_bounds = array<i64: 2>, scalar_prefetch = 0 : i64, scratch_operands = 0 : i64, tpu.core_type = #tpu.core_type<tc>, window_params = [{transform_indices = @transform_0, window_bounds = array<i64: 128, 1024>}, {pipeline_mode = #tpu.pipeline_mode<synchronous>, transform_indices = @transform_1, window_bounds = array<i64: 1024, 128>}, {pipeline_mode = #tpu.pipeline_mode<synchronous>, transform_indices = @transform_2, window_bounds = array<i64: 1, 128>}, {transform_indices = @transform_3, window_bounds = array<i64: 128, 128>}]} {
    %c0 = arith.constant 0 : index
    %c0_0 = arith.constant 0 : index
    %0 = vector.load %arg1[%c0, %c0_0] : memref<128x1024xbf16, #tpu.memory_space<vmem>>, vector<128x1024xbf16>
    %c0_1 = arith.constant 0 : index
    %c0_2 = arith.constant 0 : index
    %1 = vector.load %arg2[%c0_1, %c0_2] : memref<1024x128xbf16, #tpu.memory_space<vmem>>, vector<1024x128xbf16>
    %cst = arith.constant dense<0.000000e+00> : vector<128x128xf32>
    %2 = tpu.matmul %0, %1, %cst {dimension_numbers = #tpu.dot_dimension_numbers<[1], [0], [0], [1], [0, 0, 1, 1], [], []>} : vector<128x1024xbf16>, vector<1024x128xbf16>, vector<128x128xf32> -> vector<128x128xf32>
    %c0_3 = arith.constant 0 : index
    %c0_4 = arith.constant 0 : index
    %3 = vector.load %arg3[%c0_3, %c0_4] : memref<1x128xf32, #tpu.memory_space<vmem>>, vector<1x128xf32>
    %4 = vector.broadcast %3 : vector<1x128xf32> to vector<128x128xf32>
    %5 = arith.addf %2, %4 : vector<128x128xf32>
    %cst_5 = arith.constant 0.000000e+00 : f32
    %6 = vector.broadcast %cst_5 : f32 to vector<128x128xf32>
    %7 = arith.cmpf oge, %5, %6 : vector<128x128xf32>
    %cst_6 = arith.constant 2.000000e-01 : f32
    %8 = vector.broadcast %cst_6 : f32 to vector<128x128xf32>
    %9 = arith.mulf %8, %5 : vector<128x128xf32>
    %10 = arith.select %7, %5, %9 : vector<128x128xi1>, vector<128x128xf32>
    %c0_7 = arith.constant 0 : index
    %c0_8 = arith.constant 0 : index
    %11 = vector.load %arg4[%c0_7, %c0_8] : memref<128x128xf32, #tpu.memory_space<vmem>>, vector<128x128xf32>
    tpu.vector_store %arg4[%c0_7, %c0_8], %10 {strides = array<i32>} : memref<128x128xf32, #tpu.memory_space<vmem>>, vector<128x128xf32>,
    return
  }
  func.func @transform_0(%arg0: i32) -> (i32, i32) {
    %c0_i32 = arith.constant 0 : i32
    %c0_i32_0 = arith.constant 0 : i32
    return %arg0, %c0_i32 : i32, i32
  }
  func.func @transform_1(%arg0: i32) -> (i32, i32) {
    %c0_i32 = arith.constant 0 : i32
    %c0_i32_0 = arith.constant 0 : i32
    %c0_i32_1 = arith.constant 0 : i32
    return %c0_i32, %c0_i32_0 : i32, i32
  }
  func.func @transform_2(%arg0: i32) -> (i32, i32) {
    %c0_i32 = arith.constant 0 : i32
    %c0_i32_0 = arith.constant 0 : i32
    %c0_i32_1 = arith.constant 0 : i32
    return %c0_i32, %c0_i32_0 : i32, i32
  }
  func.func @transform_3(%arg0: i32) -> (i32, i32) {
    %c0_i32 = arith.constant 0 : i32
    %c0_i32_0 = arith.constant 0 : i32
    return %arg0, %c0_i32 : i32, i32
  }
}

module attributes {stable_mosaic.version = 11 : i64} {
  func.func @_gemm_bias_lrelu_kernel(%arg0: i32, %arg1: memref<128x896xbf16, #tpu.memory_space<vmem>>, %arg2: memref<896x128xbf16, #tpu.memory_space<vmem>>, %arg3: memref<1x128xf32, #tpu.memory_space<vmem>>, %arg4: memref<128x128xf32, #tpu.memory_space<vmem>>) attributes {dimension_semantics = [#tpu.dimension_semantics<parallel>], iteration_bounds = array<i64: 2>, scalar_prefetch = 0 : i64, scratch_operands = 0 : i64, tpu.core_type = #tpu.core_type<tc>, window_params = [{transform_indices = @transform_0, window_bounds = array<i64: 128, 896>}, {pipeline_mode = #tpu.pipeline_mode<synchronous>, transform_indices = @transform_1, window_bounds = array<i64: 896, 128>}, {pipeline_mode = #tpu.pipeline_mode<synchronous>, transform_indices = @transform_2, window_bounds = array<i64: 1, 128>}, {transform_indices = @transform_3, window_bounds = array<i64: 128, 128>}]} {
    %c0 = arith.constant 0 : index
    %c0_0 = arith.constant 0 : index
    %0 = vector.load %arg1[%c0, %c0_0] : memref<128x896xbf16, #tpu.memory_space<vmem>>, vector<128x896xbf16>
    %c0_1 = arith.constant 0 : index
    %c0_2 = arith.constant 0 : index
    %1 = vector.load %arg2[%c0_1, %c0_2] : memref<896x128xbf16, #tpu.memory_space<vmem>>, vector<896x128xbf16>
    %cst = arith.constant dense<0.000000e+00> : vector<128x128xf32>
    %2 = tpu.matmul %0, %1, %cst {dimension_numbers = #tpu.dot_dimension_numbers<[1], [0], [0], [1], [0, 0, 1, 1], [], []>} : vector<128x896xbf16>, vector<896x128xbf16>, vector<128x128xf32> -> vector<128x128xf32>
    %c0_3 = arith.constant 0 : index
    %c0_4 = arith.constant 0 : index
    %3 = vector.load %arg3[%c0_3, %c0_4] : memref<1x128xf32, #tpu.memory_space<vmem>>, vector<1x128xf32>
    %4 = vector.broadcast %3 : vector<1x128xf32> to vector<128x128xf32>
    %5 = arith.addf %2, %4 : vector<128x128xf32>
    %cst_5 = arith.constant 0.000000e+00 : f32
    %6 = vector.broadcast %cst_5 : f32 to vector<128x128xf32>
    %7 = arith.cmpf oge, %5, %6 : vector<128x128xf32>
    %cst_6 = arith.constant 2.000000e-01 : f32
    %8 = vector.broadcast %cst_6 : f32 to vector<128x128xf32>
    %9 = arith.mulf %8, %5 : vector<128x128xf32>
    %10 = arith.select %7, %5, %9 : vector<128x128xi1>, vector<128x128xf32>
    %c0_7 = arith.constant 0 : index
    %c0_8 = arith.constant 0 : index
    %11 = vector.load %arg4[%c0_7, %c0_8] : memref<128x128xf32, #tpu.memory_space<vmem>>, vector<128x128xf32>
    tpu.vector_store %arg4[%c0_7, %c0_8], %10 {strides = array<i32>} : memref<128x128xf32, #tpu.memory_space<vmem>>, vector<128x128xf32>,
    return
  }
  func.func @transform_0(%arg0: i32) -> (i32, i32) {
    %c0_i32 = arith.constant 0 : i32
    %c0_i32_0 = arith.constant 0 : i32
    return %arg0, %c0_i32 : i32, i32
  }
  func.func @transform_1(%arg0: i32) -> (i32, i32) {
    %c0_i32 = arith.constant 0 : i32
    %c0_i32_0 = arith.constant 0 : i32
    %c0_i32_1 = arith.constant 0 : i32
    return %c0_i32, %c0_i32_0 : i32, i32
  }
  func.func @transform_2(%arg0: i32) -> (i32, i32) {
    %c0_i32 = arith.constant 0 : i32
    %c0_i32_0 = arith.constant 0 : i32
    %c0_i32_1 = arith.constant 0 : i32
    return %c0_i32, %c0_i32_0 : i32, i32
  }
  func.func @transform_3(%arg0: i32) -> (i32, i32) {
    %c0_i32 = arith.constant 0 : i32
    %c0_i32_0 = arith.constant 0 : i32
    return %arg0, %c0_i32 : i32, i32
  }
}

</mosaic_0001>

<llo_original>
// kernel: _feature_learning_impl.6
$region0: #{_feature_learning_impl.6}
  #allocation0 [shape = 'u32[]', space=smem, size = 0x4, offset = 0x4, fixed_abs, tag = 'smem constant byte address 0x4 - core index']
  #allocation1 [shape = 'u32[72,128]{1,0:T(1,128)}', space=vmem, size = 0x9000, scoped, tag = 'internal scratch']
  %s0 = inlined_call_operand.vmem [shape: bf16[2048,128], index: 0, kind: input, shape index: {}]
  %s1 = inlined_call_operand.vmem [shape: bf16[128,128], index: 1, kind: input, shape index: {}]
  %s2 = inlined_call_operand.vmem [shape: f32[1,128], index: 2, kind: input, shape index: {}]
  %s3 = inlined_call_operand.vmem [shape: f32[2048,128], index: 3, kind: output, shape index: {}]
  %s4 = sld [smem:[#allocation0]]
  $region45: #{_feature_learning_impl.6} parent=0
    _
  %s6 = ssub.s32 1, %s4
  %s7 = scalar_select 0, %s6, %s4
  loop: start=0, step=1, limit=6
  $region2: #{_feature_learning_impl.6} parent=0 // loop_pre_header
    _
  $region3: #{_feature_learning_impl.6} parent=0 // loop_header
    %s9 = sphi 0, %s13
    %p10 = scmp.ge.s32.totalorder %s9, 6
    %s19 = sphi 0, %s21
    %s22 = sphi 0, %s19
    %s23 = sphi 0, %s22
    %s39 = sphi 0, %s23
    %s43 = sphi 0, %s43
    %s45 = sphi 0, %s43
    %s46 = sphi 0, %s45
    %s60 = sphi 0, %s46
    %s64 = sphi 0, %s64
    %s66 = sphi 0, %s64
    %s67 = sphi 0, %s66
    %s81 = sphi 0, %s67
    %s87 = sphi 0, %s89
    %s90 = sphi 0, %s87
    %s91 = sphi 0, %s90
    %s107 = sphi 0, %s91
  $region4: #{_feature_learning_impl.6} parent=0 // loop_header_branch
    %12 = sbr.rel (%p10) target = $region8
  $region5: #{_feature_learning_impl.6} parent=0 // loop_body
    %s14 = ssub.s32 %s9, 1
    %s15 = ssub.s32 %s9, 2
    %s16 = sadd.s32 %s9, 1
    %s17 = ssub.s32 %s9, %s16
    %p18 = scmp.eq.s32.totalorder %s17, 0
    %s20 = sadd.s32 %s19, 1
    %s21 = scalar_select %p18, %s19, %s20
    %p24 = pneg %p18
    %p25 = scmp.eq.s32.totalorder %s9, 3
    %p26 = por %p24, %p25
    %p27 = scmp.ne.s32.totalorder %s19, %s22
    %p28 = scmp.eq.s32.totalorder %s9, 0
    %p29 = por %p27, %p28
    %p30 = scmp.ne.s32.totalorder %s19, %s22
    %p31 = scmp.eq.s32.totalorder %s14, 3
    %p32 = por %p30, %p31
    %p33 = scmp.ne.s32.totalorder %s22, %s23
    %p34 = scmp.eq.s32.totalorder %s14, 0
    %p35 = por %p33, %p34
    %p36 = scmp.ne.s32.totalorder %s22, %s23
    %p37 = scmp.eq.s32.totalorder %s15, 3
    %p38 = por %p36, %p37
    %p40 = scmp.ne.s32.totalorder %s23, %s39
    %p41 = scmp.eq.s32.totalorder %s15, 0
    %p42 = por %p40, %p41
    %s44 = sadd.s32 %s43, 1
    %p47 = scmp.eq.s32.totalorder %s9, 3
    %p48 = scmp.ne.s32.totalorder %s43, %s45
    %p49 = scmp.eq.s32.totalorder %s9, 0
    %p50 = por %p48, %p49
    %p51 = scmp.ne.s32.totalorder %s43, %s45
    %p52 = scmp.eq.s32.totalorder %s14, 3
    %p53 = por %p51, %p52
    %p54 = scmp.ne.s32.totalorder %s45, %s46
    %p55 = scmp.eq.s32.totalorder %s14, 0
    %p56 = por %p54, %p55
    %p57 = scmp.ne.s32.totalorder %s45, %s46
    %p58 = scmp.eq.s32.totalorder %s15, 3
    %p59 = por %p57, %p58
    %p61 = scmp.ne.s32.totalorder %s46, %s60
    %p62 = scmp.eq.s32.totalorder %s15, 0
    %p63 = por %p61, %p62
    %s65 = sadd.s32 %s64, 1
    %p68 = scmp.eq.s32.totalorder %s9, 3
    %p69 = scmp.ne.s32.totalorder %s64, %s66
    %p70 = scmp.eq.s32.totalorder %s9, 0
    %p71 = por %p69, %p70
    %p72 = scmp.ne.s32.totalorder %s64, %s66
    %p73 = scmp.eq.s32.totalorder %s14, 3
    %p74 = por %p72, %p73
    %p75 = scmp.ne.s32.totalorder %s66, %s67
    %p76 = scmp.eq.s32.totalorder %s14, 0
    %p77 = por %p75, %p76
    %p78 = scmp.ne.s32.totalorder %s66, %s67
    %p79 = scmp.eq.s32.totalorder %s15, 3
    %p80 = por %p78, %p79
    %p82 = scmp.ne.s32.totalorder %s67, %s81
    %p83 = scmp.eq.s32.totalorder %s15, 0
    %p84 = por %p82, %p83
    %s85 = ssub.s32 %s9, %s16
    %p86 = scmp.eq.s32.totalorder %s85, 0
    %s88 = sadd.s32 %s87, 1
    %s89 = scalar_select %p86, %s87, %s88
    %p92 = pneg %p86
    %p93 = scmp.eq.s32.totalorder %s9, 3
    %p94 = por %p92, %p93
    %p95 = scmp.ne.s32.totalorder %s87, %s90
    %p96 = scmp.eq.s32.totalorder %s9, 0
    %p97 = por %p95, %p96
    %p98 = scmp.ne.s32.totalorder %s87, %s90
    %p99 = scmp.eq.s32.totalorder %s14, 3
    %p100 = por %p98, %p99
    %p101 = scmp.ne.s32.totalorder %s90, %s91
    %p102 = scmp.eq.s32.totalorder %s14, 0
    %p103 = por %p101, %p102
    %p104 = scmp.ne.s32.totalorder %s90, %s91
    %p105 = scmp.eq.s32.totalorder %s15, 3
    %p106 = por %p104, %p105
    %p108 = scmp.ne.s32.totalorder %s91, %s107
    %p109 = scmp.eq.s32.totalorder %s15, 0
    %p110 = por %p108, %p109
    %p111 = scmp.le.s32.totalorder 1, %s9
    %p112 = scmp.lt.s32.totalorder %s9, 5
    %p113 = pnand %p111, %p112
    %p114 = pneg %p113
    // Predicated region
    $region9: #{_feature_learning_impl.6} parent=5 // pred_check
      _
    $region10: #{_feature_learning_impl.6} parent=5 // pred_check_branch
      %116 = sbr.rel (%p113) target = $region12
    $region11: #{_feature_learning_impl.6} parent=5 // pred_region
      %s117 = ssub.s32 %s9, 1
      // Predicated region
      $region13: #{_feature_learning_impl.6} parent=11 // pred_check
        %p118 = pneg %p56
      $region14: #{_feature_learning_impl.6} parent=11 // pred_check_branch
        %120 = sbr.rel (%p118) target = $region16
      $region15: #{_feature_learning_impl.6} parent=11 // pred_region
        _
      $region16: #{_feature_learning_impl.6} parent=11 // pred_fallthru
        _
      // Predicated region
      $region17: #{_feature_learning_impl.6} parent=11 // pred_check
        %p121 = pneg %p77
      $region18: #{_feature_learning_impl.6} parent=11 // pred_check_branch
        %123 = sbr.rel (%p121) target = $region20
      $region19: #{_feature_learning_impl.6} parent=11 // pred_region
        _
      $region20: #{_feature_learning_impl.6} parent=11 // pred_fallthru
        _
    $region12: #{_feature_learning_impl.6} parent=5 // pred_fallthru
      _
    %p124 = scmp.lt.s32.totalorder %s9, 4
    // Predicated region
    $region21: #{_feature_learning_impl.6} parent=5 // pred_check
      %p125 = pneg %p124
    $region22: #{_feature_learning_impl.6} parent=5 // pred_check_branch
      %127 = sbr.rel (%p125) target = $region24
    $region23: #{_feature_learning_impl.6} parent=5 // pred_region
      // Predicated region
      $region25: #{_feature_learning_impl.6} parent=23 // pred_check
        %p128 = pneg %p29
      $region26: #{_feature_learning_impl.6} parent=23 // pred_check_branch
        %130 = sbr.rel (%p128) target = $region28
      $region27: #{_feature_learning_impl.6} parent=23 // pred_region
        %s131 = smul.u32 64, %s9
        %p132 = scmp.lt.s32.totalorder %s131, 255
        %s133 = scalar_select %p132, %s131, 255
        %s134 = smul.addr %s133, 4
        %s135 = scalar_lea.vmem %s0, %s134
        %s136 = smul.u32 64, %s9
      $region28: #{_feature_learning_impl.6} parent=23 // pred_fallthru
        _
    $region24: #{_feature_learning_impl.6} parent=5 // pred_fallthru
      _
    %p137 = scmp.le.s32.totalorder 1, %s9
    %p138 = scmp.lt.s32.totalorder %s9, 5
    %p139 = pnand %p137, %p138
    %p140 = pneg %p139
    // Predicated region
    $region29: #{_feature_learning_impl.6} parent=5 // pred_check
      _
    $region30: #{_feature_learning_impl.6} parent=5 // pred_check_branch
      %142 = sbr.rel (%p139) target = $region32
    $region31: #{_feature_learning_impl.6} parent=5 // pred_region
      %s143 = ssub.s32 %s9, 1
      %s144 = smul.u32 64, %s14
      %p145 = scmp.lt.s32.totalorder %s144, 255
      %s146 = scalar_select %p145, %s144, 255
      %s147 = smul.addr %s146, 4
      %s148 = scalar_lea.vmem %s0, %s147
      %p149 = pneg %p35
      %p150 = pneg %p32
      %p151 = pneg %p56
      %p152 = pneg %p53
      %p153 = pneg %p77
      %p154 = pneg %p74
      %p155 = pneg %p103
      %p156 = pneg %p100
      %s157 = smul.u32 64, %s14
      %p158 = scmp.lt.s32.totalorder %s157, 255
      %s159 = scalar_select %p158, %s157, 255
      %s160 = smul.addr %s159, 8
      %s161 = scalar_lea.vmem %s3, %s160
      %s162 = smul.u32 64, %s14
      %p163 = scmp.lt.s32.totalorder %s162, 255
      %s164 = scalar_select %p163, %s162, 255
      %s165 = smul.addr %s164, 4
      %s166 = scalar_lea.vmem %s0, %s165
      %s167 = smul.u32 64, %s14
      %s168 = smul.u32 64, %s14
      %p169 = scmp.lt.s32.totalorder %s168, 255
      %s170 = scalar_select %p169, %s168, 255
      %s171 = smul.addr %s170, 8
      %s172 = scalar_lea.vmem %s3, %s171
      %s173 = smul.u32 64, %s14
      %v174 = vld [vmem:[%s166] sm:$0xf]
      %v175 = vld [vmem:[%s166 + $0x4] sm:$0xf]
      %v176 = vld [vmem:[%s166 + $0x8] sm:$0xf]
      %v177 = vld [vmem:[%s166 + $0xc] sm:$0xf]
      %v178 = vld [vmem:[%s166 + $0x10] sm:$0xf]
      %v179 = vld [vmem:[%s166 + $0x14] sm:$0xf]
      %v180 = vld [vmem:[%s166 + $0x18] sm:$0xf]
      %v181 = vld [vmem:[%s166 + $0x1c] sm:$0xf]
      %v182 = vld [vmem:[%s166 + $0x20] sm:$0xf]
      %v183 = vld [vmem:[%s166 + $0x24] sm:$0xf]
      %v184 = vld [vmem:[%s166 + $0x28] sm:$0xf]
      %v185 = vld [vmem:[%s166 + $0x2c] sm:$0xf]
      %v186 = vld [vmem:[%s166 + $0x30] sm:$0xf]
      %v187 = vld [vmem:[%s166 + $0x34] sm:$0xf]
      %v188 = vld [vmem:[%s166 + $0x38] sm:$0xf]
      %v189 = vld [vmem:[%s166 + $0x3c] sm:$0xf]
      %v190 = vld [vmem:[%s166 + $0x40] sm:$0xf]
      %v191 = vld [vmem:[%s166 + $0x44] sm:$0xf]
      %v192 = vld [vmem:[%s166 + $0x48] sm:$0xf]
      %v193 = vld [vmem:[%s166 + $0x4c] sm:$0xf]
      %v194 = vld [vmem:[%s166 + $0x50] sm:$0xf]
      %v195 = vld [vmem:[%s166 + $0x54] sm:$0xf]
      %v196 = vld [vmem:[%s166 + $0x58] sm:$0xf]
      %v197 = vld [vmem:[%s166 + $0x5c] sm:$0xf]
      %v198 = vld [vmem:[%s166 + $0x60] sm:$0xf]
      %v199 = vld [vmem:[%s166 + $0x64] sm:$0xf]
      %v200 = vld [vmem:[%s166 + $0x68] sm:$0xf]
      %v201 = vld [vmem:[%s166 + $0x6c] sm:$0xf]
      %v202 = vld [vmem:[%s166 + $0x70] sm:$0xf]
      %v203 = vld [vmem:[%s166 + $0x74] sm:$0xf]
      %v204 = vld [vmem:[%s166 + $0x78] sm:$0xf]
      %v205 = vld [vmem:[%s166 + $0x7c] sm:$0xf]
      %v206 = vld [vmem:[%s166 + $0x80] sm:$0xf]
      %v207 = vld [vmem:[%s166 + $0x84] sm:$0xf]
      %v208 = vld [vmem:[%s166 + $0x88] sm:$0xf]
      %v209 = vld [vmem:[%s166 + $0x8c] sm:$0xf]
      %v210 = vld [vmem:[%s166 + $0x90] sm:$0xf]
      %v211 = vld [vmem:[%s166 + $0x94] sm:$0xf]
      %v212 = vld [vmem:[%s166 + $0x98] sm:$0xf]
      %v213 = vld [vmem:[%s166 + $0x9c] sm:$0xf]
      %v214 = vld [vmem:[%s166 + $0xa0] sm:$0xf]
      %v215 = vld [vmem:[%s166 + $0xa4] sm:$0xf]
      %v216 = vld [vmem:[%s166 + $0xa8] sm:$0xf]
      %v217 = vld [vmem:[%s166 + $0xac] sm:$0xf]
      %v218 = vld [vmem:[%s166 + $0xb0] sm:$0xf]
      %v219 = vld [vmem:[%s166 + $0xb4] sm:$0xf]
      %v220 = vld [vmem:[%s166 + $0xb8] sm:$0xf]
      %v221 = vld [vmem:[%s166 + $0xbc] sm:$0xf]
      %v222 = vld [vmem:[%s166 + $0xc0] sm:$0xf]
      %v223 = vld [vmem:[%s166 + $0xc4] sm:$0xf]
      %v224 = vld [vmem:[%s166 + $0xc8] sm:$0xf]
      %v225 = vld [vmem:[%s166 + $0xcc] sm:$0xf]
      %v226 = vld [vmem:[%s166 + $0xd0] sm:$0xf]
      %v227 = vld [vmem:[%s166 + $0xd4] sm:$0xf]
      %v228 = vld [vmem:[%s166 + $0xd8] sm:$0xf]
      %v229 = vld [vmem:[%s166 + $0xdc] sm:$0xf]
      %v230 = vld [vmem:[%s166 + $0xe0] sm:$0xf]
      %v231 = vld [vmem:[%s166 + $0xe4] sm:$0xf]
      %v232 = vld [vmem:[%s166 + $0xe8] sm:$0xf]
      %v233 = vld [vmem:[%s166 + $0xec] sm:$0xf]
      %v234 = vld [vmem:[%s166 + $0xf0] sm:$0xf]
      %v235 = vld [vmem:[%s166 + $0xf4] sm:$0xf]
      %v236 = vld [vmem:[%s166 + $0xf8] sm:$0xf]
      %v237 = vld [vmem:[%s166 + $0xfc] sm:$0xf]
      %v238 = vld [vmem:[%s1] sm:$0xf]
      %v239 = vld [vmem:[%s1 + $0x4] sm:$0xf]
      %v240 = vld [vmem:[%s1 + $0x8] sm:$0xf]
      %v241 = vld [vmem:[%s1 + $0xc] sm:$0xf]
      %v242 = vld [vmem:[%s1 + $0x10] sm:$0xf]
      %v243 = vld [vmem:[%s1 + $0x14] sm:$0xf]
      %v244 = vld [vmem:[%s1 + $0x18] sm:$0xf]
      %v245 = vld [vmem:[%s1 + $0x1c] sm:$0xf]
      %v246 = vld [vmem:[%s1 + $0x20] sm:$0xf]
      %v247 = vld [vmem:[%s1 + $0x24] sm:$0xf]
      %v248 = vld [vmem:[%s1 + $0x28] sm:$0xf]
      %v249 = vld [vmem:[%s1 + $0x2c] sm:$0xf]
      %v250 = vld [vmem:[%s1 + $0x30] sm:$0xf]
      %v251 = vld [vmem:[%s1 + $0x34] sm:$0xf]
      %v252 = vld [vmem:[%s1 + $0x38] sm:$0xf]
      %v253 = vld [vmem:[%s1 + $0x3c] sm:$0xf]
      %v254 = vld [vmem:[%s2] sm:$0x1]
      %v256 = vperm.slane %v254, 0
      %v322 = vunpack.c.l.b16 %v174
      %v323 = vunpack.c.l.b16 %v175
      %v324 = vunpack.c.l.b16 %v176
      %v325 = vunpack.c.l.b16 %v177
      %v326 = vunpack.c.l.b16 %v178
      %v327 = vunpack.c.l.b16 %v179
      %v328 = vunpack.c.l.b16 %v180
      %v329 = vunpack.c.l.b16 %v181
      %v330 = vunpack.c.l.b16 %v182
      %v331 = vunpack.c.l.b16 %v183
      %v332 = vunpack.c.l.b16 %v184
      %v333 = vunpack.c.l.b16 %v185
      %v334 = vunpack.c.l.b16 %v186
      %v335 = vunpack.c.l.b16 %v187
      %v336 = vunpack.c.l.b16 %v188
      %v337 = vunpack.c.l.b16 %v189
      %v338 = vunpack.c.l.b16 %v190
      %v339 = vunpack.c.l.b16 %v191
      %v340 = vunpack.c.l.b16 %v192
      %v341 = vunpack.c.l.b16 %v193
      %v342 = vunpack.c.l.b16 %v194
      %v343 = vunpack.c.l.b16 %v195
      %v344 = vunpack.c.l.b16 %v196
      %v345 = vunpack.c.l.b16 %v197
      %v346 = vunpack.c.l.b16 %v198
      %v347 = vunpack.c.l.b16 %v199
      %v348 = vunpack.c.l.b16 %v200
      %v349 = vunpack.c.l.b16 %v201
      %v350 = vunpack.c.l.b16 %v202
      %v351 = vunpack.c.l.b16 %v203
      %v352 = vunpack.c.l.b16 %v204
      %v353 = vunpack.c.l.b16 %v205
      %v354 = vunpack.c.l.b16 %v206
      %v355 = vunpack.c.l.b16 %v207
      %v356 = vunpack.c.l.b16 %v208
      %v357 = vunpack.c.l.b16 %v209
      %v358 = vunpack.c.l.b16 %v210
      %v359 = vunpack.c.l.b16 %v211
      %v360 = vunpack.c.l.b16 %v212
      %v361 = vunpack.c.l.b16 %v213
      %v362 = vunpack.c.l.b16 %v214
      %v363 = vunpack.c.l.b16 %v215
      %v364 = vunpack.c.l.b16 %v216
      %v365 = vunpack.c.l.b16 %v217
      %v366 = vunpack.c.l.b16 %v218
      %v367 = vunpack.c.l.b16 %v219
      %v368 = vunpack.c.l.b16 %v220
      %v369 = vunpack.c.l.b16 %v221
      %v370 = vunpack.c.l.b16 %v222
      %v371 = vunpack.c.l.b16 %v223
      %v372 = vunpack.c.l.b16 %v224
      %v373 = vunpack.c.l.b16 %v225
      %v374 = vunpack.c.l.b16 %v226
      %v375 = vunpack.c.l.b16 %v227
      %v376 = vunpack.c.l.b16 %v228
      %v377 = vunpack.c.l.b16 %v229
      %v378 = vunpack.c.l.b16 %v230
      %v379 = vunpack.c.l.b16 %v231
      %v380 = vunpack.c.l.b16 %v232
      %v381 = vunpack.c.l.b16 %v233
      %v382 = vunpack.c.l.b16 %v234
      %v383 = vunpack.c.l.b16 %v235
      %v384 = vunpack.c.l.b16 %v236
      %v385 = vunpack.c.l.b16 %v237
      %v386 = vpack.c.b16 %v323, %v322
      %v387 = vpack.c.b16 %v325, %v324
      %v388 = vpack.c.b16 %v327, %v326
      %v389 = vpack.c.b16 %v329, %v328
      %v390 = vpack.c.b16 %v331, %v330
      %v391 = vpack.c.b16 %v333, %v332
      %v392 = vpack.c.b16 %v335, %v334
      %v393 = vpack.c.b16 %v337, %v336
      %v394 = vpack.c.b16 %v339, %v338
      %v395 = vpack.c.b16 %v341, %v340
      %v396 = vpack.c.b16 %v343, %v342
      %v397 = vpack.c.b16 %v345, %v344
      %v398 = vpack.c.b16 %v347, %v346
      %v399 = vpack.c.b16 %v349, %v348
      %v400 = vpack.c.b16 %v351, %v350
      %v401 = vpack.c.b16 %v353, %v352
      %v402 = vpack.c.b16 %v355, %v354
      %v403 = vpack.c.b16 %v357, %v356
      %v404 = vpack.c.b16 %v359, %v358
      %v405 = vpack.c.b16 %v361, %v360
      %v406 = vpack.c.b16 %v363, %v362
      %v407 = vpack.c.b16 %v365, %v364
      %v408 = vpack.c.b16 %v367, %v366
      %v409 = vpack.c.b16 %v369, %v368
      %v410 = vpack.c.b16 %v371, %v370
      %v411 = vpack.c.b16 %v373, %v372
      %v412 = vpack.c.b16 %v375, %v374
      %v413 = vpack.c.b16 %v377, %v376
      %v414 = vpack.c.b16 %v379, %v378
      %v415 = vpack.c.b16 %v381, %v380
      %v416 = vpack.c.b16 %v383, %v382
      %v417 = vpack.c.b16 %v385, %v384
      %v466 = vunpack.c.l.b16 %v238
      %v467 = vunpack.c.l.b16 %v239
      %v468 = vunpack.c.l.b16 %v240
      %v469 = vunpack.c.l.b16 %v241
      %v470 = vunpack.c.l.b16 %v242
      %v471 = vunpack.c.l.b16 %v243
      %v472 = vunpack.c.l.b16 %v244
      %v473 = vunpack.c.l.b16 %v245
      %v474 = vunpack.c.l.b16 %v246
      %v475 = vunpack.c.l.b16 %v247
      %v476 = vunpack.c.l.b16 %v248
      %v477 = vunpack.c.l.b16 %v249
      %v478 = vunpack.c.l.b16 %v250
      %v479 = vunpack.c.l.b16 %v251
      %v480 = vunpack.c.l.b16 %v252
      %v481 = vunpack.c.l.b16 %v253
      %v482 = vpack.c.b16 %v467, %v466
      %v483 = vpack.c.b16 %v469, %v468
      %v484 = vpack.c.b16 %v471, %v470
      %v485 = vpack.c.b16 %v473, %v472
      %v486 = vpack.c.b16 %v475, %v474
      %v487 = vpack.c.b16 %v477, %v476
      %v488 = vpack.c.b16 %v479, %v478
      %v489 = vpack.c.b16 %v481, %v480
      %498 = vmatpush.bf16.msra.mxu0 %v489
      %499 = vmatpush.bf16.msra.mxu0 %v488
      %500 = vmatpush.bf16.msra.mxu0 %v487
      %501 = vmatpush.bf16.msra.mxu0 %v486
      %502 = vmatpush.bf16.msra.mxu0 %v485
      %503 = vmatpush.bf16.msra.mxu0 %v484
      %504 = vmatpush.bf16.msra.mxu0 %v483
      %505 = vmatpush.bf16.msra.mxu0 %v482
      %506 = vmatmul.bf16.gmra.mxu0 %v386
      %v507 = vpop.f32.mrf.mxu0
      %v508 = vadd.f32 %v256, %v507
      %v509 = vpop.f32.mrf.mxu0
      %v510 = vadd.f32 %v256, %v509
      %511 = vmatmul.bf16.gmra.mxu0 %v387
      %v512 = vpop.f32.mrf.mxu0
      %v513 = vadd.f32 %v256, %v512
      %v514 = vpop.f32.mrf.mxu0
      %v515 = vadd.f32 %v256, %v514
      %516 = vmatmul.bf16.gmra.mxu0 %v388
      %v517 = vpop.f32.mrf.mxu0
      %v518 = vadd.f32 %v256, %v517
      %v519 = vpop.f32.mrf.mxu0
      %v520 = vadd.f32 %v256, %v519
      %521 = vmatmul.bf16.gmra.mxu0 %v389
      %v522 = vpop.f32.mrf.mxu0
      %v523 = vadd.f32 %v256, %v522
      %v524 = vpop.f32.mrf.mxu0
      %v525 = vadd.f32 %v256, %v524
      %526 = vmatmul.bf16.gmra.mxu0 %v390
      %v527 = vpop.f32.mrf.mxu0
      %v528 = vadd.f32 %v256, %v527
      %v529 = vpop.f32.mrf.mxu0
      %v530 = vadd.f32 %v256, %v529
      %531 = vmatmul.bf16.gmra.mxu0 %v391
      %v532 = vpop.f32.mrf.mxu0
      %v533 = vadd.f32 %v256, %v532
      %v534 = vpop.f32.mrf.mxu0
      %v535 = vadd.f32 %v256, %v534
      %536 = vmatmul.bf16.gmra.mxu0 %v392
      %v537 = vpop.f32.mrf.mxu0
      %v538 = vadd.f32 %v256, %v537
      %v539 = vpop.f32.mrf.mxu0
      %v540 = vadd.f32 %v256, %v539
      %541 = vmatmul.bf16.gmra.mxu0 %v393
      %v542 = vpop.f32.mrf.mxu0
      %v543 = vadd.f32 %v256, %v542
      %v544 = vpop.f32.mrf.mxu0
      %v545 = vadd.f32 %v256, %v544
      %546 = vmatmul.bf16.gmra.mxu0 %v394
      %v547 = vpop.f32.mrf.mxu0
      %v548 = vadd.f32 %v256, %v547
      %v549 = vpop.f32.mrf.mxu0
      %v550 = vadd.f32 %v256, %v549
      %551 = vmatmul.bf16.gmra.mxu0 %v395
      %v552 = vpop.f32.mrf.mxu0
      %v553 = vadd.f32 %v256, %v552
      %v554 = vpop.f32.mrf.mxu0
      %v555 = vadd.f32 %v256, %v554
      %556 = vmatmul.bf16.gmra.mxu0 %v396
      %v557 = vpop.f32.mrf.mxu0
      %v558 = vadd.f32 %v256, %v557
      %v559 = vpop.f32.mrf.mxu0
      %v560 = vadd.f32 %v256, %v559
      %561 = vmatmul.bf16.gmra.mxu0 %v397
      %v562 = vpop.f32.mrf.mxu0
      %v563 = vadd.f32 %v256, %v562
      %v564 = vpop.f32.mrf.mxu0
      %v565 = vadd.f32 %v256, %v564
      %566 = vmatmul.bf16.gmra.mxu0 %v398
      %v567 = vpop.f32.mrf.mxu0
      %v568 = vadd.f32 %v256, %v567
      %v569 = vpop.f32.mrf.mxu0
      %v570 = vadd.f32 %v256, %v569
      %571 = vmatmul.bf16.gmra.mxu0 %v399
      %v572 = vpop.f32.mrf.mxu0
      %v573 = vadd.f32 %v256, %v572
      %v574 = vpop.f32.mrf.mxu0
      %v575 = vadd.f32 %v256, %v574
      %576 = vmatmul.bf16.gmra.mxu0 %v400
      %v577 = vpop.f32.mrf.mxu0
      %v578 = vadd.f32 %v256, %v577
      %v579 = vpop.f32.mrf.mxu0
      %v580 = vadd.f32 %v256, %v579
      %581 = vmatmul.bf16.gmra.mxu0 %v401
      %v582 = vpop.f32.mrf.mxu0
      %v583 = vadd.f32 %v256, %v582
      %v584 = vpop.f32.mrf.mxu0
      %v585 = vadd.f32 %v256, %v584
      %586 = vmatmul.bf16.gmra.mxu0 %v402
      %v587 = vpop.f32.mrf.mxu0
      %v588 = vadd.f32 %v256, %v587
      %v589 = vpop.f32.mrf.mxu0
      %v590 = vadd.f32 %v256, %v589
      %591 = vmatmul.bf16.gmra.mxu0 %v403
      %v592 = vpop.f32.mrf.mxu0
      %v593 = vadd.f32 %v256, %v592
      %v594 = vpop.f32.mrf.mxu0
      %v595 = vadd.f32 %v256, %v594
      %596 = vmatmul.bf16.gmra.mxu0 %v404
      %v597 = vpop.f32.mrf.mxu0
      %v598 = vadd.f32 %v256, %v597
      %v599 = vpop.f32.mrf.mxu0
      %v600 = vadd.f32 %v256, %v599
      %601 = vmatmul.bf16.gmra.mxu0 %v405
      %v602 = vpop.f32.mrf.mxu0
      %v603 = vadd.f32 %v256, %v602
      %v604 = vpop.f32.mrf.mxu0
      %v605 = vadd.f32 %v256, %v604
      %606 = vmatmul.bf16.gmra.mxu0 %v406
      %v607 = vpop.f32.mrf.mxu0
      %v608 = vadd.f32 %v256, %v607
      %v609 = vpop.f32.mrf.mxu0
      %v610 = vadd.f32 %v256, %v609
      %611 = vmatmul.bf16.gmra.mxu0 %v407
      %v612 = vpop.f32.mrf.mxu0
      %v613 = vadd.f32 %v256, %v612
      %v614 = vpop.f32.mrf.mxu0
      %v615 = vadd.f32 %v256, %v614
      %616 = vmatmul.bf16.gmra.mxu0 %v408
      %v617 = vpop.f32.mrf.mxu0
      %v618 = vadd.f32 %v256, %v617
      %v619 = vpop.f32.mrf.mxu0
      %v620 = vadd.f32 %v256, %v619
      %621 = vmatmul.bf16.gmra.mxu0 %v409
      %v622 = vpop.f32.mrf.mxu0
      %v623 = vadd.f32 %v256, %v622
      %v624 = vpop.f32.mrf.mxu0
      %v625 = vadd.f32 %v256, %v624
      %626 = vmatmul.bf16.gmra.mxu0 %v410
      %v627 = vpop.f32.mrf.mxu0
      %v628 = vadd.f32 %v256, %v627
      %v629 = vpop.f32.mrf.mxu0
      %v630 = vadd.f32 %v256, %v629
      %631 = vmatmul.bf16.gmra.mxu0 %v411
      %v632 = vpop.f32.mrf.mxu0
      %v633 = vadd.f32 %v256, %v632
      %v634 = vpop.f32.mrf.mxu0
      %v635 = vadd.f32 %v256, %v634
      %636 = vmatmul.bf16.gmra.mxu0 %v412
      %v637 = vpop.f32.mrf.mxu0
      %v638 = vadd.f32 %v256, %v637
      %v639 = vpop.f32.mrf.mxu0
      %v640 = vadd.f32 %v256, %v639
      %641 = vmatmul.bf16.gmra.mxu0 %v413
      %v642 = vpop.f32.mrf.mxu0
      %v643 = vadd.f32 %v256, %v642
      %v644 = vpop.f32.mrf.mxu0
      %v645 = vadd.f32 %v256, %v644
      %646 = vmatmul.bf16.gmra.mxu0 %v414
      %v647 = vpop.f32.mrf.mxu0
      %v648 = vadd.f32 %v256, %v647
      %v649 = vpop.f32.mrf.mxu0
      %v650 = vadd.f32 %v256, %v649
      %651 = vmatmul.bf16.gmra.mxu0 %v415
      %v652 = vpop.f32.mrf.mxu0
      %v653 = vadd.f32 %v256, %v652
      %v654 = vpop.f32.mrf.mxu0
      %v655 = vadd.f32 %v256, %v654
      %656 = vmatmul.bf16.gmra.mxu0 %v416
      %v657 = vpop.f32.mrf.mxu0
      %v658 = vadd.f32 %v256, %v657
      %v659 = vpop.f32.mrf.mxu0
      %v660 = vadd.f32 %v256, %v659
      %661 = vmatmul.bf16.gmra.mxu0 %v417
      %v662 = vpop.f32.mrf.mxu0
      %v663 = vadd.f32 %v256, %v662
      %v664 = vpop.f32.mrf.mxu0
      %v665 = vadd.f32 %v256, %v664
      %666 = vdwg.mxu0
      %vm667 = vcmp.ge.f32.partialorder %v508, 0.0
      %vm668 = vcmp.ge.f32.partialorder %v510, 0.0
      %vm669 = vcmp.ge.f32.partialorder %v513, 0.0
      %vm670 = vcmp.ge.f32.partialorder %v515, 0.0
      %vm671 = vcmp.ge.f32.partialorder %v518, 0.0
      %vm672 = vcmp.ge.f32.partialorder %v520, 0.0
      %vm673 = vcmp.ge.f32.partialorder %v523, 0.0
      %vm674 = vcmp.ge.f32.partialorder %v525, 0.0
      %vm675 = vcmp.ge.f32.partialorder %v528, 0.0
      %vm676 = vcmp.ge.f32.partialorder %v530, 0.0
      %vm677 = vcmp.ge.f32.partialorder %v533, 0.0
      %vm678 = vcmp.ge.f32.partialorder %v535, 0.0
      %vm679 = vcmp.ge.f32.partialorder %v538, 0.0
      %vm680 = vcmp.ge.f32.partialorder %v540, 0.0
      %vm681 = vcmp.ge.f32.partialorder %v543, 0.0
      %vm682 = vcmp.ge.f32.partialorder %v545, 0.0
      %vm683 = vcmp.ge.f32.partialorder %v548, 0.0
      %vm684 = vcmp.ge.f32.partialorder %v550, 0.0
      %vm685 = vcmp.ge.f32.partialorder %v553, 0.0
      %vm686 = vcmp.ge.f32.partialorder %v555, 0.0
      %vm687 = vcmp.ge.f32.partialorder %v558, 0.0
      %vm688 = vcmp.ge.f32.partialorder %v560, 0.0
      %vm689 = vcmp.ge.f32.partialorder %v563, 0.0
      %vm690 = vcmp.ge.f32.partialorder %v565, 0.0
      %vm691 = vcmp.ge.f32.partialorder %v568, 0.0
      %vm692 = vcmp.ge.f32.partialorder %v570, 0.0
      %vm693 = vcmp.ge.f32.partialorder %v573, 0.0
      %vm694 = vcmp.ge.f32.partialorder %v575, 0.0
      %vm695 = vcmp.ge.f32.partialorder %v578, 0.0
      %vm696 = vcmp.ge.f32.partialorder %v580, 0.0
      %vm697 = vcmp.ge.f32.partialorder %v583, 0.0
      %vm698 = vcmp.ge.f32.partialorder %v585, 0.0
      %vm699 = vcmp.ge.f32.partialorder %v588, 0.0
      %vm700 = vcmp.ge.f32.partialorder %v590, 0.0
      %vm701 = vcmp.ge.f32.partialorder %v593, 0.0
      %vm702 = vcmp.ge.f32.partialorder %v595, 0.0
      %vm703 = vcmp.ge.f32.partialorder %v598, 0.0
      %vm704 = vcmp.ge.f32.partialorder %v600, 0.0
      %vm705 = vcmp.ge.f32.partialorder %v603, 0.0
      %vm706 = vcmp.ge.f32.partialorder %v605, 0.0
      %vm707 = vcmp.ge.f32.partialorder %v608, 0.0
      %vm708 = vcmp.ge.f32.partialorder %v610, 0.0
      %vm709 = vcmp.ge.f32.partialorder %v613, 0.0
      %vm710 = vcmp.ge.f32.partialorder %v615, 0.0
      %vm711 = vcmp.ge.f32.partialorder %v618, 0.0
      %vm712 = vcmp.ge.f32.partialorder %v620, 0.0
      %vm713 = vcmp.ge.f32.partialorder %v623, 0.0
      %vm714 = vcmp.ge.f32.partialorder %v625, 0.0
      %vm715 = vcmp.ge.f32.partialorder %v628, 0.0
      %vm716 = vcmp.ge.f32.partialorder %v630, 0.0
      %vm717 = vcmp.ge.f32.partialorder %v633, 0.0
      %vm718 = vcmp.ge.f32.partialorder %v635, 0.0
      %vm719 = vcmp.ge.f32.partialorder %v638, 0.0
      %vm720 = vcmp.ge.f32.partialorder %v640, 0.0
      %vm721 = vcmp.ge.f32.partialorder %v643, 0.0
      %vm722 = vcmp.ge.f32.partialorder %v645, 0.0
      %vm723 = vcmp.ge.f32.partialorder %v648, 0.0
      %vm724 = vcmp.ge.f32.partialorder %v650, 0.0
      %vm725 = vcmp.ge.f32.partialorder %v653, 0.0
      %vm726 = vcmp.ge.f32.partialorder %v655, 0.0
      %vm727 = vcmp.ge.f32.partialorder %v658, 0.0
      %vm728 = vcmp.ge.f32.partialorder %v660, 0.0
      %vm729 = vcmp.ge.f32.partialorder %v663, 0.0
      %vm730 = vcmp.ge.f32.partialorder %v665, 0.0
      %v731 = vmul.f32 %v508, 0.2
      %v732 = vmul.f32 %v510, 0.2
      %v733 = vmul.f32 %v513, 0.2
      %v734 = vmul.f32 %v515, 0.2
      %v735 = vmul.f32 %v518, 0.2
      %v736 = vmul.f32 %v520, 0.2
      %v737 = vmul.f32 %v523, 0.2
      %v738 = vmul.f32 %v525, 0.2
      %v739 = vmul.f32 %v528, 0.2
      %v740 = vmul.f32 %v530, 0.2
      %v741 = vmul.f32 %v533, 0.2
      %v742 = vmul.f32 %v535, 0.2
      %v743 = vmul.f32 %v538, 0.2
      %v744 = vmul.f32 %v540, 0.2
      %v745 = vmul.f32 %v543, 0.2
      %v746 = vmul.f32 %v545, 0.2
      %v747 = vmul.f32 %v548, 0.2
      %v748 = vmul.f32 %v550, 0.2
      %v749 = vmul.f32 %v553, 0.2
      %v750 = vmul.f32 %v555, 0.2
      %v751 = vmul.f32 %v558, 0.2
      %v752 = vmul.f32 %v560, 0.2
      %v753 = vmul.f32 %v563, 0.2
      %v754 = vmul.f32 %v565, 0.2
      %v755 = vmul.f32 %v568, 0.2
      %v756 = vmul.f32 %v570, 0.2
      %v757 = vmul.f32 %v573, 0.2
      %v758 = vmul.f32 %v575, 0.2
      %v759 = vmul.f32 %v578, 0.2
      %v760 = vmul.f32 %v580, 0.2
      %v761 = vmul.f32 %v583, 0.2
      %v762 = vmul.f32 %v585, 0.2
      %v763 = vmul.f32 %v588, 0.2
      %v764 = vmul.f32 %v590, 0.2
      %v765 = vmul.f32 %v593, 0.2
      %v766 = vmul.f32 %v595, 0.2
      %v767 = vmul.f32 %v598, 0.2
      %v768 = vmul.f32 %v600, 0.2
      %v769 = vmul.f32 %v603, 0.2
      %v770 = vmul.f32 %v605, 0.2
      %v771 = vmul.f32 %v608, 0.2
      %v772 = vmul.f32 %v610, 0.2
      %v773 = vmul.f32 %v613, 0.2
      %v774 = vmul.f32 %v615, 0.2
      %v775 = vmul.f32 %v618, 0.2
      %v776 = vmul.f32 %v620, 0.2
      %v777 = vmul.f32 %v623, 0.2
      %v778 = vmul.f32 %v625, 0.2
      %v779 = vmul.f32 %v628, 0.2
      %v780 = vmul.f32 %v630, 0.2
      %v781 = vmul.f32 %v633, 0.2
      %v782 = vmul.f32 %v635, 0.2
      %v783 = vmul.f32 %v638, 0.2
      %v784 = vmul.f32 %v640, 0.2
      %v785 = vmul.f32 %v643, 0.2
      %v786 = vmul.f32 %v645, 0.2
      %v787 = vmul.f32 %v648, 0.2
      %v788 = vmul.f32 %v650, 0.2
      %v789 = vmul.f32 %v653, 0.2
      %v790 = vmul.f32 %v655, 0.2
      %v791 = vmul.f32 %v658, 0.2
      %v792 = vmul.f32 %v660, 0.2
      %v793 = vmul.f32 %v663, 0.2
      %v794 = vmul.f32 %v665, 0.2
      %v795 = vsel %vm667, %v508, %v731
      %v796 = vsel %vm668, %v510, %v732
      %v797 = vsel %vm669, %v513, %v733
      %v798 = vsel %vm670, %v515, %v734
      %v799 = vsel %vm671, %v518, %v735
      %v800 = vsel %vm672, %v520, %v736
      %v801 = vsel %vm673, %v523, %v737
      %v802 = vsel %vm674, %v525, %v738
      %v803 = vsel %vm675, %v528, %v739
      %v804 = vsel %vm676, %v530, %v740
      %v805 = vsel %vm677, %v533, %v741
      %v806 = vsel %vm678, %v535, %v742
      %v807 = vsel %vm679, %v538, %v743
      %v808 = vsel %vm680, %v540, %v744
      %v809 = vsel %vm681, %v543, %v745
      %v810 = vsel %vm682, %v545, %v746
      %v811 = vsel %vm683, %v548, %v747
      %v812 = vsel %vm684, %v550, %v748
      %v813 = vsel %vm685, %v553, %v749
      %v814 = vsel %vm686, %v555, %v750
      %v815 = vsel %vm687, %v558, %v751
      %v816 = vsel %vm688, %v560, %v752
      %v817 = vsel %vm689, %v563, %v753
      %v818 = vsel %vm690, %v565, %v754
      %v819 = vsel %vm691, %v568, %v755
      %v820 = vsel %vm692, %v570, %v756
      %v821 = vsel %vm693, %v573, %v757
      %v822 = vsel %vm694, %v575, %v758
      %v823 = vsel %vm695, %v578, %v759
      %v824 = vsel %vm696, %v580, %v760
      %v825 = vsel %vm697, %v583, %v761
      %v826 = vsel %vm698, %v585, %v762
      %v827 = vsel %vm699, %v588, %v763
      %v828 = vsel %vm700, %v590, %v764
      %v829 = vsel %vm701, %v593, %v765
      %v830 = vsel %vm702, %v595, %v766
      %v831 = vsel %vm703, %v598, %v767
      %v832 = vsel %vm704, %v600, %v768
      %v833 = vsel %vm705, %v603, %v769
      %v834 = vsel %vm706, %v605, %v770
      %v835 = vsel %vm707, %v608, %v771
      %v836 = vsel %vm708, %v610, %v772
      %v837 = vsel %vm709, %v613, %v773
      %v838 = vsel %vm710, %v615, %v774
      %v839 = vsel %vm711, %v618, %v775
      %v840 = vsel %vm712, %v620, %v776
      %v841 = vsel %vm713, %v623, %v777
      %v842 = vsel %vm714, %v625, %v778
      %v843 = vsel %vm715, %v628, %v779
      %v844 = vsel %vm716, %v630, %v780
      %v845 = vsel %vm717, %v633, %v781
      %v846 = vsel %vm718, %v635, %v782
      %v847 = vsel %vm719, %v638, %v783
      %v848 = vsel %vm720, %v640, %v784
      %v849 = vsel %vm721, %v643, %v785
      %v850 = vsel %vm722, %v645, %v786
      %v851 = vsel %vm723, %v648, %v787
      %v852 = vsel %vm724, %v650, %v788
      %v853 = vsel %vm725, %v653, %v789
      %v854 = vsel %vm726, %v655, %v790
      %v855 = vsel %vm727, %v658, %v791
      %v856 = vsel %vm728, %v660, %v792
      %v857 = vsel %vm729, %v663, %v793
      %v858 = vsel %vm730, %v665, %v794
      %859 = vst [vmem:[%s172] sm:$0xff] %v795
      %860 = vst [vmem:[%s172 + $0x8] sm:$0xff] %v796
      %861 = vst [vmem:[%s172 + $0x10] sm:$0xff] %v797
      %862 = vst [vmem:[%s172 + $0x18] sm:$0xff] %v798
      %863 = vst [vmem:[%s172 + $0x20] sm:$0xff] %v799
      %864 = vst [vmem:[%s172 + $0x28] sm:$0xff] %v800
      %865 = vst [vmem:[%s172 + $0x30] sm:$0xff] %v801
      %866 = vst [vmem:[%s172 + $0x38] sm:$0xff] %v802
      %867 = vst [vmem:[%s172 + $0x40] sm:$0xff] %v803
      %868 = vst [vmem:[%s172 + $0x48] sm:$0xff] %v804
      %869 = vst [vmem:[%s172 + $0x50] sm:$0xff] %v805
      %870 = vst [vmem:[%s172 + $0x58] sm:$0xff] %v806
      %871 = vst [vmem:[%s172 + $0x60] sm:$0xff] %v807
      %872 = vst [vmem:[%s172 + $0x68] sm:$0xff] %v808
      %873 = vst [vmem:[%s172 + $0x70] sm:$0xff] %v809
      %874 = vst [vmem:[%s172 + $0x78] sm:$0xff] %v810
      %875 = vst [vmem:[%s172 + $0x80] sm:$0xff] %v811
      %876 = vst [vmem:[%s172 + $0x88] sm:$0xff] %v812
      %877 = vst [vmem:[%s172 + $0x90] sm:$0xff] %v813
      %878 = vst [vmem:[%s172 + $0x98] sm:$0xff] %v814
      %879 = vst [vmem:[%s172 + $0xa0] sm:$0xff] %v815
      %880 = vst [vmem:[%s172 + $0xa8] sm:$0xff] %v816
      %881 = vst [vmem:[%s172 + $0xb0] sm:$0xff] %v817
      %882 = vst [vmem:[%s172 + $0xb8] sm:$0xff] %v818
      %883 = vst [vmem:[%s172 + $0xc0] sm:$0xff] %v819
      %884 = vst [vmem:[%s172 + $0xc8] sm:$0xff] %v820
      %885 = vst [vmem:[%s172 + $0xd0] sm:$0xff] %v821
      %886 = vst [vmem:[%s172 + $0xd8] sm:$0xff] %v822
      %887 = vst [vmem:[%s172 + $0xe0] sm:$0xff] %v823
      %888 = vst [vmem:[%s172 + $0xe8] sm:$0xff] %v824
      %889 = vst [vmem:[%s172 + $0xf0] sm:$0xff] %v825
      %890 = vst [vmem:[%s172 + $0xf8] sm:$0xff] %v826
      %891 = vst [vmem:[%s172 + $0x100] sm:$0xff] %v827
      %892 = vst [vmem:[%s172 + $0x108] sm:$0xff] %v828
      %893 = vst [vmem:[%s172 + $0x110] sm:$0xff] %v829
      %894 = vst [vmem:[%s172 + $0x118] sm:$0xff] %v830
      %895 = vst [vmem:[%s172 + $0x120] sm:$0xff] %v831
      %896 = vst [vmem:[%s172 + $0x128] sm:$0xff] %v832
      %897 = vst [vmem:[%s172 + $0x130] sm:$0xff] %v833
      %898 = vst [vmem:[%s172 + $0x138] sm:$0xff] %v834
      %899 = vst [vmem:[%s172 + $0x140] sm:$0xff] %v835
      %900 = vst [vmem:[%s172 + $0x148] sm:$0xff] %v836
      %901 = vst [vmem:[%s172 + $0x150] sm:$0xff] %v837
      %902 = vst [vmem:[%s172 + $0x158] sm:$0xff] %v838
      %903 = vst [vmem:[%s172 + $0x160] sm:$0xff] %v839
      %904 = vst [vmem:[%s172 + $0x168] sm:$0xff] %v840
      %905 = vst [vmem:[%s172 + $0x170] sm:$0xff] %v841
      %906 = vst [vmem:[%s172 + $0x178] sm:$0xff] %v842
      %907 = vst [vmem:[%s172 + $0x180] sm:$0xff] %v843
      %908 = vst [vmem:[%s172 + $0x188] sm:$0xff] %v844
      %909 = vst [vmem:[%s172 + $0x190] sm:$0xff] %v845
      %910 = vst [vmem:[%s172 + $0x198] sm:$0xff] %v846
      %911 = vst [vmem:[%s172 + $0x1a0] sm:$0xff] %v847
      %912 = vst [vmem:[%s172 + $0x1a8] sm:$0xff] %v848
      %913 = vst [vmem:[%s172 + $0x1b0] sm:$0xff] %v849
      %914 = vst [vmem:[%s172 + $0x1b8] sm:$0xff] %v850
      %915 = vst [vmem:[%s172 + $0x1c0] sm:$0xff] %v851
      %916 = vst [vmem:[%s172 + $0x1c8] sm:$0xff] %v852
      %917 = vst [vmem:[%s172 + $0x1d0] sm:$0xff] %v853
      %918 = vst [vmem:[%s172 + $0x1d8] sm:$0xff] %v854
      %919 = vst [vmem:[%s172 + $0x1e0] sm:$0xff] %v855
      %920 = vst [vmem:[%s172 + $0x1e8] sm:$0xff] %v856
      %921 = vst [vmem:[%s172 + $0x1f0] sm:$0xff] %v857
      %922 = vst [vmem:[%s172 + $0x1f8] sm:$0xff] %v858
      %s923 = smul.u32 64, %s14
      %p924 = scmp.lt.s32.totalorder %s923, 255
      %s925 = scalar_select %p924, %s923, 255
      %s926 = smul.addr %s925, 8
      %s927 = scalar_lea.vmem %s3, %s926
      // Predicated region
      $region33: #{_feature_learning_impl.6} parent=31 // pred_check
        %p928 = pneg %p100
      $region34: #{_feature_learning_impl.6} parent=31 // pred_check_branch
        %930 = sbr.rel (%p928) target = $region36
      $region35: #{_feature_learning_impl.6} parent=31 // pred_region
        %s931 = smul.u32 64, %s14
      $region36: #{_feature_learning_impl.6} parent=31 // pred_fallthru
        _
    $region32: #{_feature_learning_impl.6} parent=5 // pred_fallthru
      _
    %p932 = scmp.le.s32.totalorder 2, %s9
    // Predicated region
    $region37: #{_feature_learning_impl.6} parent=5 // pred_check
      %p933 = pneg %p932
    $region38: #{_feature_learning_impl.6} parent=5 // pred_check_branch
      %935 = sbr.rel (%p933) target = $region40
    $region39: #{_feature_learning_impl.6} parent=5 // pred_region
      %s936 = ssub.s32 %s9, 2
      // Predicated region
      $region41: #{_feature_learning_impl.6} parent=39 // pred_check
        %p937 = pneg %p106
      $region42: #{_feature_learning_impl.6} parent=39 // pred_check_branch
        %939 = sbr.rel (%p937) target = $region44
      $region43: #{_feature_learning_impl.6} parent=39 // pred_region
        %s940 = smul.u32 64, %s15
        %p941 = scmp.lt.s32.totalorder %s940, 255
        %s942 = scalar_select %p941, %s940, 255
        %s943 = smul.addr %s942, 8
        %s944 = scalar_lea.vmem %s3, %s943
      $region44: #{_feature_learning_impl.6} parent=39 // pred_fallthru
        _
    $region40: #{_feature_learning_impl.6} parent=5 // pred_fallthru
      _
  $region6: #{_feature_learning_impl.6} parent=0 // loop_footer
    %s13 = sadd.s32 1, %s9
  $region7: #{_feature_learning_impl.6} parent=0 // loop_footer_branch
    %8 = sbr.rel target = $region3
  $region8: #{_feature_learning_impl.6} parent=0 // loop_exit
    _

// kernel: _feature_learning_impl.7
$region0: #{_feature_learning_impl.7}
  #allocation0 [shape = 'u32[]', space=smem, size = 0x4, offset = 0x4, fixed_abs, tag = 'smem constant byte address 0x4 - core index']
  #allocation1 [shape = 'u32[72,128]{1,0:T(1,128)}', space=vmem, size = 0x9000, scoped, tag = 'internal scratch']
  %s0 = inlined_call_operand.vmem [shape: bf16[2048,512], index: 0, kind: input, shape index: {}]
  %s1 = inlined_call_operand.vmem [shape: bf16[512,128], index: 1, kind: input, shape index: {}]
  %s2 = inlined_call_operand.vmem [shape: f32[1,128], index: 2, kind: input, shape index: {}]
  %s3 = inlined_call_operand.vmem [shape: f32[2048,128], index: 3, kind: output, shape index: {}]
  %s4 = sld [smem:[#allocation0]]
  $region45: #{_feature_learning_impl.7} parent=0
    _
  %s6 = ssub.s32 1, %s4
  %s7 = scalar_select 0, %s6, %s4
  loop: start=0, step=1, limit=6
  $region2: #{_feature_learning_impl.7} parent=0 // loop_pre_header
    _
  $region3: #{_feature_learning_impl.7} parent=0 // loop_header
    %s9 = sphi 0, %s13
    %p10 = scmp.ge.s32.totalorder %s9, 6
    %s19 = sphi 0, %s21
    %s22 = sphi 0, %s19
    %s23 = sphi 0, %s22
    %s39 = sphi 0, %s23
    %s43 = sphi 0, %s43
    %s45 = sphi 0, %s43
    %s46 = sphi 0, %s45
    %s60 = sphi 0, %s46
    %s64 = sphi 0, %s64
    %s66 = sphi 0, %s64
    %s67 = sphi 0, %s66
    %s81 = sphi 0, %s67
    %s87 = sphi 0, %s89
    %s90 = sphi 0, %s87
    %s91 = sphi 0, %s90
    %s107 = sphi 0, %s91
  $region4: #{_feature_learning_impl.7} parent=0 // loop_header_branch
    %12 = sbr.rel (%p10) target = $region8
  $region5: #{_feature_learning_impl.7} parent=0 // loop_body
    %s14 = ssub.s32 %s9, 1
    %s15 = ssub.s32 %s9, 2
    %s16 = sadd.s32 %s9, 1
    %s17 = ssub.s32 %s9, %s16
    %p18 = scmp.eq.s32.totalorder %s17, 0
    %s20 = sadd.s32 %s19, 1
    %s21 = scalar_select %p18, %s19, %s20
    %p24 = pneg %p18
    %p25 = scmp.eq.s32.totalorder %s9, 3
    %p26 = por %p24, %p25
    %p27 = scmp.ne.s32.totalorder %s19, %s22
    %p28 = scmp.eq.s32.totalorder %s9, 0
    %p29 = por %p27, %p28
    %p30 = scmp.ne.s32.totalorder %s19, %s22
    %p31 = scmp.eq.s32.totalorder %s14, 3
    %p32 = por %p30, %p31
    %p33 = scmp.ne.s32.totalorder %s22, %s23
    %p34 = scmp.eq.s32.totalorder %s14, 0
    %p35 = por %p33, %p34
    %p36 = scmp.ne.s32.totalorder %s22, %s23
    %p37 = scmp.eq.s32.totalorder %s15, 3
    %p38 = por %p36, %p37
    %p40 = scmp.ne.s32.totalorder %s23, %s39
    %p41 = scmp.eq.s32.totalorder %s15, 0
    %p42 = por %p40, %p41
    %s44 = sadd.s32 %s43, 1
    %p47 = scmp.eq.s32.totalorder %s9, 3
    %p48 = scmp.ne.s32.totalorder %s43, %s45
    %p49 = scmp.eq.s32.totalorder %s9, 0
    %p50 = por %p48, %p49
    %p51 = scmp.ne.s32.totalorder %s43, %s45
    %p52 = scmp.eq.s32.totalorder %s14, 3
    %p53 = por %p51, %p52
    %p54 = scmp.ne.s32.totalorder %s45, %s46
    %p55 = scmp.eq.s32.totalorder %s14, 0
    %p56 = por %p54, %p55
    %p57 = scmp.ne.s32.totalorder %s45, %s46
    %p58 = scmp.eq.s32.totalorder %s15, 3
    %p59 = por %p57, %p58
    %p61 = scmp.ne.s32.totalorder %s46, %s60
    %p62 = scmp.eq.s32.totalorder %s15, 0
    %p63 = por %p61, %p62
    %s65 = sadd.s32 %s64, 1
    %p68 = scmp.eq.s32.totalorder %s9, 3
    %p69 = scmp.ne.s32.totalorder %s64, %s66
    %p70 = scmp.eq.s32.totalorder %s9, 0
    %p71 = por %p69, %p70
    %p72 = scmp.ne.s32.totalorder %s64, %s66
    %p73 = scmp.eq.s32.totalorder %s14, 3
    %p74 = por %p72, %p73
    %p75 = scmp.ne.s32.totalorder %s66, %s67
    %p76 = scmp.eq.s32.totalorder %s14, 0
    %p77 = por %p75, %p76
    %p78 = scmp.ne.s32.totalorder %s66, %s67
    %p79 = scmp.eq.s32.totalorder %s15, 3
    %p80 = por %p78, %p79
    %p82 = scmp.ne.s32.totalorder %s67, %s81
    %p83 = scmp.eq.s32.totalorder %s15, 0
    %p84 = por %p82, %p83
    %s85 = ssub.s32 %s9, %s16
    %p86 = scmp.eq.s32.totalorder %s85, 0
    %s88 = sadd.s32 %s87, 1
    %s89 = scalar_select %p86, %s87, %s88
    %p92 = pneg %p86
    %p93 = scmp.eq.s32.totalorder %s9, 3
    %p94 = por %p92, %p93
    %p95 = scmp.ne.s32.totalorder %s87, %s90
    %p96 = scmp.eq.s32.totalorder %s9, 0
    %p97 = por %p95, %p96
    %p98 = scmp.ne.s32.totalorder %s87, %s90
    %p99 = scmp.eq.s32.totalorder %s14, 3
    %p100 = por %p98, %p99
    %p101 = scmp.ne.s32.totalorder %s90, %s91
    %p102 = scmp.eq.s32.totalorder %s14, 0
    %p103 = por %p101, %p102
    %p104 = scmp.ne.s32.totalorder %s90, %s91
    %p105 = scmp.eq.s32.totalorder %s15, 3
    %p106 = por %p104, %p105
    %p108 = scmp.ne.s32.totalorder %s91, %s107
    %p109 = scmp.eq.s32.totalorder %s15, 0
    %p110 = por %p108, %p109
    %p111 = scmp.le.s32.totalorder 1, %s9
    %p112 = scmp.lt.s32.totalorder %s9, 5
    %p113 = pnand %p111, %p112
    %p114 = pneg %p113
    // Predicated region
    $region9: #{_feature_learning_impl.7} parent=5 // pred_check
      _
    $region10: #{_feature_learning_impl.7} parent=5 // pred_check_branch
      %116 = sbr.rel (%p113) target = $region12
    $region11: #{_feature_learning_impl.7} parent=5 // pred_region
      %s117 = ssub.s32 %s9, 1
      // Predicated region
      $region13: #{_feature_learning_impl.7} parent=11 // pred_check
        %p118 = pneg %p56
      $region14: #{_feature_learning_impl.7} parent=11 // pred_check_branch
        %120 = sbr.rel (%p118) target = $region16
      $region15: #{_feature_learning_impl.7} parent=11 // pred_region
        _
      $region16: #{_feature_learning_impl.7} parent=11 // pred_fallthru
        _
      // Predicated region
      $region17: #{_feature_learning_impl.7} parent=11 // pred_check
        %p121 = pneg %p77
      $region18: #{_feature_learning_impl.7} parent=11 // pred_check_branch
        %123 = sbr.rel (%p121) target = $region20
      $region19: #{_feature_learning_impl.7} parent=11 // pred_region
        _
      $region20: #{_feature_learning_impl.7} parent=11 // pred_fallthru
        _
    $region12: #{_feature_learning_impl.7} parent=5 // pred_fallthru
      _
    %p124 = scmp.lt.s32.totalorder %s9, 4
    // Predicated region
    $region21: #{_feature_learning_impl.7} parent=5 // pred_check
      %p125 = pneg %p124
    $region22: #{_feature_learning_impl.7} parent=5 // pred_check_branch
      %127 = sbr.rel (%p125) target = $region24
    $region23: #{_feature_learning_impl.7} parent=5 // pred_region
      // Predicated region
      $region25: #{_feature_learning_impl.7} parent=23 // pred_check
        %p128 = pneg %p29
      $region26: #{_feature_learning_impl.7} parent=23 // pred_check_branch
        %130 = sbr.rel (%p128) target = $region28
      $region27: #{_feature_learning_impl.7} parent=23 // pred_region
        %s131 = smul.u32 64, %s9
        %p132 = scmp.lt.s32.totalorder %s131, 255
        %s133 = scalar_select %p132, %s131, 255
        %s134 = smul.addr %s133, 4
        %s135 = smul.addr %s134, 4
        %s136 = scalar_lea.vmem %s0, %s135
        %s137 = smul.u32 64, %s9
      $region28: #{_feature_learning_impl.7} parent=23 // pred_fallthru
        _
    $region24: #{_feature_learning_impl.7} parent=5 // pred_fallthru
      _
    %p138 = scmp.le.s32.totalorder 1, %s9
    %p139 = scmp.lt.s32.totalorder %s9, 5
    %p140 = pnand %p138, %p139
    %p141 = pneg %p140
    // Predicated region
    $region29: #{_feature_learning_impl.7} parent=5 // pred_check
      _
    $region30: #{_feature_learning_impl.7} parent=5 // pred_check_branch
      %143 = sbr.rel (%p140) target = $region32
    $region31: #{_feature_learning_impl.7} parent=5 // pred_region
      %s144 = ssub.s32 %s9, 1
      %s145 = smul.u32 64, %s14
      %p146 = scmp.lt.s32.totalorder %s145, 255
      %s147 = scalar_select %p146, %s145, 255
      %s148 = smul.addr %s147, 4
      %s149 = smul.addr %s148, 4
      %s150 = scalar_lea.vmem %s0, %s149
      %p151 = pneg %p35
      %p152 = pneg %p32
      %p153 = pneg %p56
      %p154 = pneg %p53
      %p155 = pneg %p77
      %p156 = pneg %p74
      %p157 = pneg %p103
      %p158 = pneg %p100
      %s159 = smul.u32 64, %s14
      %p160 = scmp.lt.s32.totalorder %s159, 255
      %s161 = scalar_select %p160, %s159, 255
      %s162 = smul.addr %s161, 8
      %s163 = scalar_lea.vmem %s3, %s162
      %s164 = smul.u32 64, %s14
      %p165 = scmp.lt.s32.totalorder %s164, 255
      %s166 = scalar_select %p165, %s164, 255
      %s167 = smul.addr %s166, 4
      %s168 = smul.addr %s167, 4
      %s169 = scalar_lea.vmem %s0, %s168
      %s170 = smul.u32 64, %s14
      %s171 = smul.u32 64, %s14
      %p172 = scmp.lt.s32.totalorder %s171, 255
      %s173 = scalar_select %p172, %s171, 255
      %s174 = smul.addr %s173, 8
      %s175 = scalar_lea.vmem %s3, %s174
      %s176 = smul.u32 64, %s14
      %v177 = vld [vmem:[%s169] sm:$0xff]
      %v178 = vld [vmem:[%s169 + $0x8] sm:$0xff]
      %v179 = vld [vmem:[%s169 + $0x10] sm:$0xff]
      %v180 = vld [vmem:[%s169 + $0x18] sm:$0xff]
      %v181 = vld [vmem:[%s169 + $0x20] sm:$0xff]
      %v182 = vld [vmem:[%s169 + $0x28] sm:$0xff]
      %v183 = vld [vmem:[%s169 + $0x30] sm:$0xff]
      %v184 = vld [vmem:[%s169 + $0x38] sm:$0xff]
      %v185 = vld [vmem:[%s169 + $0x40] sm:$0xff]
      %v186 = vld [vmem:[%s169 + $0x48] sm:$0xff]
      %v187 = vld [vmem:[%s169 + $0x50] sm:$0xff]
      %v188 = vld [vmem:[%s169 + $0x58] sm:$0xff]
      %v189 = vld [vmem:[%s169 + $0x60] sm:$0xff]
      %v190 = vld [vmem:[%s169 + $0x68] sm:$0xff]
      %v191 = vld [vmem:[%s169 + $0x70] sm:$0xff]
      %v192 = vld [vmem:[%s169 + $0x78] sm:$0xff]
      %v193 = vld [vmem:[%s169 + $0x80] sm:$0xff]
      %v194 = vld [vmem:[%s169 + $0x88] sm:$0xff]
      %v195 = vld [vmem:[%s169 + $0x90] sm:$0xff]
      %v196 = vld [vmem:[%s169 + $0x98] sm:$0xff]
      %v197 = vld [vmem:[%s169 + $0xa0] sm:$0xff]
      %v198 = vld [vmem:[%s169 + $0xa8] sm:$0xff]
      %v199 = vld [vmem:[%s169 + $0xb0] sm:$0xff]
      %v200 = vld [vmem:[%s169 + $0xb8] sm:$0xff]
      %v201 = vld [vmem:[%s169 + $0xc0] sm:$0xff]
      %v202 = vld [vmem:[%s169 + $0xc8] sm:$0xff]
      %v203 = vld [vmem:[%s169 + $0xd0] sm:$0xff]
      %v204 = vld [vmem:[%s169 + $0xd8] sm:$0xff]
      %v205 = vld [vmem:[%s169 + $0xe0] sm:$0xff]
      %v206 = vld [vmem:[%s169 + $0xe8] sm:$0xff]
      %v207 = vld [vmem:[%s169 + $0xf0] sm:$0xff]
      %v208 = vld [vmem:[%s169 + $0xf8] sm:$0xff]
      %v209 = vld [vmem:[%s169 + $0x100] sm:$0xff]
      %v210 = vld [vmem:[%s169 + $0x108] sm:$0xff]
      %v211 = vld [vmem:[%s169 + $0x110] sm:$0xff]
      %v212 = vld [vmem:[%s169 + $0x118] sm:$0xff]
      %v213 = vld [vmem:[%s169 + $0x120] sm:$0xff]
      %v214 = vld [vmem:[%s169 + $0x128] sm:$0xff]
      %v215 = vld [vmem:[%s169 + $0x130] sm:$0xff]
      %v216 = vld [vmem:[%s169 + $0x138] sm:$0xff]
      %v217 = vld [vmem:[%s169 + $0x140] sm:$0xff]
      %v218 = vld [vmem:[%s169 + $0x148] sm:$0xff]
      %v219 = vld [vmem:[%s169 + $0x150] sm:$0xff]
      %v220 = vld [vmem:[%s169 + $0x158] sm:$0xff]
      %v221 = vld [vmem:[%s169 + $0x160] sm:$0xff]
      %v222 = vld [vmem:[%s169 + $0x168] sm:$0xff]
      %v223 = vld [vmem:[%s169 + $0x170] sm:$0xff]
      %v224 = vld [vmem:[%s169 + $0x178] sm:$0xff]
      %v225 = vld [vmem:[%s169 + $0x180] sm:$0xff]
      %v226 = vld [vmem:[%s169 + $0x188] sm:$0xff]
      %v227 = vld [vmem:[%s169 + $0x190] sm:$0xff]
      %v228 = vld [vmem:[%s169 + $0x198] sm:$0xff]
      %v229 = vld [vmem:[%s169 + $0x1a0] sm:$0xff]
      %v230 = vld [vmem:[%s169 + $0x1a8] sm:$0xff]
      %v231 = vld [vmem:[%s169 + $0x1b0] sm:$0xff]
      %v232 = vld [vmem:[%s169 + $0x1b8] sm:$0xff]
      %v233 = vld [vmem:[%s169 + $0x1c0] sm:$0xff]
      %v234 = vld [vmem:[%s169 + $0x1c8] sm:$0xff]
      %v235 = vld [vmem:[%s169 + $0x1d0] sm:$0xff]
      %v236 = vld [vmem:[%s169 + $0x1d8] sm:$0xff]
      %v237 = vld [vmem:[%s169 + $0x1e0] sm:$0xff]
      %v238 = vld [vmem:[%s169 + $0x1e8] sm:$0xff]
      %v239 = vld [vmem:[%s169 + $0x1f0] sm:$0xff]
      %v240 = vld [vmem:[%s169 + $0x1f8] sm:$0xff]
      %v241 = vld [vmem:[%s169 + $0x200] sm:$0xff]
      %v242 = vld [vmem:[%s169 + $0x208] sm:$0xff]
      %v243 = vld [vmem:[%s169 + $0x210] sm:$0xff]
      %v244 = vld [vmem:[%s169 + $0x218] sm:$0xff]
      %v245 = vld [vmem:[%s169 + $0x220] sm:$0xff]
      %v246 = vld [vmem:[%s169 + $0x228] sm:$0xff]
      %v247 = vld [vmem:[%s169 + $0x230] sm:$0xff]
      %v248 = vld [vmem:[%s169 + $0x238] sm:$0xff]
      %v249 = vld [vmem:[%s169 + $0x240] sm:$0xff]
      %v250 = vld [vmem:[%s169 + $0x248] sm:$0xff]
      %v251 = vld [vmem:[%s169 + $0x250] sm:$0xff]
      %v252 = vld [vmem:[%s169 + $0x258] sm:$0xff]
      %v253 = vld [vmem:[%s169 + $0x260] sm:$0xff]
      %v254 = vld [vmem:[%s169 + $0x268] sm:$0xff]
      %v255 = vld [vmem:[%s169 + $0x270] sm:$0xff]
      %v256 = vld [vmem:[%s169 + $0x278] sm:$0xff]
      %v257 = vld [vmem:[%s169 + $0x280] sm:$0xff]
      %v258 = vld [vmem:[%s169 + $0x288] sm:$0xff]
      %v259 = vld [vmem:[%s169 + $0x290] sm:$0xff]
      %v260 = vld [vmem:[%s169 + $0x298] sm:$0xff]
      %v261 = vld [vmem:[%s169 + $0x2a0] sm:$0xff]
      %v262 = vld [vmem:[%s169 + $0x2a8] sm:$0xff]
      %v263 = vld [vmem:[%s169 + $0x2b0] sm:$0xff]
      %v264 = vld [vmem:[%s169 + $0x2b8] sm:$0xff]
      %v265 = vld [vmem:[%s169 + $0x2c0] sm:$0xff]
      %v266 = vld [vmem:[%s169 + $0x2c8] sm:$0xff]
      %v267 = vld [vmem:[%s169 + $0x2d0] sm:$0xff]
      %v268 = vld [vmem:[%s169 + $0x2d8] sm:$0xff]
      %v269 = vld [vmem:[%s169 + $0x2e0] sm:$0xff]
      %v270 = vld [vmem:[%s169 + $0x2e8] sm:$0xff]
      %v271 = vld [vmem:[%s169 + $0x2f0] sm:$0xff]
      %v272 = vld [vmem:[%s169 + $0x2f8] sm:$0xff]
      %v273 = vld [vmem:[%s169 + $0x300] sm:$0xff]
      %v274 = vld [vmem:[%s169 + $0x308] sm:$0xff]
      %v275 = vld [vmem:[%s169 + $0x310] sm:$0xff]
      %v276 = vld [vmem:[%s169 + $0x318] sm:$0xff]
      %v277 = vld [vmem:[%s169 + $0x320] sm:$0xff]
      %v278 = vld [vmem:[%s169 + $0x328] sm:$0xff]
      %v279 = vld [vmem:[%s169 + $0x330] sm:$0xff]
      %v280 = vld [vmem:[%s169 + $0x338] sm:$0xff]
      %v281 = vld [vmem:[%s169 + $0x340] sm:$0xff]
      %v282 = vld [vmem:[%s169 + $0x348] sm:$0xff]
      %v283 = vld [vmem:[%s169 + $0x350] sm:$0xff]
      %v284 = vld [vmem:[%s169 + $0x358] sm:$0xff]
      %v285 = vld [vmem:[%s169 + $0x360] sm:$0xff]
      %v286 = vld [vmem:[%s169 + $0x368] sm:$0xff]
      %v287 = vld [vmem:[%s169 + $0x370] sm:$0xff]
      %v288 = vld [vmem:[%s169 + $0x378] sm:$0xff]
      %v289 = vld [vmem:[%s169 + $0x380] sm:$0xff]
      %v290 = vld [vmem:[%s169 + $0x388] sm:$0xff]
      %v291 = vld [vmem:[%s169 + $0x390] sm:$0xff]
      %v292 = vld [vmem:[%s169 + $0x398] sm:$0xff]
      %v293 = vld [vmem:[%s169 + $0x3a0] sm:$0xff]
      %v294 = vld [vmem:[%s169 + $0x3a8] sm:$0xff]
      %v295 = vld [vmem:[%s169 + $0x3b0] sm:$0xff]
      %v296 = vld [vmem:[%s169 + $0x3b8] sm:$0xff]
      %v297 = vld [vmem:[%s169 + $0x3c0] sm:$0xff]
      %v298 = vld [vmem:[%s169 + $0x3c8] sm:$0xff]
      %v299 = vld [vmem:[%s169 + $0x3d0] sm:$0xff]
      %v300 = vld [vmem:[%s169 + $0x3d8] sm:$0xff]
      %v301 = vld [vmem:[%s169 + $0x3e0] sm:$0xff]
      %v302 = vld [vmem:[%s169 + $0x3e8] sm:$0xff]
      %v303 = vld [vmem:[%s169 + $0x3f0] sm:$0xff]
      %v304 = vld [vmem:[%s169 + $0x3f8] sm:$0xff]
      %v305 = vld [vmem:[%s1] sm:$0xf]
      %v306 = vld [vmem:[%s1 + $0x4] sm:$0xf]
      %v307 = vld [vmem:[%s1 + $0x8] sm:$0xf]
      %v308 = vld [vmem:[%s1 + $0xc] sm:$0xf]
      %v309 = vld [vmem:[%s1 + $0x10] sm:$0xf]
      %v310 = vld [vmem:[%s1 + $0x14] sm:$0xf]
      %v311 = vld [vmem:[%s1 + $0x18] sm:$0xf]
      %v312 = vld [vmem:[%s1 + $0x1c] sm:$0xf]
      %v313 = vld [vmem:[%s1 + $0x20] sm:$0xf]
      %v314 = vld [vmem:[%s1 + $0x24] sm:$0xf]
      %v315 = vld [vmem:[%s1 + $0x28] sm:$0xf]
      %v316 = vld [vmem:[%s1 + $0x2c] sm:$0xf]
      %v317 = vld [vmem:[%s1 + $0x30] sm:$0xf]
      %v318 = vld [vmem:[%s1 + $0x34] sm:$0xf]
      %v319 = vld [vmem:[%s1 + $0x38] sm:$0xf]
      %v320 = vld [vmem:[%s1 + $0x3c] sm:$0xf]
      %v321 = vld [vmem:[%s1 + $0x40] sm:$0xf]
      %v322 = vld [vmem:[%s1 + $0x44] sm:$0xf]
      %v323 = vld [vmem:[%s1 + $0x48] sm:$0xf]
      %v324 = vld [vmem:[%s1 + $0x4c] sm:$0xf]
      %v325 = vld [vmem:[%s1 + $0x50] sm:$0xf]
      %v326 = vld [vmem:[%s1 + $0x54] sm:$0xf]
      %v327 = vld [vmem:[%s1 + $0x58] sm:$0xf]
      %v328 = vld [vmem:[%s1 + $0x5c] sm:$0xf]
      %v329 = vld [vmem:[%s1 + $0x60] sm:$0xf]
      %v330 = vld [vmem:[%s1 + $0x64] sm:$0xf]
      %v331 = vld [vmem:[%s1 + $0x68] sm:$0xf]
      %v332 = vld [vmem:[%s1 + $0x6c] sm:$0xf]
      %v333 = vld [vmem:[%s1 + $0x70] sm:$0xf]
      %v334 = vld [vmem:[%s1 + $0x74] sm:$0xf]
      %v335 = vld [vmem:[%s1 + $0x78] sm:$0xf]
      %v336 = vld [vmem:[%s1 + $0x7c] sm:$0xf]
      %v337 = vld [vmem:[%s1 + $0x80] sm:$0xf]
      %v338 = vld [vmem:[%s1 + $0x84] sm:$0xf]
      %v339 = vld [vmem:[%s1 + $0x88] sm:$0xf]
      %v340 = vld [vmem:[%s1 + $0x8c] sm:$0xf]
      %v341 = vld [vmem:[%s1 + $0x90] sm:$0xf]
      %v342 = vld [vmem:[%s1 + $0x94] sm:$0xf]
      %v343 = vld [vmem:[%s1 + $0x98] sm:$0xf]
      %v344 = vld [vmem:[%s1 + $0x9c] sm:$0xf]
      %v345 = vld [vmem:[%s1 + $0xa0] sm:$0xf]
      %v346 = vld [vmem:[%s1 + $0xa4] sm:$0xf]
      %v347 = vld [vmem:[%s1 + $0xa8] sm:$0xf]
      %v348 = vld [vmem:[%s1 + $0xac] sm:$0xf]
      %v349 = vld [vmem:[%s1 + $0xb0] sm:$0xf]
      %v350 = vld [vmem:[%s1 + $0xb4] sm:$0xf]
      %v351 = vld [vmem:[%s1 + $0xb8] sm:$0xf]
      %v352 = vld [vmem:[%s1 + $0xbc] sm:$0xf]
      %v353 = vld [vmem:[%s1 + $0xc0] sm:$0xf]
      %v354 = vld [vmem:[%s1 + $0xc4] sm:$0xf]
      %v355 = vld [vmem:[%s1 + $0xc8] sm:$0xf]
      %v356 = vld [vmem:[%s1 + $0xcc] sm:$0xf]
      %v357 = vld [vmem:[%s1 + $0xd0] sm:$0xf]
      %v358 = vld [vmem:[%s1 + $0xd4] sm:$0xf]
      %v359 = vld [vmem:[%s1 + $0xd8] sm:$0xf]
      %v360 = vld [vmem:[%s1 + $0xdc] sm:$0xf]
      %v361 = vld [vmem:[%s1 + $0xe0] sm:$0xf]
      %v362 = vld [vmem:[%s1 + $0xe4] sm:$0xf]
      %v363 = vld [vmem:[%s1 + $0xe8] sm:$0xf]
      %v364 = vld [vmem:[%s1 + $0xec] sm:$0xf]
      %v365 = vld [vmem:[%s1 + $0xf0] sm:$0xf]
      %v366 = vld [vmem:[%s1 + $0xf4] sm:$0xf]
      %v367 = vld [vmem:[%s1 + $0xf8] sm:$0xf]
      %v368 = vld [vmem:[%s1 + $0xfc] sm:$0xf]
      %v369 = vld [vmem:[%s2] sm:$0x1]
      %v371 = vperm.slane %v369, 0
      %v501 = vunpack.c.l.b16 %v177
      %v502 = vunpack.c.h.b16 %v177
      %v503 = vunpack.c.l.b16 %v178
      %v504 = vunpack.c.h.b16 %v178
      %v505 = vunpack.c.l.b16 %v179
      %v506 = vunpack.c.h.b16 %v179
      %v507 = vunpack.c.l.b16 %v180
      %v508 = vunpack.c.h.b16 %v180
      %v509 = vunpack.c.l.b16 %v181
      %v510 = vunpack.c.h.b16 %v181
      %v511 = vunpack.c.l.b16 %v182
      %v512 = vunpack.c.h.b16 %v182
      %v513 = vunpack.c.l.b16 %v183
      %v514 = vunpack.c.h.b16 %v183
      %v515 = vunpack.c.l.b16 %v184
      %v516 = vunpack.c.h.b16 %v184
      %v517 = vunpack.c.l.b16 %v185
      %v518 = vunpack.c.h.b16 %v185
      %v519 = vunpack.c.l.b16 %v186
      %v520 = vunpack.c.h.b16 %v186
      %v521 = vunpack.c.l.b16 %v187
      %v522 = vunpack.c.h.b16 %v187
      %v523 = vunpack.c.l.b16 %v188
      %v524 = vunpack.c.h.b16 %v188
      %v525 = vunpack.c.l.b16 %v189
      %v526 = vunpack.c.h.b16 %v189
      %v527 = vunpack.c.l.b16 %v190
      %v528 = vunpack.c.h.b16 %v190
      %v529 = vunpack.c.l.b16 %v191
      %v530 = vunpack.c.h.b16 %v191
      %v531 = vunpack.c.l.b16 %v192
      %v532 = vunpack.c.h.b16 %v192
      %v533 = vunpack.c.l.b16 %v193
      %v534 = vunpack.c.h.b16 %v193
      %v535 = vunpack.c.l.b16 %v194
      %v536 = vunpack.c.h.b16 %v194
      %v537 = vunpack.c.l.b16 %v195
      %v538 = vunpack.c.h.b16 %v195
      %v539 = vunpack.c.l.b16 %v196
      %v540 = vunpack.c.h.b16 %v196
      %v541 = vunpack.c.l.b16 %v197
      %v542 = vunpack.c.h.b16 %v197
      %v543 = vunpack.c.l.b16 %v198
      %v544 = vunpack.c.h.b16 %v198
      %v545 = vunpack.c.l.b16 %v199
      %v546 = vunpack.c.h.b16 %v199
      %v547 = vunpack.c.l.b16 %v200
      %v548 = vunpack.c.h.b16 %v200
      %v549 = vunpack.c.l.b16 %v201
      %v550 = vunpack.c.h.b16 %v201
      %v551 = vunpack.c.l.b16 %v202
      %v552 = vunpack.c.h.b16 %v202
      %v553 = vunpack.c.l.b16 %v203
      %v554 = vunpack.c.h.b16 %v203
      %v555 = vunpack.c.l.b16 %v204
      %v556 = vunpack.c.h.b16 %v204
      %v557 = vunpack.c.l.b16 %v205
      %v558 = vunpack.c.h.b16 %v205
      %v559 = vunpack.c.l.b16 %v206
      %v560 = vunpack.c.h.b16 %v206
      %v561 = vunpack.c.l.b16 %v207
      %v562 = vunpack.c.h.b16 %v207
      %v563 = vunpack.c.l.b16 %v208
      %v564 = vunpack.c.h.b16 %v208
      %v565 = vunpack.c.l.b16 %v209
      %v566 = vunpack.c.h.b16 %v209
      %v567 = vunpack.c.l.b16 %v210
      %v568 = vunpack.c.h.b16 %v210
      %v569 = vunpack.c.l.b16 %v211
      %v570 = vunpack.c.h.b16 %v211
      %v571 = vunpack.c.l.b16 %v212
      %v572 = vunpack.c.h.b16 %v212
      %v573 = vunpack.c.l.b16 %v213
      %v574 = vunpack.c.h.b16 %v213
      %v575 = vunpack.c.l.b16 %v214
      %v576 = vunpack.c.h.b16 %v214
      %v577 = vunpack.c.l.b16 %v215
      %v578 = vunpack.c.h.b16 %v215
      %v579 = vunpack.c.l.b16 %v216
      %v580 = vunpack.c.h.b16 %v216
      %v581 = vunpack.c.l.b16 %v217
      %v582 = vunpack.c.h.b16 %v217
      %v583 = vunpack.c.l.b16 %v218
      %v584 = vunpack.c.h.b16 %v218
      %v585 = vunpack.c.l.b16 %v219
      %v586 = vunpack.c.h.b16 %v219
      %v587 = vunpack.c.l.b16 %v220
      %v588 = vunpack.c.h.b16 %v220
      %v589 = vunpack.c.l.b16 %v221
      %v590 = vunpack.c.h.b16 %v221
      %v591 = vunpack.c.l.b16 %v222
      %v592 = vunpack.c.h.b16 %v222
      %v593 = vunpack.c.l.b16 %v223
      %v594 = vunpack.c.h.b16 %v223
      %v595 = vunpack.c.l.b16 %v224
      %v596 = vunpack.c.h.b16 %v224
      %v597 = vunpack.c.l.b16 %v225
      %v598 = vunpack.c.h.b16 %v225
      %v599 = vunpack.c.l.b16 %v226
      %v600 = vunpack.c.h.b16 %v226
      %v601 = vunpack.c.l.b16 %v227
      %v602 = vunpack.c.h.b16 %v227
      %v603 = vunpack.c.l.b16 %v228
      %v604 = vunpack.c.h.b16 %v228
      %v605 = vunpack.c.l.b16 %v229
      %v606 = vunpack.c.h.b16 %v229
      %v607 = vunpack.c.l.b16 %v230
      %v608 = vunpack.c.h.b16 %v230
      %v609 = vunpack.c.l.b16 %v231
      %v610 = vunpack.c.h.b16 %v231
      %v611 = vunpack.c.l.b16 %v232
      %v612 = vunpack.c.h.b16 %v232
      %v613 = vunpack.c.l.b16 %v233
      %v614 = vunpack.c.h.b16 %v233
      %v615 = vunpack.c.l.b16 %v234
      %v616 = vunpack.c.h.b16 %v234
      %v617 = vunpack.c.l.b16 %v235
      %v618 = vunpack.c.h.b16 %v235
      %v619 = vunpack.c.l.b16 %v236
      %v620 = vunpack.c.h.b16 %v236
      %v621 = vunpack.c.l.b16 %v237
      %v622 = vunpack.c.h.b16 %v237
      %v623 = vunpack.c.l.b16 %v238
      %v624 = vunpack.c.h.b16 %v238
      %v625 = vunpack.c.l.b16 %v239
      %v626 = vunpack.c.h.b16 %v239
      %v627 = vunpack.c.l.b16 %v240
      %v628 = vunpack.c.h.b16 %v240
      %v629 = vunpack.c.l.b16 %v241
      %v630 = vunpack.c.h.b16 %v241
      %v631 = vunpack.c.l.b16 %v242
      %v632 = vunpack.c.h.b16 %v242
      %v633 = vunpack.c.l.b16 %v243
      %v634 = vunpack.c.h.b16 %v243
      %v635 = vunpack.c.l.b16 %v244
      %v636 = vunpack.c.h.b16 %v244
      %v637 = vunpack.c.l.b16 %v245
      %v638 = vunpack.c.h.b16 %v245
      %v639 = vunpack.c.l.b16 %v246
      %v640 = vunpack.c.h.b16 %v246
      %v641 = vunpack.c.l.b16 %v247
      %v642 = vunpack.c.h.b16 %v247
      %v643 = vunpack.c.l.b16 %v248
      %v644 = vunpack.c.h.b16 %v248
      %v645 = vunpack.c.l.b16 %v249
      %v646 = vunpack.c.h.b16 %v249
      %v647 = vunpack.c.l.b16 %v250
      %v648 = vunpack.c.h.b16 %v250
      %v649 = vunpack.c.l.b16 %v251
      %v650 = vunpack.c.h.b16 %v251
      %v651 = vunpack.c.l.b16 %v252
      %v652 = vunpack.c.h.b16 %v252
      %v653 = vunpack.c.l.b16 %v253
      %v654 = vunpack.c.h.b16 %v253
      %v655 = vunpack.c.l.b16 %v254
      %v656 = vunpack.c.h.b16 %v254
      %v657 = vunpack.c.l.b16 %v255
      %v658 = vunpack.c.h.b16 %v255
      %v659 = vunpack.c.l.b16 %v256
      %v660 = vunpack.c.h.b16 %v256
      %v661 = vunpack.c.l.b16 %v257
      %v662 = vunpack.c.h.b16 %v257
      %v663 = vunpack.c.l.b16 %v258
      %v664 = vunpack.c.h.b16 %v258
      %v665 = vunpack.c.l.b16 %v259
      %v666 = vunpack.c.h.b16 %v259
      %v667 = vunpack.c.l.b16 %v260
      %v668 = vunpack.c.h.b16 %v260
      %v669 = vunpack.c.l.b16 %v261
      %v670 = vunpack.c.h.b16 %v261
      %v671 = vunpack.c.l.b16 %v262
      %v672 = vunpack.c.h.b16 %v262
      %v673 = vunpack.c.l.b16 %v263
      %v674 = vunpack.c.h.b16 %v263
      %v675 = vunpack.c.l.b16 %v264
      %v676 = vunpack.c.h.b16 %v264
      %v677 = vunpack.c.l.b16 %v265
      %v678 = vunpack.c.h.b16 %v265
      %v679 = vunpack.c.l.b16 %v266
      %v680 = vunpack.c.h.b16 %v266
      %v681 = vunpack.c.l.b16 %v267
      %v682 = vunpack.c.h.b16 %v267
      %v683 = vunpack.c.l.b16 %v268
      %v684 = vunpack.c.h.b16 %v268
      %v685 = vunpack.c.l.b16 %v269
      %v686 = vunpack.c.h.b16 %v269
      %v687 = vunpack.c.l.b16 %v270
      %v688 = vunpack.c.h.b16 %v270
      %v689 = vunpack.c.l.b16 %v271
      %v690 = vunpack.c.h.b16 %v271
      %v691 = vunpack.c.l.b16 %v272
      %v692 = vunpack.c.h.b16 %v272
      %v693 = vunpack.c.l.b16 %v273
      %v694 = vunpack.c.h.b16 %v273
      %v695 = vunpack.c.l.b16 %v274
      %v696 = vunpack.c.h.b16 %v274
      %v697 = vunpack.c.l.b16 %v275
      %v698 = vunpack.c.h.b16 %v275
      %v699 = vunpack.c.l.b16 %v276
      %v700 = vunpack.c.h.b16 %v276
      %v701 = vunpack.c.l.b16 %v277
      %v702 = vunpack.c.h.b16 %v277
      %v703 = vunpack.c.l.b16 %v278
      %v704 = vunpack.c.h.b16 %v278
      %v705 = vunpack.c.l.b16 %v279
      %v706 = vunpack.c.h.b16 %v279
      %v707 = vunpack.c.l.b16 %v280
      %v708 = vunpack.c.h.b16 %v280
      %v709 = vunpack.c.l.b16 %v281
      %v710 = vunpack.c.h.b16 %v281
      %v711 = vunpack.c.l.b16 %v282
      %v712 = vunpack.c.h.b16 %v282
      %v713 = vunpack.c.l.b16 %v283
      %v714 = vunpack.c.h.b16 %v283
      %v715 = vunpack.c.l.b16 %v284
      %v716 = vunpack.c.h.b16 %v284
      %v717 = vunpack.c.l.b16 %v285
      %v718 = vunpack.c.h.b16 %v285
      %v719 = vunpack.c.l.b16 %v286
      %v720 = vunpack.c.h.b16 %v286
      %v721 = vunpack.c.l.b16 %v287
      %v722 = vunpack.c.h.b16 %v287
      %v723 = vunpack.c.l.b16 %v288
      %v724 = vunpack.c.h.b16 %v288
      %v725 = vunpack.c.l.b16 %v289
      %v726 = vunpack.c.h.b16 %v289
      %v727 = vunpack.c.l.b16 %v290
      %v728 = vunpack.c.h.b16 %v290
      %v729 = vunpack.c.l.b16 %v291
      %v730 = vunpack.c.h.b16 %v291
      %v731 = vunpack.c.l.b16 %v292
      %v732 = vunpack.c.h.b16 %v292
      %v733 = vunpack.c.l.b16 %v293
      %v734 = vunpack.c.h.b16 %v293
      %v735 = vunpack.c.l.b16 %v294
      %v736 = vunpack.c.h.b16 %v294
      %v737 = vunpack.c.l.b16 %v295
      %v738 = vunpack.c.h.b16 %v295
      %v739 = vunpack.c.l.b16 %v296
      %v740 = vunpack.c.h.b16 %v296
      %v741 = vunpack.c.l.b16 %v297
      %v742 = vunpack.c.h.b16 %v297
      %v743 = vunpack.c.l.b16 %v298
      %v744 = vunpack.c.h.b16 %v298
      %v745 = vunpack.c.l.b16 %v299
      %v746 = vunpack.c.h.b16 %v299
      %v747 = vunpack.c.l.b16 %v300
      %v748 = vunpack.c.h.b16 %v300
      %v749 = vunpack.c.l.b16 %v301
      %v750 = vunpack.c.h.b16 %v301
      %v751 = vunpack.c.l.b16 %v302
      %v752 = vunpack.c.h.b16 %v302
      %v753 = vunpack.c.l.b16 %v303
      %v754 = vunpack.c.h.b16 %v303
      %v755 = vunpack.c.l.b16 %v304
      %v756 = vunpack.c.h.b16 %v304
      %v757 = vpack.c.b16 %v505, %v501
      %v758 = vpack.c.b16 %v506, %v502
      %v759 = vpack.c.b16 %v507, %v503
      %v760 = vpack.c.b16 %v508, %v504
      %v761 = vpack.c.b16 %v513, %v509
      %v762 = vpack.c.b16 %v514, %v510
      %v763 = vpack.c.b16 %v515, %v511
      %v764 = vpack.c.b16 %v516, %v512
      %v765 = vpack.c.b16 %v521, %v517
      %v766 = vpack.c.b16 %v522, %v518
      %v767 = vpack.c.b16 %v523, %v519
      %v768 = vpack.c.b16 %v524, %v520
      %v769 = vpack.c.b16 %v529, %v525
      %v770 = vpack.c.b16 %v530, %v526
      %v771 = vpack.c.b16 %v531, %v527
      %v772 = vpack.c.b16 %v532, %v528
      %v773 = vpack.c.b16 %v537, %v533
      %v774 = vpack.c.b16 %v538, %v534
      %v775 = vpack.c.b16 %v539, %v535
      %v776 = vpack.c.b16 %v540, %v536
      %v777 = vpack.c.b16 %v545, %v541
      %v778 = vpack.c.b16 %v546, %v542
      %v779 = vpack.c.b16 %v547, %v543
      %v780 = vpack.c.b16 %v548, %v544
      %v781 = vpack.c.b16 %v553, %v549
      %v782 = vpack.c.b16 %v554, %v550
      %v783 = vpack.c.b16 %v555, %v551
      %v784 = vpack.c.b16 %v556, %v552
      %v785 = vpack.c.b16 %v561, %v557
      %v786 = vpack.c.b16 %v562, %v558
      %v787 = vpack.c.b16 %v563, %v559
      %v788 = vpack.c.b16 %v564, %v560
      %v789 = vpack.c.b16 %v569, %v565
      %v790 = vpack.c.b16 %v570, %v566
      %v791 = vpack.c.b16 %v571, %v567
      %v792 = vpack.c.b16 %v572, %v568
      %v793 = vpack.c.b16 %v577, %v573
      %v794 = vpack.c.b16 %v578, %v574
      %v795 = vpack.c.b16 %v579, %v575
      %v796 = vpack.c.b16 %v580, %v576
      %v797 = vpack.c.b16 %v585, %v581
      %v798 = vpack.c.b16 %v586, %v582
      %v799 = vpack.c.b16 %v587, %v583
      %v800 = vpack.c.b16 %v588, %v584
      %v801 = vpack.c.b16 %v593, %v589
      %v802 = vpack.c.b16 %v594, %v590
      %v803 = vpack.c.b16 %v595, %v591
      %v804 = vpack.c.b16 %v596, %v592
      %v805 = vpack.c.b16 %v601, %v597
      %v806 = vpack.c.b16 %v602, %v598
      %v807 = vpack.c.b16 %v603, %v599
      %v808 = vpack.c.b16 %v604, %v600
      %v809 = vpack.c.b16 %v609, %v605
      %v810 = vpack.c.b16 %v610, %v606
      %v811 = vpack.c.b16 %v611, %v607
      %v812 = vpack.c.b16 %v612, %v608
      %v813 = vpack.c.b16 %v617, %v613
      %v814 = vpack.c.b16 %v618, %v614
      %v815 = vpack.c.b16 %v619, %v615
      %v816 = vpack.c.b16 %v620, %v616
      %v817 = vpack.c.b16 %v625, %v621
      %v818 = vpack.c.b16 %v626, %v622
      %v819 = vpack.c.b16 %v627, %v623
      %v820 = vpack.c.b16 %v628, %v624
      %v821 = vpack.c.b16 %v633, %v629
      %v822 = vpack.c.b16 %v634, %v630
      %v823 = vpack.c.b16 %v635, %v631
      %v824 = vpack.c.b16 %v636, %v632
      %v825 = vpack.c.b16 %v641, %v637
      %v826 = vpack.c.b16 %v642, %v638
      %v827 = vpack.c.b16 %v643, %v639
      %v828 = vpack.c.b16 %v644, %v640
      %v829 = vpack.c.b16 %v649, %v645
      %v830 = vpack.c.b16 %v650, %v646
      %v831 = vpack.c.b16 %v651, %v647
      %v832 = vpack.c.b16 %v652, %v648
      %v833 = vpack.c.b16 %v657, %v653
      %v834 = vpack.c.b16 %v658, %v654
      %v835 = vpack.c.b16 %v659, %v655
      %v836 = vpack.c.b16 %v660, %v656
      %v837 = vpack.c.b16 %v665, %v661
      %v838 = vpack.c.b16 %v666, %v662
      %v839 = vpack.c.b16 %v667, %v663
      %v840 = vpack.c.b16 %v668, %v664
      %v841 = vpack.c.b16 %v673, %v669
      %v842 = vpack.c.b16 %v674, %v670
      %v843 = vpack.c.b16 %v675, %v671
      %v844 = vpack.c.b16 %v676, %v672
      %v845 = vpack.c.b16 %v681, %v677
      %v846 = vpack.c.b16 %v682, %v678
      %v847 = vpack.c.b16 %v683, %v679
      %v848 = vpack.c.b16 %v684, %v680
      %v849 = vpack.c.b16 %v689, %v685
      %v850 = vpack.c.b16 %v690, %v686
      %v851 = vpack.c.b16 %v691, %v687
      %v852 = vpack.c.b16 %v692, %v688
      %v853 = vpack.c.b16 %v697, %v693
      %v854 = vpack.c.b16 %v698, %v694
      %v855 = vpack.c.b16 %v699, %v695
      %v856 = vpack.c.b16 %v700, %v696
      %v857 = vpack.c.b16 %v705, %v701
      %v858 = vpack.c.b16 %v706, %v702
      %v859 = vpack.c.b16 %v707, %v703
      %v860 = vpack.c.b16 %v708, %v704
      %v861 = vpack.c.b16 %v713, %v709
      %v862 = vpack.c.b16 %v714, %v710
      %v863 = vpack.c.b16 %v715, %v711
      %v864 = vpack.c.b16 %v716, %v712
      %v865 = vpack.c.b16 %v721, %v717
      %v866 = vpack.c.b16 %v722, %v718
      %v867 = vpack.c.b16 %v723, %v719
      %v868 = vpack.c.b16 %v724, %v720
      %v869 = vpack.c.b16 %v729, %v725
      %v870 = vpack.c.b16 %v730, %v726
      %v871 = vpack.c.b16 %v731, %v727
      %v872 = vpack.c.b16 %v732, %v728
      %v873 = vpack.c.b16 %v737, %v733
      %v874 = vpack.c.b16 %v738, %v734
      %v875 = vpack.c.b16 %v739, %v735
      %v876 = vpack.c.b16 %v740, %v736
      %v877 = vpack.c.b16 %v745, %v741
      %v878 = vpack.c.b16 %v746, %v742
      %v879 = vpack.c.b16 %v747, %v743
      %v880 = vpack.c.b16 %v748, %v744
      %v881 = vpack.c.b16 %v753, %v749
      %v882 = vpack.c.b16 %v754, %v750
      %v883 = vpack.c.b16 %v755, %v751
      %v884 = vpack.c.b16 %v756, %v752
      %v1077 = vunpack.c.l.b16 %v305
      %v1078 = vunpack.c.l.b16 %v306
      %v1079 = vunpack.c.l.b16 %v307
      %v1080 = vunpack.c.l.b16 %v308
      %v1081 = vunpack.c.l.b16 %v309
      %v1082 = vunpack.c.l.b16 %v310
      %v1083 = vunpack.c.l.b16 %v311
      %v1084 = vunpack.c.l.b16 %v312
      %v1085 = vunpack.c.l.b16 %v313
      %v1086 = vunpack.c.l.b16 %v314
      %v1087 = vunpack.c.l.b16 %v315
      %v1088 = vunpack.c.l.b16 %v316
      %v1089 = vunpack.c.l.b16 %v317
      %v1090 = vunpack.c.l.b16 %v318
      %v1091 = vunpack.c.l.b16 %v319
      %v1092 = vunpack.c.l.b16 %v320
      %v1093 = vunpack.c.l.b16 %v321
      %v1094 = vunpack.c.l.b16 %v322
      %v1095 = vunpack.c.l.b16 %v323
      %v1096 = vunpack.c.l.b16 %v324
      %v1097 = vunpack.c.l.b16 %v325
      %v1098 = vunpack.c.l.b16 %v326
      %v1099 = vunpack.c.l.b16 %v327
      %v1100 = vunpack.c.l.b16 %v328
      %v1101 = vunpack.c.l.b16 %v329
      %v1102 = vunpack.c.l.b16 %v330
      %v1103 = vunpack.c.l.b16 %v331
      %v1104 = vunpack.c.l.b16 %v332
      %v1105 = vunpack.c.l.b16 %v333
      %v1106 = vunpack.c.l.b16 %v334
      %v1107 = vunpack.c.l.b16 %v335
      %v1108 = vunpack.c.l.b16 %v336
      %v1109 = vunpack.c.l.b16 %v337
      %v1110 = vunpack.c.l.b16 %v338
      %v1111 = vunpack.c.l.b16 %v339
      %v1112 = vunpack.c.l.b16 %v340
      %v1113 = vunpack.c.l.b16 %v341
      %v1114 = vunpack.c.l.b16 %v342
      %v1115 = vunpack.c.l.b16 %v343
      %v1116 = vunpack.c.l.b16 %v344
      %v1117 = vunpack.c.l.b16 %v345
      %v1118 = vunpack.c.l.b16 %v346
      %v1119 = vunpack.c.l.b16 %v347
      %v1120 = vunpack.c.l.b16 %v348
      %v1121 = vunpack.c.l.b16 %v349
      %v1122 = vunpack.c.l.b16 %v350
      %v1123 = vunpack.c.l.b16 %v351
      %v1124 = vunpack.c.l.b16 %v352
      %v1125 = vunpack.c.l.b16 %v353
      %v1126 = vunpack.c.l.b16 %v354
      %v1127 = vunpack.c.l.b16 %v355
      %v1128 = vunpack.c.l.b16 %v356
      %v1129 = vunpack.c.l.b16 %v357
      %v1130 = vunpack.c.l.b16 %v358
      %v1131 = vunpack.c.l.b16 %v359
      %v1132 = vunpack.c.l.b16 %v360
      %v1133 = vunpack.c.l.b16 %v361
      %v1134 = vunpack.c.l.b16 %v362
      %v1135 = vunpack.c.l.b16 %v363
      %v1136 = vunpack.c.l.b16 %v364
      %v1137 = vunpack.c.l.b16 %v365
      %v1138 = vunpack.c.l.b16 %v366
      %v1139 = vunpack.c.l.b16 %v367
      %v1140 = vunpack.c.l.b16 %v368
      %v1141 = vpack.c.b16 %v1078, %v1077
      %v1142 = vpack.c.b16 %v1080, %v1079
      %v1143 = vpack.c.b16 %v1082, %v1081
      %v1144 = vpack.c.b16 %v1084, %v1083
      %v1145 = vpack.c.b16 %v1086, %v1085
      %v1146 = vpack.c.b16 %v1088, %v1087
      %v1147 = vpack.c.b16 %v1090, %v1089
      %v1148 = vpack.c.b16 %v1092, %v1091
      %v1149 = vpack.c.b16 %v1094, %v1093
      %v1150 = vpack.c.b16 %v1096, %v1095
      %v1151 = vpack.c.b16 %v1098, %v1097
      %v1152 = vpack.c.b16 %v1100, %v1099
      %v1153 = vpack.c.b16 %v1102, %v1101
      %v1154 = vpack.c.b16 %v1104, %v1103
      %v1155 = vpack.c.b16 %v1106, %v1105
      %v1156 = vpack.c.b16 %v1108, %v1107
      %v1157 = vpack.c.b16 %v1110, %v1109
      %v1158 = vpack.c.b16 %v1112, %v1111
      %v1159 = vpack.c.b16 %v1114, %v1113
      %v1160 = vpack.c.b16 %v1116, %v1115
      %v1161 = vpack.c.b16 %v1118, %v1117
      %v1162 = vpack.c.b16 %v1120, %v1119
      %v1163 = vpack.c.b16 %v1122, %v1121
      %v1164 = vpack.c.b16 %v1124, %v1123
      %v1165 = vpack.c.b16 %v1126, %v1125
      %v1166 = vpack.c.b16 %v1128, %v1127
      %v1167 = vpack.c.b16 %v1130, %v1129
      %v1168 = vpack.c.b16 %v1132, %v1131
      %v1169 = vpack.c.b16 %v1134, %v1133
      %v1170 = vpack.c.b16 %v1136, %v1135
      %v1171 = vpack.c.b16 %v1138, %v1137
      %v1172 = vpack.c.b16 %v1140, %v1139
      %1205 = vmatpush.bf16.msra.mxu0 %v1148
      %1206 = vmatpush.bf16.msra.mxu0 %v1147
      %1207 = vmatpush.bf16.msra.mxu0 %v1146
      %1208 = vmatpush.bf16.msra.mxu0 %v1145
      %1209 = vmatpush.bf16.msra.mxu0 %v1144
      %1210 = vmatpush.bf16.msra.mxu0 %v1143
      %1211 = vmatpush.bf16.msra.mxu0 %v1142
      %1212 = vmatpush.bf16.msra.mxu0 %v1141
      %1213 = vmatmul.bf16.gmra.mxu0 %v757
      %v1214 = vpop.f32.mrf.mxu0
      %v1215 = vadd.f32 %v371, %v1214
      %v1216 = vpop.f32.mrf.mxu0
      %v1217 = vadd.f32 %v371, %v1216
      %1218 = vmatmul.bf16.gmra.mxu0 %v761
      %v1219 = vpop.f32.mrf.mxu0
      %v1220 = vadd.f32 %v371, %v1219
      %v1221 = vpop.f32.mrf.mxu0
      %v1222 = vadd.f32 %v371, %v1221
      %1223 = vmatmul.bf16.gmra.mxu0 %v765
      %v1224 = vpop.f32.mrf.mxu0
      %v1225 = vadd.f32 %v371, %v1224
      %v1226 = vpop.f32.mrf.mxu0
      %v1227 = vadd.f32 %v371, %v1226
      %1228 = vmatmul.bf16.gmra.mxu0 %v769
      %v1229 = vpop.f32.mrf.mxu0
      %v1230 = vadd.f32 %v371, %v1229
      %v1231 = vpop.f32.mrf.mxu0
      %v1232 = vadd.f32 %v371, %v1231
      %1233 = vmatmul.bf16.gmra.mxu0 %v773
      %v1234 = vpop.f32.mrf.mxu0
      %v1235 = vadd.f32 %v371, %v1234
      %v1236 = vpop.f32.mrf.mxu0
      %v1237 = vadd.f32 %v371, %v1236
      %1238 = vmatmul.bf16.gmra.mxu0 %v777
      %v1239 = vpop.f32.mrf.mxu0
      %v1240 = vadd.f32 %v371, %v1239
      %v1241 = vpop.f32.mrf.mxu0
      %v1242 = vadd.f32 %v371, %v1241
      %1243 = vmatmul.bf16.gmra.mxu0 %v781
      %v1244 = vpop.f32.mrf.mxu0
      %v1245 = vadd.f32 %v371, %v1244
      %v1246 = vpop.f32.mrf.mxu0
      %v1247 = vadd.f32 %v371, %v1246
      %1248 = vmatmul.bf16.gmra.mxu0 %v785
      %v1249 = vpop.f32.mrf.mxu0
      %v1250 = vadd.f32 %v371, %v1249
      %v1251 = vpop.f32.mrf.mxu0
      %v1252 = vadd.f32 %v371, %v1251
      %1253 = vmatmul.bf16.gmra.mxu0 %v789
      %v1254 = vpop.f32.mrf.mxu0
      %v1255 = vadd.f32 %v371, %v1254
      %v1256 = vpop.f32.mrf.mxu0
      %v1257 = vadd.f32 %v371, %v1256
      %1258 = vmatmul.bf16.gmra.mxu0 %v793
      %v1259 = vpop.f32.mrf.mxu0
      %v1260 = vadd.f32 %v371, %v1259
      %v1261 = vpop.f32.mrf.mxu0
      %v1262 = vadd.f32 %v371, %v1261
      %1263 = vmatmul.bf16.gmra.mxu0 %v797
      %v1264 = vpop.f32.mrf.mxu0
      %v1265 = vadd.f32 %v371, %v1264
      %v1266 = vpop.f32.mrf.mxu0
      %v1267 = vadd.f32 %v371, %v1266
      %1268 = vmatmul.bf16.gmra.mxu0 %v801
      %v1269 = vpop.f32.mrf.mxu0
      %v1270 = vadd.f32 %v371, %v1269
      %v1271 = vpop.f32.mrf.mxu0
      %v1272 = vadd.f32 %v371, %v1271
      %1273 = vmatmul.bf16.gmra.mxu0 %v805
      %v1274 = vpop.f32.mrf.mxu0
      %v1275 = vadd.f32 %v371, %v1274
      %v1276 = vpop.f32.mrf.mxu0
      %v1277 = vadd.f32 %v371, %v1276
      %1278 = vmatmul.bf16.gmra.mxu0 %v809
      %v1279 = vpop.f32.mrf.mxu0
      %v1280 = vadd.f32 %v371, %v1279
      %v1281 = vpop.f32.mrf.mxu0
      %v1282 = vadd.f32 %v371, %v1281
      %1283 = vmatmul.bf16.gmra.mxu0 %v813
      %v1284 = vpop.f32.mrf.mxu0
      %v1285 = vadd.f32 %v371, %v1284
      %v1286 = vpop.f32.mrf.mxu0
      %v1287 = vadd.f32 %v371, %v1286
      %1288 = vmatmul.bf16.gmra.mxu0 %v817
      %v1289 = vpop.f32.mrf.mxu0
      %v1290 = vadd.f32 %v371, %v1289
      %v1291 = vpop.f32.mrf.mxu0
      %v1292 = vadd.f32 %v371, %v1291
      %1293 = vmatmul.bf16.gmra.mxu0 %v821
      %v1294 = vpop.f32.mrf.mxu0
      %v1295 = vadd.f32 %v371, %v1294
      %v1296 = vpop.f32.mrf.mxu0
      %v1297 = vadd.f32 %v371, %v1296
      %1298 = vmatmul.bf16.gmra.mxu0 %v825
      %v1299 = vpop.f32.mrf.mxu0
      %v1300 = vadd.f32 %v371, %v1299
      %v1301 = vpop.f32.mrf.mxu0
      %v1302 = vadd.f32 %v371, %v1301
      %1303 = vmatmul.bf16.gmra.mxu0 %v829
      %v1304 = vpop.f32.mrf.mxu0
      %v1305 = vadd.f32 %v371, %v1304
      %v1306 = vpop.f32.mrf.mxu0
      %v1307 = vadd.f32 %v371, %v1306
      %1308 = vmatmul.bf16.gmra.mxu0 %v833
      %v1309 = vpop.f32.mrf.mxu0
      %v1310 = vadd.f32 %v371, %v1309
      %v1311 = vpop.f32.mrf.mxu0
      %v1312 = vadd.f32 %v371, %v1311
      %1313 = vmatmul.bf16.gmra.mxu0 %v837
      %v1314 = vpop.f32.mrf.mxu0
      %v1315 = vadd.f32 %v371, %v1314
      %v1316 = vpop.f32.mrf.mxu0
      %v1317 = vadd.f32 %v371, %v1316
      %1318 = vmatmul.bf16.gmra.mxu0 %v841
      %v1319 = vpop.f32.mrf.mxu0
      %v1320 = vadd.f32 %v371, %v1319
      %v1321 = vpop.f32.mrf.mxu0
      %v1322 = vadd.f32 %v371, %v1321
      %1323 = vmatmul.bf16.gmra.mxu0 %v845
      %v1324 = vpop.f32.mrf.mxu0
      %v1325 = vadd.f32 %v371, %v1324
      %v1326 = vpop.f32.mrf.mxu0
      %v1327 = vadd.f32 %v371, %v1326
      %1328 = vmatmul.bf16.gmra.mxu0 %v849
      %v1329 = vpop.f32.mrf.mxu0
      %v1330 = vadd.f32 %v371, %v1329
      %v1331 = vpop.f32.mrf.mxu0
      %v1332 = vadd.f32 %v371, %v1331
      %1333 = vmatmul.bf16.gmra.mxu0 %v853
      %v1334 = vpop.f32.mrf.mxu0
      %v1335 = vadd.f32 %v371, %v1334
      %v1336 = vpop.f32.mrf.mxu0
      %v1337 = vadd.f32 %v371, %v1336
      %1338 = vmatmul.bf16.gmra.mxu0 %v857
      %v1339 = vpop.f32.mrf.mxu0
      %v1340 = vadd.f32 %v371, %v1339
      %v1341 = vpop.f32.mrf.mxu0
      %v1342 = vadd.f32 %v371, %v1341
      %1343 = vmatmul.bf16.gmra.mxu0 %v861
      %v1344 = vpop.f32.mrf.mxu0
      %v1345 = vadd.f32 %v371, %v1344
      %v1346 = vpop.f32.mrf.mxu0
      %v1347 = vadd.f32 %v371, %v1346
      %1348 = vmatmul.bf16.gmra.mxu0 %v865
      %v1349 = vpop.f32.mrf.mxu0
      %v1350 = vadd.f32 %v371, %v1349
      %v1351 = vpop.f32.mrf.mxu0
      %v1352 = vadd.f32 %v371, %v1351
      %1353 = vmatmul.bf16.gmra.mxu0 %v869
      %v1354 = vpop.f32.mrf.mxu0
      %v1355 = vadd.f32 %v371, %v1354
      %v1356 = vpop.f32.mrf.mxu0
      %v1357 = vadd.f32 %v371, %v1356
      %1358 = vmatmul.bf16.gmra.mxu0 %v873
      %v1359 = vpop.f32.mrf.mxu0
      %v1360 = vadd.f32 %v371, %v1359
      %v1361 = vpop.f32.mrf.mxu0
      %v1362 = vadd.f32 %v371, %v1361
      %1363 = vmatmul.bf16.gmra.mxu0 %v877
      %v1364 = vpop.f32.mrf.mxu0
      %v1365 = vadd.f32 %v371, %v1364
      %v1366 = vpop.f32.mrf.mxu0
      %v1367 = vadd.f32 %v371, %v1366
      %1368 = vmatmul.bf16.gmra.mxu0 %v881
      %v1369 = vpop.f32.mrf.mxu0
      %v1370 = vadd.f32 %v371, %v1369
      %v1371 = vpop.f32.mrf.mxu0
      %v1372 = vadd.f32 %v371, %v1371
      %1373 = vdwg.mxu0
      %1374 = vmatpush.bf16.msra.mxu0 %v1156
      %1375 = vmatpush.bf16.msra.mxu0 %v1155
      %1376 = vmatpush.bf16.msra.mxu0 %v1154
      %1377 = vmatpush.bf16.msra.mxu0 %v1153
      %1378 = vmatpush.bf16.msra.mxu0 %v1152
      %1379 = vmatpush.bf16.msra.mxu0 %v1151
      %1380 = vmatpush.bf16.msra.mxu0 %v1150
      %1381 = vmatpush.bf16.msra.mxu0 %v1149
      %1382 = vmatmul.bf16.gmra.mxu0 %v758
      %v1383 = vpop.f32.mrf.mxu0
      %v1384 = vadd.f32 %v1215, %v1383
      %v1385 = vpop.f32.mrf.mxu0
      %v1386 = vadd.f32 %v1217, %v1385
      %1387 = vmatmul.bf16.gmra.mxu0 %v762
      %v1388 = vpop.f32.mrf.mxu0
      %v1389 = vadd.f32 %v1220, %v1388
      %v1390 = vpop.f32.mrf.mxu0
      %v1391 = vadd.f32 %v1222, %v1390
      %1392 = vmatmul.bf16.gmra.mxu0 %v766
      %v1393 = vpop.f32.mrf.mxu0
      %v1394 = vadd.f32 %v1225, %v1393
      %v1395 = vpop.f32.mrf.mxu0
      %v1396 = vadd.f32 %v1227, %v1395
      %1397 = vmatmul.bf16.gmra.mxu0 %v770
      %v1398 = vpop.f32.mrf.mxu0
      %v1399 = vadd.f32 %v1230, %v1398
      %v1400 = vpop.f32.mrf.mxu0
      %v1401 = vadd.f32 %v1232, %v1400
      %1402 = vmatmul.bf16.gmra.mxu0 %v774
      %v1403 = vpop.f32.mrf.mxu0
      %v1404 = vadd.f32 %v1235, %v1403
      %v1405 = vpop.f32.mrf.mxu0
      %v1406 = vadd.f32 %v1237, %v1405
      %1407 = vmatmul.bf16.gmra.mxu0 %v778
      %v1408 = vpop.f32.mrf.mxu0
      %v1409 = vadd.f32 %v1240, %v1408
      %v1410 = vpop.f32.mrf.mxu0
      %v1411 = vadd.f32 %v1242, %v1410
      %1412 = vmatmul.bf16.gmra.mxu0 %v782
      %v1413 = vpop.f32.mrf.mxu0
      %v1414 = vadd.f32 %v1245, %v1413
      %v1415 = vpop.f32.mrf.mxu0
      %v1416 = vadd.f32 %v1247, %v1415
      %1417 = vmatmul.bf16.gmra.mxu0 %v786
      %v1418 = vpop.f32.mrf.mxu0
      %v1419 = vadd.f32 %v1250, %v1418
      %v1420 = vpop.f32.mrf.mxu0
      %v1421 = vadd.f32 %v1252, %v1420
      %1422 = vmatmul.bf16.gmra.mxu0 %v790
      %v1423 = vpop.f32.mrf.mxu0
      %v1424 = vadd.f32 %v1255, %v1423
      %v1425 = vpop.f32.mrf.mxu0
      %v1426 = vadd.f32 %v1257, %v1425
      %1427 = vmatmul.bf16.gmra.mxu0 %v794
      %v1428 = vpop.f32.mrf.mxu0
      %v1429 = vadd.f32 %v1260, %v1428
      %v1430 = vpop.f32.mrf.mxu0
      %v1431 = vadd.f32 %v1262, %v1430
      %1432 = vmatmul.bf16.gmra.mxu0 %v798
      %v1433 = vpop.f32.mrf.mxu0
      %v1434 = vadd.f32 %v1265, %v1433
      %v1435 = vpop.f32.mrf.mxu0
      %v1436 = vadd.f32 %v1267, %v1435
      %1437 = vmatmul.bf16.gmra.mxu0 %v802
      %v1438 = vpop.f32.mrf.mxu0
      %v1439 = vadd.f32 %v1270, %v1438
      %v1440 = vpop.f32.mrf.mxu0
      %v1441 = vadd.f32 %v1272, %v1440
      %1442 = vmatmul.bf16.gmra.mxu0 %v806
      %v1443 = vpop.f32.mrf.mxu0
      %v1444 = vadd.f32 %v1275, %v1443
      %v1445 = vpop.f32.mrf.mxu0
      %v1446 = vadd.f32 %v1277, %v1445
      %1447 = vmatmul.bf16.gmra.mxu0 %v810
      %v1448 = vpop.f32.mrf.mxu0
      %v1449 = vadd.f32 %v1280, %v1448
      %v1450 = vpop.f32.mrf.mxu0
      %v1451 = vadd.f32 %v1282, %v1450
      %1452 = vmatmul.bf16.gmra.mxu0 %v814
      %v1453 = vpop.f32.mrf.mxu0
      %v1454 = vadd.f32 %v1285, %v1453
      %v1455 = vpop.f32.mrf.mxu0
      %v1456 = vadd.f32 %v1287, %v1455
      %1457 = vmatmul.bf16.gmra.mxu0 %v818
      %v1458 = vpop.f32.mrf.mxu0
      %v1459 = vadd.f32 %v1290, %v1458
      %v1460 = vpop.f32.mrf.mxu0
      %v1461 = vadd.f32 %v1292, %v1460
      %1462 = vmatmul.bf16.gmra.mxu0 %v822
      %v1463 = vpop.f32.mrf.mxu0
      %v1464 = vadd.f32 %v1295, %v1463
      %v1465 = vpop.f32.mrf.mxu0
      %v1466 = vadd.f32 %v1297, %v1465
      %1467 = vmatmul.bf16.gmra.mxu0 %v826
      %v1468 = vpop.f32.mrf.mxu0
      %v1469 = vadd.f32 %v1300, %v1468
      %v1470 = vpop.f32.mrf.mxu0
      %v1471 = vadd.f32 %v1302, %v1470
      %1472 = vmatmul.bf16.gmra.mxu0 %v830
      %v1473 = vpop.f32.mrf.mxu0
      %v1474 = vadd.f32 %v1305, %v1473
      %v1475 = vpop.f32.mrf.mxu0
      %v1476 = vadd.f32 %v1307, %v1475
      %1477 = vmatmul.bf16.gmra.mxu0 %v834
      %v1478 = vpop.f32.mrf.mxu0
      %v1479 = vadd.f32 %v1310, %v1478
      %v1480 = vpop.f32.mrf.mxu0
      %v1481 = vadd.f32 %v1312, %v1480
      %1482 = vmatmul.bf16.gmra.mxu0 %v838
      %v1483 = vpop.f32.mrf.mxu0
      %v1484 = vadd.f32 %v1315, %v1483
      %v1485 = vpop.f32.mrf.mxu0
      %v1486 = vadd.f32 %v1317, %v1485
      %1487 = vmatmul.bf16.gmra.mxu0 %v842
      %v1488 = vpop.f32.mrf.mxu0
      %v1489 = vadd.f32 %v1320, %v1488
      %v1490 = vpop.f32.mrf.mxu0
      %v1491 = vadd.f32 %v1322, %v1490
      %1492 = vmatmul.bf16.gmra.mxu0 %v846
      %v1493 = vpop.f32.mrf.mxu0
      %v1494 = vadd.f32 %v1325, %v1493
      %v1495 = vpop.f32.mrf.mxu0
      %v1496 = vadd.f32 %v1327, %v1495
      %1497 = vmatmul.bf16.gmra.mxu0 %v850
      %v1498 = vpop.f32.mrf.mxu0
      %v1499 = vadd.f32 %v1330, %v1498
      %v1500 = vpop.f32.mrf.mxu0
      %v1501 = vadd.f32 %v1332, %v1500
      %1502 = vmatmul.bf16.gmra.mxu0 %v854
      %v1503 = vpop.f32.mrf.mxu0
      %v1504 = vadd.f32 %v1335, %v1503
      %v1505 = vpop.f32.mrf.mxu0
      %v1506 = vadd.f32 %v1337, %v1505
      %1507 = vmatmul.bf16.gmra.mxu0 %v858
      %v1508 = vpop.f32.mrf.mxu0
      %v1509 = vadd.f32 %v1340, %v1508
      %v1510 = vpop.f32.mrf.mxu0
      %v1511 = vadd.f32 %v1342, %v1510
      %1512 = vmatmul.bf16.gmra.mxu0 %v862
      %v1513 = vpop.f32.mrf.mxu0
      %v1514 = vadd.f32 %v1345, %v1513
      %v1515 = vpop.f32.mrf.mxu0
      %v1516 = vadd.f32 %v1347, %v1515
      %1517 = vmatmul.bf16.gmra.mxu0 %v866
      %v1518 = vpop.f32.mrf.mxu0
      %v1519 = vadd.f32 %v1350, %v1518
      %v1520 = vpop.f32.mrf.mxu0
      %v1521 = vadd.f32 %v1352, %v1520
      %1522 = vmatmul.bf16.gmra.mxu0 %v870
      %v1523 = vpop.f32.mrf.mxu0
      %v1524 = vadd.f32 %v1355, %v1523
      %v1525 = vpop.f32.mrf.mxu0
      %v1526 = vadd.f32 %v1357, %v1525
      %1527 = vmatmul.bf16.gmra.mxu0 %v874
      %v1528 = vpop.f32.mrf.mxu0
      %v1529 = vadd.f32 %v1360, %v1528
      %v1530 = vpop.f32.mrf.mxu0
      %v1531 = vadd.f32 %v1362, %v1530
      %1532 = vmatmul.bf16.gmra.mxu0 %v878
      %v1533 = vpop.f32.mrf.mxu0
      %v1534 = vadd.f32 %v1365, %v1533
      %v1535 = vpop.f32.mrf.mxu0
      %v1536 = vadd.f32 %v1367, %v1535
      %1537 = vmatmul.bf16.gmra.mxu0 %v882
      %v1538 = vpop.f32.mrf.mxu0
      %v1539 = vadd.f32 %v1370, %v1538
      %v1540 = vpop.f32.mrf.mxu0
      %v1541 = vadd.f32 %v1372, %v1540
      %1542 = vdwg.mxu0
      %1543 = vmatpush.bf16.msra.mxu0 %v1164
      %1544 = vmatpush.bf16.msra.mxu0 %v1163
      %1545 = vmatpush.bf16.msra.mxu0 %v1162
      %1546 = vmatpush.bf16.msra.mxu0 %v1161
      %1547 = vmatpush.bf16.msra.mxu0 %v1160
      %1548 = vmatpush.bf16.msra.mxu0 %v1159
      %1549 = vmatpush.bf16.msra.mxu0 %v1158
      %1550 = vmatpush.bf16.msra.mxu0 %v1157
      %1551 = vmatmul.bf16.gmra.mxu0 %v759
      %v1552 = vpop.f32.mrf.mxu0
      %v1553 = vadd.f32 %v1384, %v1552
      %v1554 = vpop.f32.mrf.mxu0
      %v1555 = vadd.f32 %v1386, %v1554
      %1556 = vmatmul.bf16.gmra.mxu0 %v763
      %v1557 = vpop.f32.mrf.mxu0
      %v1558 = vadd.f32 %v1389, %v1557
      %v1559 = vpop.f32.mrf.mxu0
      %v1560 = vadd.f32 %v1391, %v1559
      %1561 = vmatmul.bf16.gmra.mxu0 %v767
      %v1562 = vpop.f32.mrf.mxu0
      %v1563 = vadd.f32 %v1394, %v1562
      %v1564 = vpop.f32.mrf.mxu0
      %v1565 = vadd.f32 %v1396, %v1564
      %1566 = vmatmul.bf16.gmra.mxu0 %v771
      %v1567 = vpop.f32.mrf.mxu0
      %v1568 = vadd.f32 %v1399, %v1567
      %v1569 = vpop.f32.mrf.mxu0
      %v1570 = vadd.f32 %v1401, %v1569
      %1571 = vmatmul.bf16.gmra.mxu0 %v775
      %v1572 = vpop.f32.mrf.mxu0
      %v1573 = vadd.f32 %v1404, %v1572
      %v1574 = vpop.f32.mrf.mxu0
      %v1575 = vadd.f32 %v1406, %v1574
      %1576 = vmatmul.bf16.gmra.mxu0 %v779
      %v1577 = vpop.f32.mrf.mxu0
      %v1578 = vadd.f32 %v1409, %v1577
      %v1579 = vpop.f32.mrf.mxu0
      %v1580 = vadd.f32 %v1411, %v1579
      %1581 = vmatmul.bf16.gmra.mxu0 %v783
      %v1582 = vpop.f32.mrf.mxu0
      %v1583 = vadd.f32 %v1414, %v1582
      %v1584 = vpop.f32.mrf.mxu0
      %v1585 = vadd.f32 %v1416, %v1584
      %1586 = vmatmul.bf16.gmra.mxu0 %v787
      %v1587 = vpop.f32.mrf.mxu0
      %v1588 = vadd.f32 %v1419, %v1587
      %v1589 = vpop.f32.mrf.mxu0
      %v1590 = vadd.f32 %v1421, %v1589
      %1591 = vmatmul.bf16.gmra.mxu0 %v791
      %v1592 = vpop.f32.mrf.mxu0
      %v1593 = vadd.f32 %v1424, %v1592
      %v1594 = vpop.f32.mrf.mxu0
      %v1595 = vadd.f32 %v1426, %v1594
      %1596 = vmatmul.bf16.gmra.mxu0 %v795
      %v1597 = vpop.f32.mrf.mxu0
      %v1598 = vadd.f32 %v1429, %v1597
      %v1599 = vpop.f32.mrf.mxu0
      %v1600 = vadd.f32 %v1431, %v1599
      %1601 = vmatmul.bf16.gmra.mxu0 %v799
      %v1602 = vpop.f32.mrf.mxu0
      %v1603 = vadd.f32 %v1434, %v1602
      %v1604 = vpop.f32.mrf.mxu0
      %v1605 = vadd.f32 %v1436, %v1604
      %1606 = vmatmul.bf16.gmra.mxu0 %v803
      %v1607 = vpop.f32.mrf.mxu0
      %v1608 = vadd.f32 %v1439, %v1607
      %v1609 = vpop.f32.mrf.mxu0
      %v1610 = vadd.f32 %v1441, %v1609
      %1611 = vmatmul.bf16.gmra.mxu0 %v807
      %v1612 = vpop.f32.mrf.mxu0
      %v1613 = vadd.f32 %v1444, %v1612
      %v1614 = vpop.f32.mrf.mxu0
      %v1615 = vadd.f32 %v1446, %v1614
      %1616 = vmatmul.bf16.gmra.mxu0 %v811
      %v1617 = vpop.f32.mrf.mxu0
      %v1618 = vadd.f32 %v1449, %v1617
      %v1619 = vpop.f32.mrf.mxu0
      %v1620 = vadd.f32 %v1451, %v1619
      %1621 = vmatmul.bf16.gmra.mxu0 %v815
      %v1622 = vpop.f32.mrf.mxu0
      %v1623 = vadd.f32 %v1454, %v1622
      %v1624 = vpop.f32.mrf.mxu0
      %v1625 = vadd.f32 %v1456, %v1624
      %1626 = vmatmul.bf16.gmra.mxu0 %v819
      %v1627 = vpop.f32.mrf.mxu0
      %v1628 = vadd.f32 %v1459, %v1627
      %v1629 = vpop.f32.mrf.mxu0
      %v1630 = vadd.f32 %v1461, %v1629
      %1631 = vmatmul.bf16.gmra.mxu0 %v823
      %v1632 = vpop.f32.mrf.mxu0
      %v1633 = vadd.f32 %v1464, %v1632
      %v1634 = vpop.f32.mrf.mxu0
      %v1635 = vadd.f32 %v1466, %v1634
      %1636 = vmatmul.bf16.gmra.mxu0 %v827
      %v1637 = vpop.f32.mrf.mxu0
      %v1638 = vadd.f32 %v1469, %v1637
      %v1639 = vpop.f32.mrf.mxu0
      %v1640 = vadd.f32 %v1471, %v1639
      %1641 = vmatmul.bf16.gmra.mxu0 %v831
      %v1642 = vpop.f32.mrf.mxu0
      %v1643 = vadd.f32 %v1474, %v1642
      %v1644 = vpop.f32.mrf.mxu0
      %v1645 = vadd.f32 %v1476, %v1644
      %1646 = vmatmul.bf16.gmra.mxu0 %v835
      %v1647 = vpop.f32.mrf.mxu0
      %v1648 = vadd.f32 %v1479, %v1647
      %v1649 = vpop.f32.mrf.mxu0
      %v1650 = vadd.f32 %v1481, %v1649
      %1651 = vmatmul.bf16.gmra.mxu0 %v839
      %v1652 = vpop.f32.mrf.mxu0
      %v1653 = vadd.f32 %v1484, %v1652
      %v1654 = vpop.f32.mrf.mxu0
      %v1655 = vadd.f32 %v1486, %v1654
      %1656 = vmatmul.bf16.gmra.mxu0 %v843
      %v1657 = vpop.f32.mrf.mxu0
      %v1658 = vadd.f32 %v1489, %v1657
      %v1659 = vpop.f32.mrf.mxu0
      %v1660 = vadd.f32 %v1491, %v1659
      %1661 = vmatmul.bf16.gmra.mxu0 %v847
      %v1662 = vpop.f32.mrf.mxu0
      %v1663 = vadd.f32 %v1494, %v1662
      %v1664 = vpop.f32.mrf.mxu0
      %v1665 = vadd.f32 %v1496, %v1664
      %1666 = vmatmul.bf16.gmra.mxu0 %v851
      %v1667 = vpop.f32.mrf.mxu0
      %v1668 = vadd.f32 %v1499, %v1667
      %v1669 = vpop.f32.mrf.mxu0
      %v1670 = vadd.f32 %v1501, %v1669
      %1671 = vmatmul.bf16.gmra.mxu0 %v855
      %v1672 = vpop.f32.mrf.mxu0
      %v1673 = vadd.f32 %v1504, %v1672
      %v1674 = vpop.f32.mrf.mxu0
      %v1675 = vadd.f32 %v1506, %v1674
      %1676 = vmatmul.bf16.gmra.mxu0 %v859
      %v1677 = vpop.f32.mrf.mxu0
      %v1678 = vadd.f32 %v1509, %v1677
      %v1679 = vpop.f32.mrf.mxu0
      %v1680 = vadd.f32 %v1511, %v1679
      %1681 = vmatmul.bf16.gmra.mxu0 %v863
      %v1682 = vpop.f32.mrf.mxu0
      %v1683 = vadd.f32 %v1514, %v1682
      %v1684 = vpop.f32.mrf.mxu0
      %v1685 = vadd.f32 %v1516, %v1684
      %1686 = vmatmul.bf16.gmra.mxu0 %v867
      %v1687 = vpop.f32.mrf.mxu0
      %v1688 = vadd.f32 %v1519, %v1687
      %v1689 = vpop.f32.mrf.mxu0
      %v1690 = vadd.f32 %v1521, %v1689
      %1691 = vmatmul.bf16.gmra.mxu0 %v871
      %v1692 = vpop.f32.mrf.mxu0
      %v1693 = vadd.f32 %v1524, %v1692
      %v1694 = vpop.f32.mrf.mxu0
      %v1695 = vadd.f32 %v1526, %v1694
      %1696 = vmatmul.bf16.gmra.mxu0 %v875
      %v1697 = vpop.f32.mrf.mxu0
      %v1698 = vadd.f32 %v1529, %v1697
      %v1699 = vpop.f32.mrf.mxu0
      %v1700 = vadd.f32 %v1531, %v1699
      %1701 = vmatmul.bf16.gmra.mxu0 %v879
      %v1702 = vpop.f32.mrf.mxu0
      %v1703 = vadd.f32 %v1534, %v1702
      %v1704 = vpop.f32.mrf.mxu0
      %v1705 = vadd.f32 %v1536, %v1704
      %1706 = vmatmul.bf16.gmra.mxu0 %v883
      %v1707 = vpop.f32.mrf.mxu0
      %v1708 = vadd.f32 %v1539, %v1707
      %v1709 = vpop.f32.mrf.mxu0
      %v1710 = vadd.f32 %v1541, %v1709
      %1711 = vdwg.mxu0
      %1712 = vmatpush.bf16.msra.mxu0 %v1172
      %1713 = vmatpush.bf16.msra.mxu0 %v1171
      %1714 = vmatpush.bf16.msra.mxu0 %v1170
      %1715 = vmatpush.bf16.msra.mxu0 %v1169
      %1716 = vmatpush.bf16.msra.mxu0 %v1168
      %1717 = vmatpush.bf16.msra.mxu0 %v1167
      %1718 = vmatpush.bf16.msra.mxu0 %v1166
      %1719 = vmatpush.bf16.msra.mxu0 %v1165
      %1720 = vmatmul.bf16.gmra.mxu0 %v760
      %v1721 = vpop.f32.mrf.mxu0
      %v1722 = vadd.f32 %v1553, %v1721
      %v1723 = vpop.f32.mrf.mxu0
      %v1724 = vadd.f32 %v1555, %v1723
      %1725 = vmatmul.bf16.gmra.mxu0 %v764
      %v1726 = vpop.f32.mrf.mxu0
      %v1727 = vadd.f32 %v1558, %v1726
      %v1728 = vpop.f32.mrf.mxu0
      %v1729 = vadd.f32 %v1560, %v1728
      %1730 = vmatmul.bf16.gmra.mxu0 %v768
      %v1731 = vpop.f32.mrf.mxu0
      %v1732 = vadd.f32 %v1563, %v1731
      %v1733 = vpop.f32.mrf.mxu0
      %v1734 = vadd.f32 %v1565, %v1733
      %1735 = vmatmul.bf16.gmra.mxu0 %v772
      %v1736 = vpop.f32.mrf.mxu0
      %v1737 = vadd.f32 %v1568, %v1736
      %v1738 = vpop.f32.mrf.mxu0
      %v1739 = vadd.f32 %v1570, %v1738
      %1740 = vmatmul.bf16.gmra.mxu0 %v776
      %v1741 = vpop.f32.mrf.mxu0
      %v1742 = vadd.f32 %v1573, %v1741
      %v1743 = vpop.f32.mrf.mxu0
      %v1744 = vadd.f32 %v1575, %v1743
      %1745 = vmatmul.bf16.gmra.mxu0 %v780
      %v1746 = vpop.f32.mrf.mxu0
      %v1747 = vadd.f32 %v1578, %v1746
      %v1748 = vpop.f32.mrf.mxu0
      %v1749 = vadd.f32 %v1580, %v1748
      %1750 = vmatmul.bf16.gmra.mxu0 %v784
      %v1751 = vpop.f32.mrf.mxu0
      %v1752 = vadd.f32 %v1583, %v1751
      %v1753 = vpop.f32.mrf.mxu0
      %v1754 = vadd.f32 %v1585, %v1753
      %1755 = vmatmul.bf16.gmra.mxu0 %v788
      %v1756 = vpop.f32.mrf.mxu0
      %v1757 = vadd.f32 %v1588, %v1756
      %v1758 = vpop.f32.mrf.mxu0
      %v1759 = vadd.f32 %v1590, %v1758
      %1760 = vmatmul.bf16.gmra.mxu0 %v792
      %v1761 = vpop.f32.mrf.mxu0
      %v1762 = vadd.f32 %v1593, %v1761
      %v1763 = vpop.f32.mrf.mxu0
      %v1764 = vadd.f32 %v1595, %v1763
      %1765 = vmatmul.bf16.gmra.mxu0 %v796
      %v1766 = vpop.f32.mrf.mxu0
      %v1767 = vadd.f32 %v1598, %v1766
      %v1768 = vpop.f32.mrf.mxu0
      %v1769 = vadd.f32 %v1600, %v1768
      %1770 = vmatmul.bf16.gmra.mxu0 %v800
      %v1771 = vpop.f32.mrf.mxu0
      %v1772 = vadd.f32 %v1603, %v1771
      %v1773 = vpop.f32.mrf.mxu0
      %v1774 = vadd.f32 %v1605, %v1773
      %1775 = vmatmul.bf16.gmra.mxu0 %v804
      %v1776 = vpop.f32.mrf.mxu0
      %v1777 = vadd.f32 %v1608, %v1776
      %v1778 = vpop.f32.mrf.mxu0
      %v1779 = vadd.f32 %v1610, %v1778
      %1780 = vmatmul.bf16.gmra.mxu0 %v808
      %v1781 = vpop.f32.mrf.mxu0
      %v1782 = vadd.f32 %v1613, %v1781
      %v1783 = vpop.f32.mrf.mxu0
      %v1784 = vadd.f32 %v1615, %v1783
      %1785 = vmatmul.bf16.gmra.mxu0 %v812
      %v1786 = vpop.f32.mrf.mxu0
      %v1787 = vadd.f32 %v1618, %v1786
      %v1788 = vpop.f32.mrf.mxu0
      %v1789 = vadd.f32 %v1620, %v1788
      %1790 = vmatmul.bf16.gmra.mxu0 %v816
      %v1791 = vpop.f32.mrf.mxu0
      %v1792 = vadd.f32 %v1623, %v1791
      %v1793 = vpop.f32.mrf.mxu0
      %v1794 = vadd.f32 %v1625, %v1793
      %1795 = vmatmul.bf16.gmra.mxu0 %v820
      %v1796 = vpop.f32.mrf.mxu0
      %v1797 = vadd.f32 %v1628, %v1796
      %v1798 = vpop.f32.mrf.mxu0
      %v1799 = vadd.f32 %v1630, %v1798
      %1800 = vmatmul.bf16.gmra.mxu0 %v824
      %v1801 = vpop.f32.mrf.mxu0
      %v1802 = vadd.f32 %v1633, %v1801
      %v1803 = vpop.f32.mrf.mxu0
      %v1804 = vadd.f32 %v1635, %v1803
      %1805 = vmatmul.bf16.gmra.mxu0 %v828
      %v1806 = vpop.f32.mrf.mxu0
      %v1807 = vadd.f32 %v1638, %v1806
      %v1808 = vpop.f32.mrf.mxu0
      %v1809 = vadd.f32 %v1640, %v1808
      %1810 = vmatmul.bf16.gmra.mxu0 %v832
      %v1811 = vpop.f32.mrf.mxu0
      %v1812 = vadd.f32 %v1643, %v1811
      %v1813 = vpop.f32.mrf.mxu0
      %v1814 = vadd.f32 %v1645, %v1813
      %1815 = vmatmul.bf16.gmra.mxu0 %v836
      %v1816 = vpop.f32.mrf.mxu0
      %v1817 = vadd.f32 %v1648, %v1816
      %v1818 = vpop.f32.mrf.mxu0
      %v1819 = vadd.f32 %v1650, %v1818
      %1820 = vmatmul.bf16.gmra.mxu0 %v840
      %v1821 = vpop.f32.mrf.mxu0
      %v1822 = vadd.f32 %v1653, %v1821
      %v1823 = vpop.f32.mrf.mxu0
      %v1824 = vadd.f32 %v1655, %v1823
      %1825 = vmatmul.bf16.gmra.mxu0 %v844
      %v1826 = vpop.f32.mrf.mxu0
      %v1827 = vadd.f32 %v1658, %v1826
      %v1828 = vpop.f32.mrf.mxu0
      %v1829 = vadd.f32 %v1660, %v1828
      %1830 = vmatmul.bf16.gmra.mxu0 %v848
      %v1831 = vpop.f32.mrf.mxu0
      %v1832 = vadd.f32 %v1663, %v1831
      %v1833 = vpop.f32.mrf.mxu0
      %v1834 = vadd.f32 %v1665, %v1833
      %1835 = vmatmul.bf16.gmra.mxu0 %v852
      %v1836 = vpop.f32.mrf.mxu0
      %v1837 = vadd.f32 %v1668, %v1836
      %v1838 = vpop.f32.mrf.mxu0
      %v1839 = vadd.f32 %v1670, %v1838
      %1840 = vmatmul.bf16.gmra.mxu0 %v856
      %v1841 = vpop.f32.mrf.mxu0
      %v1842 = vadd.f32 %v1673, %v1841
      %v1843 = vpop.f32.mrf.mxu0
      %v1844 = vadd.f32 %v1675, %v1843
      %1845 = vmatmul.bf16.gmra.mxu0 %v860
      %v1846 = vpop.f32.mrf.mxu0
      %v1847 = vadd.f32 %v1678, %v1846
      %v1848 = vpop.f32.mrf.mxu0
      %v1849 = vadd.f32 %v1680, %v1848
      %1850 = vmatmul.bf16.gmra.mxu0 %v864
      %v1851 = vpop.f32.mrf.mxu0
      %v1852 = vadd.f32 %v1683, %v1851
      %v1853 = vpop.f32.mrf.mxu0
      %v1854 = vadd.f32 %v1685, %v1853
      %1855 = vmatmul.bf16.gmra.mxu0 %v868
      %v1856 = vpop.f32.mrf.mxu0
      %v1857 = vadd.f32 %v1688, %v1856
      %v1858 = vpop.f32.mrf.mxu0
      %v1859 = vadd.f32 %v1690, %v1858
      %1860 = vmatmul.bf16.gmra.mxu0 %v872
      %v1861 = vpop.f32.mrf.mxu0
      %v1862 = vadd.f32 %v1693, %v1861
      %v1863 = vpop.f32.mrf.mxu0
      %v1864 = vadd.f32 %v1695, %v1863
      %1865 = vmatmul.bf16.gmra.mxu0 %v876
      %v1866 = vpop.f32.mrf.mxu0
      %v1867 = vadd.f32 %v1698, %v1866
      %v1868 = vpop.f32.mrf.mxu0
      %v1869 = vadd.f32 %v1700, %v1868
      %1870 = vmatmul.bf16.gmra.mxu0 %v880
      %v1871 = vpop.f32.mrf.mxu0
      %v1872 = vadd.f32 %v1703, %v1871
      %v1873 = vpop.f32.mrf.mxu0
      %v1874 = vadd.f32 %v1705, %v1873
      %1875 = vmatmul.bf16.gmra.mxu0 %v884
      %v1876 = vpop.f32.mrf.mxu0
      %v1877 = vadd.f32 %v1708, %v1876
      %v1878 = vpop.f32.mrf.mxu0
      %v1879 = vadd.f32 %v1710, %v1878
      %1880 = vdwg.mxu0
      %vm1881 = vcmp.ge.f32.partialorder %v1722, 0.0
      %vm1882 = vcmp.ge.f32.partialorder %v1724, 0.0
      %vm1883 = vcmp.ge.f32.partialorder %v1727, 0.0
      %vm1884 = vcmp.ge.f32.partialorder %v1729, 0.0
      %vm1885 = vcmp.ge.f32.partialorder %v1732, 0.0
      %vm1886 = vcmp.ge.f32.partialorder %v1734, 0.0
      %vm1887 = vcmp.ge.f32.partialorder %v1737, 0.0
      %vm1888 = vcmp.ge.f32.partialorder %v1739, 0.0
      %vm1889 = vcmp.ge.f32.partialorder %v1742, 0.0
      %vm1890 = vcmp.ge.f32.partialorder %v1744, 0.0
      %vm1891 = vcmp.ge.f32.partialorder %v1747, 0.0
      %vm1892 = vcmp.ge.f32.partialorder %v1749, 0.0
      %vm1893 = vcmp.ge.f32.partialorder %v1752, 0.0
      %vm1894 = vcmp.ge.f32.partialorder %v1754, 0.0
      %vm1895 = vcmp.ge.f32.partialorder %v1757, 0.0
      %vm1896 = vcmp.ge.f32.partialorder %v1759, 0.0
      %vm1897 = vcmp.ge.f32.partialorder %v1762, 0.0
      %vm1898 = vcmp.ge.f32.partialorder %v1764, 0.0
      %vm1899 = vcmp.ge.f32.partialorder %v1767, 0.0
      %vm1900 = vcmp.ge.f32.partialorder %v1769, 0.0
      %vm1901 = vcmp.ge.f32.partialorder %v1772, 0.0
      %vm1902 = vcmp.ge.f32.partialorder %v1774, 0.0
      %vm1903 = vcmp.ge.f32.partialorder %v1777, 0.0
      %vm1904 = vcmp.ge.f32.partialorder %v1779, 0.0
      %vm1905 = vcmp.ge.f32.partialorder %v1782, 0.0
      %vm1906 = vcmp.ge.f32.partialorder %v1784, 0.0
      %vm1907 = vcmp.ge.f32.partialorder %v1787, 0.0
      %vm1908 = vcmp.ge.f32.partialorder %v1789, 0.0
      %vm1909 = vcmp.ge.f32.partialorder %v1792, 0.0
      %vm1910 = vcmp.ge.f32.partialorder %v1794, 0.0
      %vm1911 = vcmp.ge.f32.partialorder %v1797, 0.0
      %vm1912 = vcmp.ge.f32.partialorder %v1799, 0.0
      %vm1913 = vcmp.ge.f32.partialorder %v1802, 0.0
      %vm1914 = vcmp.ge.f32.partialorder %v1804, 0.0
      %vm1915 = vcmp.ge.f32.partialorder %v1807, 0.0
      %vm1916 = vcmp.ge.f32.partialorder %v1809, 0.0
      %vm1917 = vcmp.ge.f32.partialorder %v1812, 0.0
      %vm1918 = vcmp.ge.f32.partialorder %v1814, 0.0
      %vm1919 = vcmp.ge.f32.partialorder %v1817, 0.0
      %vm1920 = vcmp.ge.f32.partialorder %v1819, 0.0
      %vm1921 = vcmp.ge.f32.partialorder %v1822, 0.0
      %vm1922 = vcmp.ge.f32.partialorder %v1824, 0.0
      %vm1923 = vcmp.ge.f32.partialorder %v1827, 0.0
      %vm1924 = vcmp.ge.f32.partialorder %v1829, 0.0
      %vm1925 = vcmp.ge.f32.partialorder %v1832, 0.0
      %vm1926 = vcmp.ge.f32.partialorder %v1834, 0.0
      %vm1927 = vcmp.ge.f32.partialorder %v1837, 0.0
      %vm1928 = vcmp.ge.f32.partialorder %v1839, 0.0
      %vm1929 = vcmp.ge.f32.partialorder %v1842, 0.0
      %vm1930 = vcmp.ge.f32.partialorder %v1844, 0.0
      %vm1931 = vcmp.ge.f32.partialorder %v1847, 0.0
      %vm1932 = vcmp.ge.f32.partialorder %v1849, 0.0
      %vm1933 = vcmp.ge.f32.partialorder %v1852, 0.0
      %vm1934 = vcmp.ge.f32.partialorder %v1854, 0.0
      %vm1935 = vcmp.ge.f32.partialorder %v1857, 0.0
      %vm1936 = vcmp.ge.f32.partialorder %v1859, 0.0
      %vm1937 = vcmp.ge.f32.partialorder %v1862, 0.0
      %vm1938 = vcmp.ge.f32.partialorder %v1864, 0.0
      %vm1939 = vcmp.ge.f32.partialorder %v1867, 0.0
      %vm1940 = vcmp.ge.f32.partialorder %v1869, 0.0
      %vm1941 = vcmp.ge.f32.partialorder %v1872, 0.0
      %vm1942 = vcmp.ge.f32.partialorder %v1874, 0.0
      %vm1943 = vcmp.ge.f32.partialorder %v1877, 0.0
      %vm1944 = vcmp.ge.f32.partialorder %v1879, 0.0
      %v1945 = vmul.f32 %v1722, 0.2
      %v1946 = vmul.f32 %v1724, 0.2
      %v1947 = vmul.f32 %v1727, 0.2
      %v1948 = vmul.f32 %v1729, 0.2
      %v1949 = vmul.f32 %v1732, 0.2
      %v1950 = vmul.f32 %v1734, 0.2
      %v1951 = vmul.f32 %v1737, 0.2
      %v1952 = vmul.f32 %v1739, 0.2
      %v1953 = vmul.f32 %v1742, 0.2
      %v1954 = vmul.f32 %v1744, 0.2
      %v1955 = vmul.f32 %v1747, 0.2
      %v1956 = vmul.f32 %v1749, 0.2
      %v1957 = vmul.f32 %v1752, 0.2
      %v1958 = vmul.f32 %v1754, 0.2
      %v1959 = vmul.f32 %v1757, 0.2
      %v1960 = vmul.f32 %v1759, 0.2
      %v1961 = vmul.f32 %v1762, 0.2
      %v1962 = vmul.f32 %v1764, 0.2
      %v1963 = vmul.f32 %v1767, 0.2
      %v1964 = vmul.f32 %v1769, 0.2
      %v1965 = vmul.f32 %v1772, 0.2
      %v1966 = vmul.f32 %v1774, 0.2
      %v1967 = vmul.f32 %v1777, 0.2
      %v1968 = vmul.f32 %v1779, 0.2
      %v1969 = vmul.f32 %v1782, 0.2
      %v1970 = vmul.f32 %v1784, 0.2
      %v1971 = vmul.f32 %v1787, 0.2
      %v1972 = vmul.f32 %v1789, 0.2
      %v1973 = vmul.f32 %v1792, 0.2
      %v1974 = vmul.f32 %v1794, 0.2
      %v1975 = vmul.f32 %v1797, 0.2
      %v1976 = vmul.f32 %v1799, 0.2
      %v1977 = vmul.f32 %v1802, 0.2
      %v1978 = vmul.f32 %v1804, 0.2
      %v1979 = vmul.f32 %v1807, 0.2
      %v1980 = vmul.f32 %v1809, 0.2
      %v1981 = vmul.f32 %v1812, 0.2
      %v1982 = vmul.f32 %v1814, 0.2
      %v1983 = vmul.f32 %v1817, 0.2
      %v1984 = vmul.f32 %v1819, 0.2
      %v1985 = vmul.f32 %v1822, 0.2
      %v1986 = vmul.f32 %v1824, 0.2
      %v1987 = vmul.f32 %v1827, 0.2
      %v1988 = vmul.f32 %v1829, 0.2
      %v1989 = vmul.f32 %v1832, 0.2
      %v1990 = vmul.f32 %v1834, 0.2
      %v1991 = vmul.f32 %v1837, 0.2
      %v1992 = vmul.f32 %v1839, 0.2
      %v1993 = vmul.f32 %v1842, 0.2
      %v1994 = vmul.f32 %v1844, 0.2
      %v1995 = vmul.f32 %v1847, 0.2
      %v1996 = vmul.f32 %v1849, 0.2
      %v1997 = vmul.f32 %v1852, 0.2
      %v1998 = vmul.f32 %v1854, 0.2
      %v1999 = vmul.f32 %v1857, 0.2
      %v2000 = vmul.f32 %v1859, 0.2
      %v2001 = vmul.f32 %v1862, 0.2
      %v2002 = vmul.f32 %v1864, 0.2
      %v2003 = vmul.f32 %v1867, 0.2
      %v2004 = vmul.f32 %v1869, 0.2
      %v2005 = vmul.f32 %v1872, 0.2
      %v2006 = vmul.f32 %v1874, 0.2
      %v2007 = vmul.f32 %v1877, 0.2
      %v2008 = vmul.f32 %v1879, 0.2
      %v2009 = vsel %vm1881, %v1722, %v1945
      %v2010 = vsel %vm1882, %v1724, %v1946
      %v2011 = vsel %vm1883, %v1727, %v1947
      %v2012 = vsel %vm1884, %v1729, %v1948
      %v2013 = vsel %vm1885, %v1732, %v1949
      %v2014 = vsel %vm1886, %v1734, %v1950
      %v2015 = vsel %vm1887, %v1737, %v1951
      %v2016 = vsel %vm1888, %v1739, %v1952
      %v2017 = vsel %vm1889, %v1742, %v1953
      %v2018 = vsel %vm1890, %v1744, %v1954
      %v2019 = vsel %vm1891, %v1747, %v1955
      %v2020 = vsel %vm1892, %v1749, %v1956
      %v2021 = vsel %vm1893, %v1752, %v1957
      %v2022 = vsel %vm1894, %v1754, %v1958
      %v2023 = vsel %vm1895, %v1757, %v1959
      %v2024 = vsel %vm1896, %v1759, %v1960
      %v2025 = vsel %vm1897, %v1762, %v1961
      %v2026 = vsel %vm1898, %v1764, %v1962
      %v2027 = vsel %vm1899, %v1767, %v1963
      %v2028 = vsel %vm1900, %v1769, %v1964
      %v2029 = vsel %vm1901, %v1772, %v1965
      %v2030 = vsel %vm1902, %v1774, %v1966
      %v2031 = vsel %vm1903, %v1777, %v1967
      %v2032 = vsel %vm1904, %v1779, %v1968
      %v2033 = vsel %vm1905, %v1782, %v1969
      %v2034 = vsel %vm1906, %v1784, %v1970
      %v2035 = vsel %vm1907, %v1787, %v1971
      %v2036 = vsel %vm1908, %v1789, %v1972
      %v2037 = vsel %vm1909, %v1792, %v1973
      %v2038 = vsel %vm1910, %v1794, %v1974
      %v2039 = vsel %vm1911, %v1797, %v1975
      %v2040 = vsel %vm1912, %v1799, %v1976
      %v2041 = vsel %vm1913, %v1802, %v1977
      %v2042 = vsel %vm1914, %v1804, %v1978
      %v2043 = vsel %vm1915, %v1807, %v1979
      %v2044 = vsel %vm1916, %v1809, %v1980
      %v2045 = vsel %vm1917, %v1812, %v1981
      %v2046 = vsel %vm1918, %v1814, %v1982
      %v2047 = vsel %vm1919, %v1817, %v1983
      %v2048 = vsel %vm1920, %v1819, %v1984
      %v2049 = vsel %vm1921, %v1822, %v1985
      %v2050 = vsel %vm1922, %v1824, %v1986
      %v2051 = vsel %vm1923, %v1827, %v1987
      %v2052 = vsel %vm1924, %v1829, %v1988
      %v2053 = vsel %vm1925, %v1832, %v1989
      %v2054 = vsel %vm1926, %v1834, %v1990
      %v2055 = vsel %vm1927, %v1837, %v1991
      %v2056 = vsel %vm1928, %v1839, %v1992
      %v2057 = vsel %vm1929, %v1842, %v1993
      %v2058 = vsel %vm1930, %v1844, %v1994
      %v2059 = vsel %vm1931, %v1847, %v1995
      %v2060 = vsel %vm1932, %v1849, %v1996
      %v2061 = vsel %vm1933, %v1852, %v1997
      %v2062 = vsel %vm1934, %v1854, %v1998
      %v2063 = vsel %vm1935, %v1857, %v1999
      %v2064 = vsel %vm1936, %v1859, %v2000
      %v2065 = vsel %vm1937, %v1862, %v2001
      %v2066 = vsel %vm1938, %v1864, %v2002
      %v2067 = vsel %vm1939, %v1867, %v2003
      %v2068 = vsel %vm1940, %v1869, %v2004
      %v2069 = vsel %vm1941, %v1872, %v2005
      %v2070 = vsel %vm1942, %v1874, %v2006
      %v2071 = vsel %vm1943, %v1877, %v2007
      %v2072 = vsel %vm1944, %v1879, %v2008
      %2073 = vst [vmem:[%s175] sm:$0xff] %v2009
      %2074 = vst [vmem:[%s175 + $0x8] sm:$0xff] %v2010
      %2075 = vst [vmem:[%s175 + $0x10] sm:$0xff] %v2011
      %2076 = vst [vmem:[%s175 + $0x18] sm:$0xff] %v2012
      %2077 = vst [vmem:[%s175 + $0x20] sm:$0xff] %v2013
      %2078 = vst [vmem:[%s175 + $0x28] sm:$0xff] %v2014
      %2079 = vst [vmem:[%s175 + $0x30] sm:$0xff] %v2015
      %2080 = vst [vmem:[%s175 + $0x38] sm:$0xff] %v2016
      %2081 = vst [vmem:[%s175 + $0x40] sm:$0xff] %v2017
      %2082 = vst [vmem:[%s175 + $0x48] sm:$0xff] %v2018
      %2083 = vst [vmem:[%s175 + $0x50] sm:$0xff] %v2019
      %2084 = vst [vmem:[%s175 + $0x58] sm:$0xff] %v2020
      %2085 = vst [vmem:[%s175 + $0x60] sm:$0xff] %v2021
      %2086 = vst [vmem:[%s175 + $0x68] sm:$0xff] %v2022
      %2087 = vst [vmem:[%s175 + $0x70] sm:$0xff] %v2023
      %2088 = vst [vmem:[%s175 + $0x78] sm:$0xff] %v2024
      %2089 = vst [vmem:[%s175 + $0x80] sm:$0xff] %v2025
      %2090 = vst [vmem:[%s175 + $0x88] sm:$0xff] %v2026
      %2091 = vst [vmem:[%s175 + $0x90] sm:$0xff] %v2027
      %2092 = vst [vmem:[%s175 + $0x98] sm:$0xff] %v2028
      %2093 = vst [vmem:[%s175 + $0xa0] sm:$0xff] %v2029
      %2094 = vst [vmem:[%s175 + $0xa8] sm:$0xff] %v2030
      %2095 = vst [vmem:[%s175 + $0xb0] sm:$0xff] %v2031
      %2096 = vst [vmem:[%s175 + $0xb8] sm:$0xff] %v2032
      %2097 = vst [vmem:[%s175 + $0xc0] sm:$0xff] %v2033
      %2098 = vst [vmem:[%s175 + $0xc8] sm:$0xff] %v2034
      %2099 = vst [vmem:[%s175 + $0xd0] sm:$0xff] %v2035
      %2100 = vst [vmem:[%s175 + $0xd8] sm:$0xff] %v2036
      %2101 = vst [vmem:[%s175 + $0xe0] sm:$0xff] %v2037
      %2102 = vst [vmem:[%s175 + $0xe8] sm:$0xff] %v2038
      %2103 = vst [vmem:[%s175 + $0xf0] sm:$0xff] %v2039
      %2104 = vst [vmem:[%s175 + $0xf8] sm:$0xff] %v2040
      %2105 = vst [vmem:[%s175 + $0x100] sm:$0xff] %v2041
      %2106 = vst [vmem:[%s175 + $0x108] sm:$0xff] %v2042
      %2107 = vst [vmem:[%s175 + $0x110] sm:$0xff] %v2043
      %2108 = vst [vmem:[%s175 + $0x118] sm:$0xff] %v2044
      %2109 = vst [vmem:[%s175 + $0x120] sm:$0xff] %v2045
      %2110 = vst [vmem:[%s175 + $0x128] sm:$0xff] %v2046
      %2111 = vst [vmem:[%s175 + $0x130] sm:$0xff] %v2047
      %2112 = vst [vmem:[%s175 + $0x138] sm:$0xff] %v2048
      %2113 = vst [vmem:[%s175 + $0x140] sm:$0xff] %v2049
      %2114 = vst [vmem:[%s175 + $0x148] sm:$0xff] %v2050
      %2115 = vst [vmem:[%s175 + $0x150] sm:$0xff] %v2051
      %2116 = vst [vmem:[%s175 + $0x158] sm:$0xff] %v2052
      %2117 = vst [vmem:[%s175 + $0x160] sm:$0xff] %v2053
      %2118 = vst [vmem:[%s175 + $0x168] sm:$0xff] %v2054
      %2119 = vst [vmem:[%s175 + $0x170] sm:$0xff] %v2055
      %2120 = vst [vmem:[%s175 + $0x178] sm:$0xff] %v2056
      %2121 = vst [vmem:[%s175 + $0x180] sm:$0xff] %v2057
      %2122 = vst [vmem:[%s175 + $0x188] sm:$0xff] %v2058
      %2123 = vst [vmem:[%s175 + $0x190] sm:$0xff] %v2059
      %2124 = vst [vmem:[%s175 + $0x198] sm:$0xff] %v2060
      %2125 = vst [vmem:[%s175 + $0x1a0] sm:$0xff] %v2061
      %2126 = vst [vmem:[%s175 + $0x1a8] sm:$0xff] %v2062
      %2127 = vst [vmem:[%s175 + $0x1b0] sm:$0xff] %v2063
      %2128 = vst [vmem:[%s175 + $0x1b8] sm:$0xff] %v2064
      %2129 = vst [vmem:[%s175 + $0x1c0] sm:$0xff] %v2065
      %2130 = vst [vmem:[%s175 + $0x1c8] sm:$0xff] %v2066
      %2131 = vst [vmem:[%s175 + $0x1d0] sm:$0xff] %v2067
      %2132 = vst [vmem:[%s175 + $0x1d8] sm:$0xff] %v2068
      %2133 = vst [vmem:[%s175 + $0x1e0] sm:$0xff] %v2069
      %2134 = vst [vmem:[%s175 + $0x1e8] sm:$0xff] %v2070
      %2135 = vst [vmem:[%s175 + $0x1f0] sm:$0xff] %v2071
      %2136 = vst [vmem:[%s175 + $0x1f8] sm:$0xff] %v2072
      %s2137 = smul.u32 64, %s14
      %p2138 = scmp.lt.s32.totalorder %s2137, 255
      %s2139 = scalar_select %p2138, %s2137, 255
      %s2140 = smul.addr %s2139, 8
      %s2141 = scalar_lea.vmem %s3, %s2140
      // Predicated region
      $region33: #{_feature_learning_impl.7} parent=31 // pred_check
        %p2142 = pneg %p100
      $region34: #{_feature_learning_impl.7} parent=31 // pred_check_branch
        %2144 = sbr.rel (%p2142) target = $region36
      $region35: #{_feature_learning_impl.7} parent=31 // pred_region
        %s2145 = smul.u32 64, %s14
      $region36: #{_feature_learning_impl.7} parent=31 // pred_fallthru
        _
    $region32: #{_feature_learning_impl.7} parent=5 // pred_fallthru
      _
    %p2146 = scmp.le.s32.totalorder 2, %s9
    // Predicated region
    $region37: #{_feature_learning_impl.7} parent=5 // pred_check
      %p2147 = pneg %p2146
    $region38: #{_feature_learning_impl.7} parent=5 // pred_check_branch
      %2149 = sbr.rel (%p2147) target = $region40
    $region39: #{_feature_learning_impl.7} parent=5 // pred_region
      %s2150 = ssub.s32 %s9, 2
      // Predicated region
      $region41: #{_feature_learning_impl.7} parent=39 // pred_check
        %p2151 = pneg %p106
      $region42: #{_feature_learning_impl.7} parent=39 // pred_check_branch
        %2153 = sbr.rel (%p2151) target = $region44
      $region43: #{_feature_learning_impl.7} parent=39 // pred_region
        %s2154 = smul.u32 64, %s15
        %p2155 = scmp.lt.s32.totalorder %s2154, 255
        %s2156 = scalar_select %p2155, %s2154, 255
        %s2157 = smul.addr %s2156, 8
        %s2158 = scalar_lea.vmem %s3, %s2157
      $region44: #{_feature_learning_impl.7} parent=39 // pred_fallthru
        _
    $region40: #{_feature_learning_impl.7} parent=5 // pred_fallthru
      _
  $region6: #{_feature_learning_impl.7} parent=0 // loop_footer
    %s13 = sadd.s32 1, %s9
  $region7: #{_feature_learning_impl.7} parent=0 // loop_footer_branch
    %8 = sbr.rel target = $region3
  $region8: #{_feature_learning_impl.7} parent=0 // loop_exit
    _

// kernel: _feature_learning_impl.9
$region0: #{_feature_learning_impl.9}
  #allocation0 [shape = 'u32[]', space=smem, size = 0x4, offset = 0x4, fixed_abs, tag = 'smem constant byte address 0x4 - core index']
  #allocation1 [shape = 'u32[72,128]{1,0:T(1,128)}', space=vmem, size = 0x9000, scoped, tag = 'internal scratch']
  %s0 = inlined_call_operand.vmem [shape: bf16[256,1024], index: 0, kind: input, shape index: {}]
  %s1 = inlined_call_operand.vmem [shape: bf16[1024,128], index: 1, kind: input, shape index: {}]
  %s2 = inlined_call_operand.vmem [shape: f32[1,128], index: 2, kind: input, shape index: {}]
  %s3 = inlined_call_operand.vmem [shape: f32[256,128], index: 3, kind: output, shape index: {}]
  %s4 = sld [smem:[#allocation0]]
  $region45: #{_feature_learning_impl.9} parent=0
    _
  %s6 = ssub.s32 1, %s4
  %s7 = scalar_select 0, %s6, %s4
  loop: start=0, step=1, limit=4
  $region2: #{_feature_learning_impl.9} parent=0 // loop_pre_header
    _
  $region3: #{_feature_learning_impl.9} parent=0 // loop_header
    %s9 = sphi 0, %s13
    %p10 = scmp.ge.s32.totalorder %s9, 4
    %s19 = sphi 0, %s21
    %s22 = sphi 0, %s19
    %s23 = sphi 0, %s22
    %s39 = sphi 0, %s23
    %s43 = sphi 0, %s43
    %s45 = sphi 0, %s43
    %s46 = sphi 0, %s45
    %s60 = sphi 0, %s46
    %s64 = sphi 0, %s64
    %s66 = sphi 0, %s64
    %s67 = sphi 0, %s66
    %s81 = sphi 0, %s67
    %s87 = sphi 0, %s89
    %s90 = sphi 0, %s87
    %s91 = sphi 0, %s90
    %s107 = sphi 0, %s91
  $region4: #{_feature_learning_impl.9} parent=0 // loop_header_branch
    %12 = sbr.rel (%p10) target = $region8
  $region5: #{_feature_learning_impl.9} parent=0 // loop_body
    %s14 = ssub.s32 %s9, 1
    %s15 = ssub.s32 %s9, 2
    %s16 = sadd.s32 %s9, 1
    %s17 = ssub.s32 %s9, %s16
    %p18 = scmp.eq.s32.totalorder %s17, 0
    %s20 = sadd.s32 %s19, 1
    %s21 = scalar_select %p18, %s19, %s20
    %p24 = pneg %p18
    %p25 = scmp.eq.s32.totalorder %s9, 1
    %p26 = por %p24, %p25
    %p27 = scmp.ne.s32.totalorder %s19, %s22
    %p28 = scmp.eq.s32.totalorder %s9, 0
    %p29 = por %p27, %p28
    %p30 = scmp.ne.s32.totalorder %s19, %s22
    %p31 = scmp.eq.s32.totalorder %s14, 1
    %p32 = por %p30, %p31
    %p33 = scmp.ne.s32.totalorder %s22, %s23
    %p34 = scmp.eq.s32.totalorder %s14, 0
    %p35 = por %p33, %p34
    %p36 = scmp.ne.s32.totalorder %s22, %s23
    %p37 = scmp.eq.s32.totalorder %s15, 1
    %p38 = por %p36, %p37
    %p40 = scmp.ne.s32.totalorder %s23, %s39
    %p41 = scmp.eq.s32.totalorder %s15, 0
    %p42 = por %p40, %p41
    %s44 = sadd.s32 %s43, 1
    %p47 = scmp.eq.s32.totalorder %s9, 1
    %p48 = scmp.ne.s32.totalorder %s43, %s45
    %p49 = scmp.eq.s32.totalorder %s9, 0
    %p50 = por %p48, %p49
    %p51 = scmp.ne.s32.totalorder %s43, %s45
    %p52 = scmp.eq.s32.totalorder %s14, 1
    %p53 = por %p51, %p52
    %p54 = scmp.ne.s32.totalorder %s45, %s46
    %p55 = scmp.eq.s32.totalorder %s14, 0
    %p56 = por %p54, %p55
    %p57 = scmp.ne.s32.totalorder %s45, %s46
    %p58 = scmp.eq.s32.totalorder %s15, 1
    %p59 = por %p57, %p58
    %p61 = scmp.ne.s32.totalorder %s46, %s60
    %p62 = scmp.eq.s32.totalorder %s15, 0
    %p63 = por %p61, %p62
    %s65 = sadd.s32 %s64, 1
    %p68 = scmp.eq.s32.totalorder %s9, 1
    %p69 = scmp.ne.s32.totalorder %s64, %s66
    %p70 = scmp.eq.s32.totalorder %s9, 0
    %p71 = por %p69, %p70
    %p72 = scmp.ne.s32.totalorder %s64, %s66
    %p73 = scmp.eq.s32.totalorder %s14, 1
    %p74 = por %p72, %p73
    %p75 = scmp.ne.s32.totalorder %s66, %s67
    %p76 = scmp.eq.s32.totalorder %s14, 0
    %p77 = por %p75, %p76
    %p78 = scmp.ne.s32.totalorder %s66, %s67
    %p79 = scmp.eq.s32.totalorder %s15, 1
    %p80 = por %p78, %p79
    %p82 = scmp.ne.s32.totalorder %s67, %s81
    %p83 = scmp.eq.s32.totalorder %s15, 0
    %p84 = por %p82, %p83
    %s85 = ssub.s32 %s9, %s16
    %p86 = scmp.eq.s32.totalorder %s85, 0
    %s88 = sadd.s32 %s87, 1
    %s89 = scalar_select %p86, %s87, %s88
    %p92 = pneg %p86
    %p93 = scmp.eq.s32.totalorder %s9, 1
    %p94 = por %p92, %p93
    %p95 = scmp.ne.s32.totalorder %s87, %s90
    %p96 = scmp.eq.s32.totalorder %s9, 0
    %p97 = por %p95, %p96
    %p98 = scmp.ne.s32.totalorder %s87, %s90
    %p99 = scmp.eq.s32.totalorder %s14, 1
    %p100 = por %p98, %p99
    %p101 = scmp.ne.s32.totalorder %s90, %s91
    %p102 = scmp.eq.s32.totalorder %s14, 0
    %p103 = por %p101, %p102
    %p104 = scmp.ne.s32.totalorder %s90, %s91
    %p105 = scmp.eq.s32.totalorder %s15, 1
    %p106 = por %p104, %p105
    %p108 = scmp.ne.s32.totalorder %s91, %s107
    %p109 = scmp.eq.s32.totalorder %s15, 0
    %p110 = por %p108, %p109
    %p111 = scmp.le.s32.totalorder 1, %s9
    %p112 = scmp.lt.s32.totalorder %s9, 3
    %p113 = pnand %p111, %p112
    %p114 = pneg %p113
    // Predicated region
    $region9: #{_feature_learning_impl.9} parent=5 // pred_check
      _
    $region10: #{_feature_learning_impl.9} parent=5 // pred_check_branch
      %116 = sbr.rel (%p113) target = $region12
    $region11: #{_feature_learning_impl.9} parent=5 // pred_region
      %s117 = ssub.s32 %s9, 1
      // Predicated region
      $region13: #{_feature_learning_impl.9} parent=11 // pred_check
        %p118 = pneg %p56
      $region14: #{_feature_learning_impl.9} parent=11 // pred_check_branch
        %120 = sbr.rel (%p118) target = $region16
      $region15: #{_feature_learning_impl.9} parent=11 // pred_region
        _
      $region16: #{_feature_learning_impl.9} parent=11 // pred_fallthru
        _
      // Predicated region
      $region17: #{_feature_learning_impl.9} parent=11 // pred_check
        %p121 = pneg %p77
      $region18: #{_feature_learning_impl.9} parent=11 // pred_check_branch
        %123 = sbr.rel (%p121) target = $region20
      $region19: #{_feature_learning_impl.9} parent=11 // pred_region
        _
      $region20: #{_feature_learning_impl.9} parent=11 // pred_fallthru
        _
    $region12: #{_feature_learning_impl.9} parent=5 // pred_fallthru
      _
    %p124 = scmp.lt.s32.totalorder %s9, 2
    // Predicated region
    $region21: #{_feature_learning_impl.9} parent=5 // pred_check
      %p125 = pneg %p124
    $region22: #{_feature_learning_impl.9} parent=5 // pred_check_branch
      %127 = sbr.rel (%p125) target = $region24
    $region23: #{_feature_learning_impl.9} parent=5 // pred_region
      // Predicated region
      $region25: #{_feature_learning_impl.9} parent=23 // pred_check
        %p128 = pneg %p29
      $region26: #{_feature_learning_impl.9} parent=23 // pred_check_branch
        %130 = sbr.rel (%p128) target = $region28
      $region27: #{_feature_learning_impl.9} parent=23 // pred_region
        %s131 = smul.u32 16, %s9
        %p132 = scmp.lt.s32.totalorder %s131, 31
        %s133 = scalar_select %p132, %s131, 31
        %s134 = smul.addr %s133, 8
        %s135 = smul.addr %s134, 4
        %s136 = scalar_lea.vmem %s0, %s135
        %s137 = smul.u32 16, %s9
      $region28: #{_feature_learning_impl.9} parent=23 // pred_fallthru
        _
    $region24: #{_feature_learning_impl.9} parent=5 // pred_fallthru
      _
    %p138 = scmp.le.s32.totalorder 1, %s9
    %p139 = scmp.lt.s32.totalorder %s9, 3
    %p140 = pnand %p138, %p139
    %p141 = pneg %p140
    // Predicated region
    $region29: #{_feature_learning_impl.9} parent=5 // pred_check
      _
    $region30: #{_feature_learning_impl.9} parent=5 // pred_check_branch
      %143 = sbr.rel (%p140) target = $region32
    $region31: #{_feature_learning_impl.9} parent=5 // pred_region
      %s144 = ssub.s32 %s9, 1
      %s145 = smul.u32 16, %s14
      %p146 = scmp.lt.s32.totalorder %s145, 31
      %s147 = scalar_select %p146, %s145, 31
      %s148 = smul.addr %s147, 8
      %s149 = smul.addr %s148, 4
      %s150 = scalar_lea.vmem %s0, %s149
      %p151 = pneg %p35
      %p152 = pneg %p32
      %p153 = pneg %p56
      %p154 = pneg %p53
      %p155 = pneg %p77
      %p156 = pneg %p74
      %p157 = pneg %p103
      %p158 = pneg %p100
      %s159 = smul.u32 16, %s14
      %p160 = scmp.lt.s32.totalorder %s159, 31
      %s161 = scalar_select %p160, %s159, 31
      %s162 = smul.addr %s161, 8
      %s163 = scalar_lea.vmem %s3, %s162
      %s164 = smul.u32 16, %s14
      %p165 = scmp.lt.s32.totalorder %s164, 31
      %s166 = scalar_select %p165, %s164, 31
      %s167 = smul.addr %s166, 8
      %s168 = smul.addr %s167, 4
      %s169 = scalar_lea.vmem %s0, %s168
      %s170 = smul.u32 16, %s14
      %s171 = smul.u32 16, %s14
      %p172 = scmp.lt.s32.totalorder %s171, 31
      %s173 = scalar_select %p172, %s171, 31
      %s174 = smul.addr %s173, 8
      %s175 = scalar_lea.vmem %s3, %s174
      %s176 = smul.u32 16, %s14
      %v177 = vld [vmem:[%s169] sm:$0xff]
      %v178 = vld [vmem:[%s169 + $0x8] sm:$0xff]
      %v179 = vld [vmem:[%s169 + $0x10] sm:$0xff]
      %v180 = vld [vmem:[%s169 + $0x18] sm:$0xff]
      %v181 = vld [vmem:[%s169 + $0x20] sm:$0xff]
      %v182 = vld [vmem:[%s169 + $0x28] sm:$0xff]
      %v183 = vld [vmem:[%s169 + $0x30] sm:$0xff]
      %v184 = vld [vmem:[%s169 + $0x38] sm:$0xff]
      %v185 = vld [vmem:[%s169 + $0x40] sm:$0xff]
      %v186 = vld [vmem:[%s169 + $0x48] sm:$0xff]
      %v187 = vld [vmem:[%s169 + $0x50] sm:$0xff]
      %v188 = vld [vmem:[%s169 + $0x58] sm:$0xff]
      %v189 = vld [vmem:[%s169 + $0x60] sm:$0xff]
      %v190 = vld [vmem:[%s169 + $0x68] sm:$0xff]
      %v191 = vld [vmem:[%s169 + $0x70] sm:$0xff]
      %v192 = vld [vmem:[%s169 + $0x78] sm:$0xff]
      %v193 = vld [vmem:[%s169 + $0x80] sm:$0xff]
      %v194 = vld [vmem:[%s169 + $0x88] sm:$0xff]
      %v195 = vld [vmem:[%s169 + $0x90] sm:$0xff]
      %v196 = vld [vmem:[%s169 + $0x98] sm:$0xff]
      %v197 = vld [vmem:[%s169 + $0xa0] sm:$0xff]
      %v198 = vld [vmem:[%s169 + $0xa8] sm:$0xff]
      %v199 = vld [vmem:[%s169 + $0xb0] sm:$0xff]
      %v200 = vld [vmem:[%s169 + $0xb8] sm:$0xff]
      %v201 = vld [vmem:[%s169 + $0xc0] sm:$0xff]
      %v202 = vld [vmem:[%s169 + $0xc8] sm:$0xff]
      %v203 = vld [vmem:[%s169 + $0xd0] sm:$0xff]
      %v204 = vld [vmem:[%s169 + $0xd8] sm:$0xff]
      %v205 = vld [vmem:[%s169 + $0xe0] sm:$0xff]
      %v206 = vld [vmem:[%s169 + $0xe8] sm:$0xff]
      %v207 = vld [vmem:[%s169 + $0xf0] sm:$0xff]
      %v208 = vld [vmem:[%s169 + $0xf8] sm:$0xff]
      %v209 = vld [vmem:[%s169 + $0x100] sm:$0xff]
      %v210 = vld [vmem:[%s169 + $0x108] sm:$0xff]
      %v211 = vld [vmem:[%s169 + $0x110] sm:$0xff]
      %v212 = vld [vmem:[%s169 + $0x118] sm:$0xff]
      %v213 = vld [vmem:[%s169 + $0x120] sm:$0xff]
      %v214 = vld [vmem:[%s169 + $0x128] sm:$0xff]
      %v215 = vld [vmem:[%s169 + $0x130] sm:$0xff]
      %v216 = vld [vmem:[%s169 + $0x138] sm:$0xff]
      %v217 = vld [vmem:[%s169 + $0x140] sm:$0xff]
      %v218 = vld [vmem:[%s169 + $0x148] sm:$0xff]
      %v219 = vld [vmem:[%s169 + $0x150] sm:$0xff]
      %v220 = vld [vmem:[%s169 + $0x158] sm:$0xff]
      %v221 = vld [vmem:[%s169 + $0x160] sm:$0xff]
      %v222 = vld [vmem:[%s169 + $0x168] sm:$0xff]
      %v223 = vld [vmem:[%s169 + $0x170] sm:$0xff]
      %v224 = vld [vmem:[%s169 + $0x178] sm:$0xff]
      %v225 = vld [vmem:[%s169 + $0x180] sm:$0xff]
      %v226 = vld [vmem:[%s169 + $0x188] sm:$0xff]
      %v227 = vld [vmem:[%s169 + $0x190] sm:$0xff]
      %v228 = vld [vmem:[%s169 + $0x198] sm:$0xff]
      %v229 = vld [vmem:[%s169 + $0x1a0] sm:$0xff]
      %v230 = vld [vmem:[%s169 + $0x1a8] sm:$0xff]
      %v231 = vld [vmem:[%s169 + $0x1b0] sm:$0xff]
      %v232 = vld [vmem:[%s169 + $0x1b8] sm:$0xff]
      %v233 = vld [vmem:[%s169 + $0x1c0] sm:$0xff]
      %v234 = vld [vmem:[%s169 + $0x1c8] sm:$0xff]
      %v235 = vld [vmem:[%s169 + $0x1d0] sm:$0xff]
      %v236 = vld [vmem:[%s169 + $0x1d8] sm:$0xff]
      %v237 = vld [vmem:[%s169 + $0x1e0] sm:$0xff]
      %v238 = vld [vmem:[%s169 + $0x1e8] sm:$0xff]
      %v239 = vld [vmem:[%s169 + $0x1f0] sm:$0xff]
      %v240 = vld [vmem:[%s169 + $0x1f8] sm:$0xff]
      %v241 = vld [vmem:[%s1] sm:$0xf]
      %v242 = vld [vmem:[%s1 + $0x4] sm:$0xf]
      %v243 = vld [vmem:[%s1 + $0x8] sm:$0xf]
      %v244 = vld [vmem:[%s1 + $0xc] sm:$0xf]
      %v245 = vld [vmem:[%s1 + $0x10] sm:$0xf]
      %v246 = vld [vmem:[%s1 + $0x14] sm:$0xf]
      %v247 = vld [vmem:[%s1 + $0x18] sm:$0xf]
      %v248 = vld [vmem:[%s1 + $0x1c] sm:$0xf]
      %v249 = vld [vmem:[%s1 + $0x20] sm:$0xf]
      %v250 = vld [vmem:[%s1 + $0x24] sm:$0xf]
      %v251 = vld [vmem:[%s1 + $0x28] sm:$0xf]
      %v252 = vld [vmem:[%s1 + $0x2c] sm:$0xf]
      %v253 = vld [vmem:[%s1 + $0x30] sm:$0xf]
      %v254 = vld [vmem:[%s1 + $0x34] sm:$0xf]
      %v255 = vld [vmem:[%s1 + $0x38] sm:$0xf]
      %v256 = vld [vmem:[%s1 + $0x3c] sm:$0xf]
      %v257 = vld [vmem:[%s1 + $0x40] sm:$0xf]
      %v258 = vld [vmem:[%s1 + $0x44] sm:$0xf]
      %v259 = vld [vmem:[%s1 + $0x48] sm:$0xf]
      %v260 = vld [vmem:[%s1 + $0x4c] sm:$0xf]
      %v261 = vld [vmem:[%s1 + $0x50] sm:$0xf]
      %v262 = vld [vmem:[%s1 + $0x54] sm:$0xf]
      %v263 = vld [vmem:[%s1 + $0x58] sm:$0xf]
      %v264 = vld [vmem:[%s1 + $0x5c] sm:$0xf]
      %v265 = vld [vmem:[%s1 + $0x60] sm:$0xf]
      %v266 = vld [vmem:[%s1 + $0x64] sm:$0xf]
      %v267 = vld [vmem:[%s1 + $0x68] sm:$0xf]
      %v268 = vld [vmem:[%s1 + $0x6c] sm:$0xf]
      %v269 = vld [vmem:[%s1 + $0x70] sm:$0xf]
      %v270 = vld [vmem:[%s1 + $0x74] sm:$0xf]
      %v271 = vld [vmem:[%s1 + $0x78] sm:$0xf]
      %v272 = vld [vmem:[%s1 + $0x7c] sm:$0xf]
      %v273 = vld [vmem:[%s1 + $0x80] sm:$0xf]
      %v274 = vld [vmem:[%s1 + $0x84] sm:$0xf]
      %v275 = vld [vmem:[%s1 + $0x88] sm:$0xf]
      %v276 = vld [vmem:[%s1 + $0x8c] sm:$0xf]
      %v277 = vld [vmem:[%s1 + $0x90] sm:$0xf]
      %v278 = vld [vmem:[%s1 + $0x94] sm:$0xf]
      %v279 = vld [vmem:[%s1 + $0x98] sm:$0xf]
      %v280 = vld [vmem:[%s1 + $0x9c] sm:$0xf]
      %v281 = vld [vmem:[%s1 + $0xa0] sm:$0xf]
      %v282 = vld [vmem:[%s1 + $0xa4] sm:$0xf]
      %v283 = vld [vmem:[%s1 + $0xa8] sm:$0xf]
      %v284 = vld [vmem:[%s1 + $0xac] sm:$0xf]
      %v285 = vld [vmem:[%s1 + $0xb0] sm:$0xf]
      %v286 = vld [vmem:[%s1 + $0xb4] sm:$0xf]
      %v287 = vld [vmem:[%s1 + $0xb8] sm:$0xf]
      %v288 = vld [vmem:[%s1 + $0xbc] sm:$0xf]
      %v289 = vld [vmem:[%s1 + $0xc0] sm:$0xf]
      %v290 = vld [vmem:[%s1 + $0xc4] sm:$0xf]
      %v291 = vld [vmem:[%s1 + $0xc8] sm:$0xf]
      %v292 = vld [vmem:[%s1 + $0xcc] sm:$0xf]
      %v293 = vld [vmem:[%s1 + $0xd0] sm:$0xf]
      %v294 = vld [vmem:[%s1 + $0xd4] sm:$0xf]
      %v295 = vld [vmem:[%s1 + $0xd8] sm:$0xf]
      %v296 = vld [vmem:[%s1 + $0xdc] sm:$0xf]
      %v297 = vld [vmem:[%s1 + $0xe0] sm:$0xf]
      %v298 = vld [vmem:[%s1 + $0xe4] sm:$0xf]
      %v299 = vld [vmem:[%s1 + $0xe8] sm:$0xf]
      %v300 = vld [vmem:[%s1 + $0xec] sm:$0xf]
      %v301 = vld [vmem:[%s1 + $0xf0] sm:$0xf]
      %v302 = vld [vmem:[%s1 + $0xf4] sm:$0xf]
      %v303 = vld [vmem:[%s1 + $0xf8] sm:$0xf]
      %v304 = vld [vmem:[%s1 + $0xfc] sm:$0xf]
      %v305 = vld [vmem:[%s1 + $0x100] sm:$0xf]
      %v306 = vld [vmem:[%s1 + $0x104] sm:$0xf]
      %v307 = vld [vmem:[%s1 + $0x108] sm:$0xf]
      %v308 = vld [vmem:[%s1 + $0x10c] sm:$0xf]
      %v309 = vld [vmem:[%s1 + $0x110] sm:$0xf]
      %v310 = vld [vmem:[%s1 + $0x114] sm:$0xf]
      %v311 = vld [vmem:[%s1 + $0x118] sm:$0xf]
      %v312 = vld [vmem:[%s1 + $0x11c] sm:$0xf]
      %v313 = vld [vmem:[%s1 + $0x120] sm:$0xf]
      %v314 = vld [vmem:[%s1 + $0x124] sm:$0xf]
      %v315 = vld [vmem:[%s1 + $0x128] sm:$0xf]
      %v316 = vld [vmem:[%s1 + $0x12c] sm:$0xf]
      %v317 = vld [vmem:[%s1 + $0x130] sm:$0xf]
      %v318 = vld [vmem:[%s1 + $0x134] sm:$0xf]
      %v319 = vld [vmem:[%s1 + $0x138] sm:$0xf]
      %v320 = vld [vmem:[%s1 + $0x13c] sm:$0xf]
      %v321 = vld [vmem:[%s1 + $0x140] sm:$0xf]
      %v322 = vld [vmem:[%s1 + $0x144] sm:$0xf]
      %v323 = vld [vmem:[%s1 + $0x148] sm:$0xf]
      %v324 = vld [vmem:[%s1 + $0x14c] sm:$0xf]
      %v325 = vld [vmem:[%s1 + $0x150] sm:$0xf]
      %v326 = vld [vmem:[%s1 + $0x154] sm:$0xf]
      %v327 = vld [vmem:[%s1 + $0x158] sm:$0xf]
      %v328 = vld [vmem:[%s1 + $0x15c] sm:$0xf]
      %v329 = vld [vmem:[%s1 + $0x160] sm:$0xf]
      %v330 = vld [vmem:[%s1 + $0x164] sm:$0xf]
      %v331 = vld [vmem:[%s1 + $0x168] sm:$0xf]
      %v332 = vld [vmem:[%s1 + $0x16c] sm:$0xf]
      %v333 = vld [vmem:[%s1 + $0x170] sm:$0xf]
      %v334 = vld [vmem:[%s1 + $0x174] sm:$0xf]
      %v335 = vld [vmem:[%s1 + $0x178] sm:$0xf]
      %v336 = vld [vmem:[%s1 + $0x17c] sm:$0xf]
      %v337 = vld [vmem:[%s1 + $0x180] sm:$0xf]
      %v338 = vld [vmem:[%s1 + $0x184] sm:$0xf]
      %v339 = vld [vmem:[%s1 + $0x188] sm:$0xf]
      %v340 = vld [vmem:[%s1 + $0x18c] sm:$0xf]
      %v341 = vld [vmem:[%s1 + $0x190] sm:$0xf]
      %v342 = vld [vmem:[%s1 + $0x194] sm:$0xf]
      %v343 = vld [vmem:[%s1 + $0x198] sm:$0xf]
      %v344 = vld [vmem:[%s1 + $0x19c] sm:$0xf]
      %v345 = vld [vmem:[%s1 + $0x1a0] sm:$0xf]
      %v346 = vld [vmem:[%s1 + $0x1a4] sm:$0xf]
      %v347 = vld [vmem:[%s1 + $0x1a8] sm:$0xf]
      %v348 = vld [vmem:[%s1 + $0x1ac] sm:$0xf]
      %v349 = vld [vmem:[%s1 + $0x1b0] sm:$0xf]
      %v350 = vld [vmem:[%s1 + $0x1b4] sm:$0xf]
      %v351 = vld [vmem:[%s1 + $0x1b8] sm:$0xf]
      %v352 = vld [vmem:[%s1 + $0x1bc] sm:$0xf]
      %v353 = vld [vmem:[%s1 + $0x1c0] sm:$0xf]
      %v354 = vld [vmem:[%s1 + $0x1c4] sm:$0xf]
      %v355 = vld [vmem:[%s1 + $0x1c8] sm:$0xf]
      %v356 = vld [vmem:[%s1 + $0x1cc] sm:$0xf]
      %v357 = vld [vmem:[%s1 + $0x1d0] sm:$0xf]
      %v358 = vld [vmem:[%s1 + $0x1d4] sm:$0xf]
      %v359 = vld [vmem:[%s1 + $0x1d8] sm:$0xf]
      %v360 = vld [vmem:[%s1 + $0x1dc] sm:$0xf]
      %v361 = vld [vmem:[%s1 + $0x1e0] sm:$0xf]
      %v362 = vld [vmem:[%s1 + $0x1e4] sm:$0xf]
      %v363 = vld [vmem:[%s1 + $0x1e8] sm:$0xf]
      %v364 = vld [vmem:[%s1 + $0x1ec] sm:$0xf]
      %v365 = vld [vmem:[%s1 + $0x1f0] sm:$0xf]
      %v366 = vld [vmem:[%s1 + $0x1f4] sm:$0xf]
      %v367 = vld [vmem:[%s1 + $0x1f8] sm:$0xf]
      %v368 = vld [vmem:[%s1 + $0x1fc] sm:$0xf]
      %v369 = vld [vmem:[%s2] sm:$0x1]
      %v371 = vperm.slane %v369, 0
      %v437 = vunpack.c.l.b16 %v177
      %v438 = vunpack.c.h.b16 %v177
      %v439 = vunpack.c.l.b16 %v178
      %v440 = vunpack.c.h.b16 %v178
      %v441 = vunpack.c.l.b16 %v179
      %v442 = vunpack.c.h.b16 %v179
      %v443 = vunpack.c.l.b16 %v180
      %v444 = vunpack.c.h.b16 %v180
      %v445 = vunpack.c.l.b16 %v181
      %v446 = vunpack.c.h.b16 %v181
      %v447 = vunpack.c.l.b16 %v182
      %v448 = vunpack.c.h.b16 %v182
      %v449 = vunpack.c.l.b16 %v183
      %v450 = vunpack.c.h.b16 %v183
      %v451 = vunpack.c.l.b16 %v184
      %v452 = vunpack.c.h.b16 %v184
      %v453 = vunpack.c.l.b16 %v185
      %v454 = vunpack.c.h.b16 %v185
      %v455 = vunpack.c.l.b16 %v186
      %v456 = vunpack.c.h.b16 %v186
      %v457 = vunpack.c.l.b16 %v187
      %v458 = vunpack.c.h.b16 %v187
      %v459 = vunpack.c.l.b16 %v188
      %v460 = vunpack.c.h.b16 %v188
      %v461 = vunpack.c.l.b16 %v189
      %v462 = vunpack.c.h.b16 %v189
      %v463 = vunpack.c.l.b16 %v190
      %v464 = vunpack.c.h.b16 %v190
      %v465 = vunpack.c.l.b16 %v191
      %v466 = vunpack.c.h.b16 %v191
      %v467 = vunpack.c.l.b16 %v192
      %v468 = vunpack.c.h.b16 %v192
      %v469 = vunpack.c.l.b16 %v193
      %v470 = vunpack.c.h.b16 %v193
      %v471 = vunpack.c.l.b16 %v194
      %v472 = vunpack.c.h.b16 %v194
      %v473 = vunpack.c.l.b16 %v195
      %v474 = vunpack.c.h.b16 %v195
      %v475 = vunpack.c.l.b16 %v196
      %v476 = vunpack.c.h.b16 %v196
      %v477 = vunpack.c.l.b16 %v197
      %v478 = vunpack.c.h.b16 %v197
      %v479 = vunpack.c.l.b16 %v198
      %v480 = vunpack.c.h.b16 %v198
      %v481 = vunpack.c.l.b16 %v199
      %v482 = vunpack.c.h.b16 %v199
      %v483 = vunpack.c.l.b16 %v200
      %v484 = vunpack.c.h.b16 %v200
      %v485 = vunpack.c.l.b16 %v201
      %v486 = vunpack.c.h.b16 %v201
      %v487 = vunpack.c.l.b16 %v202
      %v488 = vunpack.c.h.b16 %v202
      %v489 = vunpack.c.l.b16 %v203
      %v490 = vunpack.c.h.b16 %v203
      %v491 = vunpack.c.l.b16 %v204
      %v492 = vunpack.c.h.b16 %v204
      %v493 = vunpack.c.l.b16 %v205
      %v494 = vunpack.c.h.b16 %v205
      %v495 = vunpack.c.l.b16 %v206
      %v496 = vunpack.c.h.b16 %v206
      %v497 = vunpack.c.l.b16 %v207
      %v498 = vunpack.c.h.b16 %v207
      %v499 = vunpack.c.l.b16 %v208
      %v500 = vunpack.c.h.b16 %v208
      %v501 = vunpack.c.l.b16 %v209
      %v502 = vunpack.c.h.b16 %v209
      %v503 = vunpack.c.l.b16 %v210
      %v504 = vunpack.c.h.b16 %v210
      %v505 = vunpack.c.l.b16 %v211
      %v506 = vunpack.c.h.b16 %v211
      %v507 = vunpack.c.l.b16 %v212
      %v508 = vunpack.c.h.b16 %v212
      %v509 = vunpack.c.l.b16 %v213
      %v510 = vunpack.c.h.b16 %v213
      %v511 = vunpack.c.l.b16 %v214
      %v512 = vunpack.c.h.b16 %v214
      %v513 = vunpack.c.l.b16 %v215
      %v514 = vunpack.c.h.b16 %v215
      %v515 = vunpack.c.l.b16 %v216
      %v516 = vunpack.c.h.b16 %v216
      %v517 = vunpack.c.l.b16 %v217
      %v518 = vunpack.c.h.b16 %v217
      %v519 = vunpack.c.l.b16 %v218
      %v520 = vunpack.c.h.b16 %v218
      %v521 = vunpack.c.l.b16 %v219
      %v522 = vunpack.c.h.b16 %v219
      %v523 = vunpack.c.l.b16 %v220
      %v524 = vunpack.c.h.b16 %v220
      %v525 = vunpack.c.l.b16 %v221
      %v526 = vunpack.c.h.b16 %v221
      %v527 = vunpack.c.l.b16 %v222
      %v528 = vunpack.c.h.b16 %v222
      %v529 = vunpack.c.l.b16 %v223
      %v530 = vunpack.c.h.b16 %v223
      %v531 = vunpack.c.l.b16 %v224
      %v532 = vunpack.c.h.b16 %v224
      %v533 = vunpack.c.l.b16 %v225
      %v534 = vunpack.c.h.b16 %v225
      %v535 = vunpack.c.l.b16 %v226
      %v536 = vunpack.c.h.b16 %v226
      %v537 = vunpack.c.l.b16 %v227
      %v538 = vunpack.c.h.b16 %v227
      %v539 = vunpack.c.l.b16 %v228
      %v540 = vunpack.c.h.b16 %v228
      %v541 = vunpack.c.l.b16 %v229
      %v542 = vunpack.c.h.b16 %v229
      %v543 = vunpack.c.l.b16 %v230
      %v544 = vunpack.c.h.b16 %v230
      %v545 = vunpack.c.l.b16 %v231
      %v546 = vunpack.c.h.b16 %v231
      %v547 = vunpack.c.l.b16 %v232
      %v548 = vunpack.c.h.b16 %v232
      %v549 = vunpack.c.l.b16 %v233
      %v550 = vunpack.c.h.b16 %v233
      %v551 = vunpack.c.l.b16 %v234
      %v552 = vunpack.c.h.b16 %v234
      %v553 = vunpack.c.l.b16 %v235
      %v554 = vunpack.c.h.b16 %v235
      %v555 = vunpack.c.l.b16 %v236
      %v556 = vunpack.c.h.b16 %v236
      %v557 = vunpack.c.l.b16 %v237
      %v558 = vunpack.c.h.b16 %v237
      %v559 = vunpack.c.l.b16 %v238
      %v560 = vunpack.c.h.b16 %v238
      %v561 = vunpack.c.l.b16 %v239
      %v562 = vunpack.c.h.b16 %v239
      %v563 = vunpack.c.l.b16 %v240
      %v564 = vunpack.c.h.b16 %v240
      %v565 = vpack.c.b16 %v445, %v437
      %v566 = vpack.c.b16 %v446, %v438
      %v567 = vpack.c.b16 %v447, %v439
      %v568 = vpack.c.b16 %v448, %v440
      %v569 = vpack.c.b16 %v449, %v441
      %v570 = vpack.c.b16 %v450, %v442
      %v571 = vpack.c.b16 %v451, %v443
      %v572 = vpack.c.b16 %v452, %v444
      %v573 = vpack.c.b16 %v461, %v453
      %v574 = vpack.c.b16 %v462, %v454
      %v575 = vpack.c.b16 %v463, %v455
      %v576 = vpack.c.b16 %v464, %v456
      %v577 = vpack.c.b16 %v465, %v457
      %v578 = vpack.c.b16 %v466, %v458
      %v579 = vpack.c.b16 %v467, %v459
      %v580 = vpack.c.b16 %v468, %v460
      %v581 = vpack.c.b16 %v477, %v469
      %v582 = vpack.c.b16 %v478, %v470
      %v583 = vpack.c.b16 %v479, %v471
      %v584 = vpack.c.b16 %v480, %v472
      %v585 = vpack.c.b16 %v481, %v473
      %v586 = vpack.c.b16 %v482, %v474
      %v587 = vpack.c.b16 %v483, %v475
      %v588 = vpack.c.b16 %v484, %v476
      %v589 = vpack.c.b16 %v493, %v485
      %v590 = vpack.c.b16 %v494, %v486
      %v591 = vpack.c.b16 %v495, %v487
      %v592 = vpack.c.b16 %v496, %v488
      %v593 = vpack.c.b16 %v497, %v489
      %v594 = vpack.c.b16 %v498, %v490
      %v595 = vpack.c.b16 %v499, %v491
      %v596 = vpack.c.b16 %v500, %v492
      %v597 = vpack.c.b16 %v509, %v501
      %v598 = vpack.c.b16 %v510, %v502
      %v599 = vpack.c.b16 %v511, %v503
      %v600 = vpack.c.b16 %v512, %v504
      %v601 = vpack.c.b16 %v513, %v505
      %v602 = vpack.c.b16 %v514, %v506
      %v603 = vpack.c.b16 %v515, %v507
      %v604 = vpack.c.b16 %v516, %v508
      %v605 = vpack.c.b16 %v525, %v517
      %v606 = vpack.c.b16 %v526, %v518
      %v607 = vpack.c.b16 %v527, %v519
      %v608 = vpack.c.b16 %v528, %v520
      %v609 = vpack.c.b16 %v529, %v521
      %v610 = vpack.c.b16 %v530, %v522
      %v611 = vpack.c.b16 %v531, %v523
      %v612 = vpack.c.b16 %v532, %v524
      %v613 = vpack.c.b16 %v541, %v533
      %v614 = vpack.c.b16 %v542, %v534
      %v615 = vpack.c.b16 %v543, %v535
      %v616 = vpack.c.b16 %v544, %v536
      %v617 = vpack.c.b16 %v545, %v537
      %v618 = vpack.c.b16 %v546, %v538
      %v619 = vpack.c.b16 %v547, %v539
      %v620 = vpack.c.b16 %v548, %v540
      %v621 = vpack.c.b16 %v557, %v549
      %v622 = vpack.c.b16 %v558, %v550
      %v623 = vpack.c.b16 %v559, %v551
      %v624 = vpack.c.b16 %v560, %v552
      %v625 = vpack.c.b16 %v561, %v553
      %v626 = vpack.c.b16 %v562, %v554
      %v627 = vpack.c.b16 %v563, %v555
      %v628 = vpack.c.b16 %v564, %v556
      %v821 = vunpack.c.l.b16 %v241
      %v822 = vunpack.c.l.b16 %v242
      %v823 = vunpack.c.l.b16 %v243
      %v824 = vunpack.c.l.b16 %v244
      %v825 = vunpack.c.l.b16 %v245
      %v826 = vunpack.c.l.b16 %v246
      %v827 = vunpack.c.l.b16 %v247
      %v828 = vunpack.c.l.b16 %v248
      %v829 = vunpack.c.l.b16 %v249
      %v830 = vunpack.c.l.b16 %v250
      %v831 = vunpack.c.l.b16 %v251
      %v832 = vunpack.c.l.b16 %v252
      %v833 = vunpack.c.l.b16 %v253
      %v834 = vunpack.c.l.b16 %v254
      %v835 = vunpack.c.l.b16 %v255
      %v836 = vunpack.c.l.b16 %v256
      %v837 = vunpack.c.l.b16 %v257
      %v838 = vunpack.c.l.b16 %v258
      %v839 = vunpack.c.l.b16 %v259
      %v840 = vunpack.c.l.b16 %v260
      %v841 = vunpack.c.l.b16 %v261
      %v842 = vunpack.c.l.b16 %v262
      %v843 = vunpack.c.l.b16 %v263
      %v844 = vunpack.c.l.b16 %v264
      %v845 = vunpack.c.l.b16 %v265
      %v846 = vunpack.c.l.b16 %v266
      %v847 = vunpack.c.l.b16 %v267
      %v848 = vunpack.c.l.b16 %v268
      %v849 = vunpack.c.l.b16 %v269
      %v850 = vunpack.c.l.b16 %v270
      %v851 = vunpack.c.l.b16 %v271
      %v852 = vunpack.c.l.b16 %v272
      %v853 = vunpack.c.l.b16 %v273
      %v854 = vunpack.c.l.b16 %v274
      %v855 = vunpack.c.l.b16 %v275
      %v856 = vunpack.c.l.b16 %v276
      %v857 = vunpack.c.l.b16 %v277
      %v858 = vunpack.c.l.b16 %v278
      %v859 = vunpack.c.l.b16 %v279
      %v860 = vunpack.c.l.b16 %v280
      %v861 = vunpack.c.l.b16 %v281
      %v862 = vunpack.c.l.b16 %v282
      %v863 = vunpack.c.l.b16 %v283
      %v864 = vunpack.c.l.b16 %v284
      %v865 = vunpack.c.l.b16 %v285
      %v866 = vunpack.c.l.b16 %v286
      %v867 = vunpack.c.l.b16 %v287
      %v868 = vunpack.c.l.b16 %v288
      %v869 = vunpack.c.l.b16 %v289
      %v870 = vunpack.c.l.b16 %v290
      %v871 = vunpack.c.l.b16 %v291
      %v872 = vunpack.c.l.b16 %v292
      %v873 = vunpack.c.l.b16 %v293
      %v874 = vunpack.c.l.b16 %v294
      %v875 = vunpack.c.l.b16 %v295
      %v876 = vunpack.c.l.b16 %v296
      %v877 = vunpack.c.l.b16 %v297
      %v878 = vunpack.c.l.b16 %v298
      %v879 = vunpack.c.l.b16 %v299
      %v880 = vunpack.c.l.b16 %v300
      %v881 = vunpack.c.l.b16 %v301
      %v882 = vunpack.c.l.b16 %v302
      %v883 = vunpack.c.l.b16 %v303
      %v884 = vunpack.c.l.b16 %v304
      %v885 = vunpack.c.l.b16 %v305
      %v886 = vunpack.c.l.b16 %v306
      %v887 = vunpack.c.l.b16 %v307
      %v888 = vunpack.c.l.b16 %v308
      %v889 = vunpack.c.l.b16 %v309
      %v890 = vunpack.c.l.b16 %v310
      %v891 = vunpack.c.l.b16 %v311
      %v892 = vunpack.c.l.b16 %v312
      %v893 = vunpack.c.l.b16 %v313
      %v894 = vunpack.c.l.b16 %v314
      %v895 = vunpack.c.l.b16 %v315
      %v896 = vunpack.c.l.b16 %v316
      %v897 = vunpack.c.l.b16 %v317
      %v898 = vunpack.c.l.b16 %v318
      %v899 = vunpack.c.l.b16 %v319
      %v900 = vunpack.c.l.b16 %v320
      %v901 = vunpack.c.l.b16 %v321
      %v902 = vunpack.c.l.b16 %v322
      %v903 = vunpack.c.l.b16 %v323
      %v904 = vunpack.c.l.b16 %v324
      %v905 = vunpack.c.l.b16 %v325
      %v906 = vunpack.c.l.b16 %v326
      %v907 = vunpack.c.l.b16 %v327
      %v908 = vunpack.c.l.b16 %v328
      %v909 = vunpack.c.l.b16 %v329
      %v910 = vunpack.c.l.b16 %v330
      %v911 = vunpack.c.l.b16 %v331
      %v912 = vunpack.c.l.b16 %v332
      %v913 = vunpack.c.l.b16 %v333
      %v914 = vunpack.c.l.b16 %v334
      %v915 = vunpack.c.l.b16 %v335
      %v916 = vunpack.c.l.b16 %v336
      %v917 = vunpack.c.l.b16 %v337
      %v918 = vunpack.c.l.b16 %v338
      %v919 = vunpack.c.l.b16 %v339
      %v920 = vunpack.c.l.b16 %v340
      %v921 = vunpack.c.l.b16 %v341
      %v922 = vunpack.c.l.b16 %v342
      %v923 = vunpack.c.l.b16 %v343
      %v924 = vunpack.c.l.b16 %v344
      %v925 = vunpack.c.l.b16 %v345
      %v926 = vunpack.c.l.b16 %v346
      %v927 = vunpack.c.l.b16 %v347
      %v928 = vunpack.c.l.b16 %v348
      %v929 = vunpack.c.l.b16 %v349
      %v930 = vunpack.c.l.b16 %v350
      %v931 = vunpack.c.l.b16 %v351
      %v932 = vunpack.c.l.b16 %v352
      %v933 = vunpack.c.l.b16 %v353
      %v934 = vunpack.c.l.b16 %v354
      %v935 = vunpack.c.l.b16 %v355
      %v936 = vunpack.c.l.b16 %v356
      %v937 = vunpack.c.l.b16 %v357
      %v938 = vunpack.c.l.b16 %v358
      %v939 = vunpack.c.l.b16 %v359
      %v940 = vunpack.c.l.b16 %v360
      %v941 = vunpack.c.l.b16 %v361
      %v942 = vunpack.c.l.b16 %v362
      %v943 = vunpack.c.l.b16 %v363
      %v944 = vunpack.c.l.b16 %v364
      %v945 = vunpack.c.l.b16 %v365
      %v946 = vunpack.c.l.b16 %v366
      %v947 = vunpack.c.l.b16 %v367
      %v948 = vunpack.c.l.b16 %v368
      %v949 = vpack.c.b16 %v822, %v821
      %v950 = vpack.c.b16 %v824, %v823
      %v951 = vpack.c.b16 %v826, %v825
      %v952 = vpack.c.b16 %v828, %v827
      %v953 = vpack.c.b16 %v830, %v829
      %v954 = vpack.c.b16 %v832, %v831
      %v955 = vpack.c.b16 %v834, %v833
      %v956 = vpack.c.b16 %v836, %v835
      %v957 = vpack.c.b16 %v838, %v837
      %v958 = vpack.c.b16 %v840, %v839
      %v959 = vpack.c.b16 %v842, %v841
      %v960 = vpack.c.b16 %v844, %v843
      %v961 = vpack.c.b16 %v846, %v845
      %v962 = vpack.c.b16 %v848, %v847
      %v963 = vpack.c.b16 %v850, %v849
      %v964 = vpack.c.b16 %v852, %v851
      %v965 = vpack.c.b16 %v854, %v853
      %v966 = vpack.c.b16 %v856, %v855
      %v967 = vpack.c.b16 %v858, %v857
      %v968 = vpack.c.b16 %v860, %v859
      %v969 = vpack.c.b16 %v862, %v861
      %v970 = vpack.c.b16 %v864, %v863
      %v971 = vpack.c.b16 %v866, %v865
      %v972 = vpack.c.b16 %v868, %v867
      %v973 = vpack.c.b16 %v870, %v869
      %v974 = vpack.c.b16 %v872, %v871
      %v975 = vpack.c.b16 %v874, %v873
      %v976 = vpack.c.b16 %v876, %v875
      %v977 = vpack.c.b16 %v878, %v877
      %v978 = vpack.c.b16 %v880, %v879
      %v979 = vpack.c.b16 %v882, %v881
      %v980 = vpack.c.b16 %v884, %v883
      %v981 = vpack.c.b16 %v886, %v885
      %v982 = vpack.c.b16 %v888, %v887
      %v983 = vpack.c.b16 %v890, %v889
      %v984 = vpack.c.b16 %v892, %v891
      %v985 = vpack.c.b16 %v894, %v893
      %v986 = vpack.c.b16 %v896, %v895
      %v987 = vpack.c.b16 %v898, %v897
      %v988 = vpack.c.b16 %v900, %v899
      %v989 = vpack.c.b16 %v902, %v901
      %v990 = vpack.c.b16 %v904, %v903
      %v991 = vpack.c.b16 %v906, %v905
      %v992 = vpack.c.b16 %v908, %v907
      %v993 = vpack.c.b16 %v910, %v909
      %v994 = vpack.c.b16 %v912, %v911
      %v995 = vpack.c.b16 %v914, %v913
      %v996 = vpack.c.b16 %v916, %v915
      %v997 = vpack.c.b16 %v918, %v917
      %v998 = vpack.c.b16 %v920, %v919
      %v999 = vpack.c.b16 %v922, %v921
      %v1000 = vpack.c.b16 %v924, %v923
      %v1001 = vpack.c.b16 %v926, %v925
      %v1002 = vpack.c.b16 %v928, %v927
      %v1003 = vpack.c.b16 %v930, %v929
      %v1004 = vpack.c.b16 %v932, %v931
      %v1005 = vpack.c.b16 %v934, %v933
      %v1006 = vpack.c.b16 %v936, %v935
      %v1007 = vpack.c.b16 %v938, %v937
      %v1008 = vpack.c.b16 %v940, %v939
      %v1009 = vpack.c.b16 %v942, %v941
      %v1010 = vpack.c.b16 %v944, %v943
      %v1011 = vpack.c.b16 %v946, %v945
      %v1012 = vpack.c.b16 %v948, %v947
      %1077 = vmatpush.bf16.msra.mxu0 %v956
      %1078 = vmatpush.bf16.msra.mxu0 %v955
      %1079 = vmatpush.bf16.msra.mxu0 %v954
      %1080 = vmatpush.bf16.msra.mxu0 %v953
      %1081 = vmatpush.bf16.msra.mxu0 %v952
      %1082 = vmatpush.bf16.msra.mxu0 %v951
      %1083 = vmatpush.bf16.msra.mxu0 %v950
      %1084 = vmatpush.bf16.msra.mxu0 %v949
      %1085 = vmatmul.bf16.gmra.mxu0 %v565
      %v1086 = vpop.f32.mrf.mxu0
      %v1087 = vadd.f32 %v371, %v1086
      %v1088 = vpop.f32.mrf.mxu0
      %v1089 = vadd.f32 %v371, %v1088
      %1090 = vmatmul.bf16.gmra.mxu0 %v573
      %v1091 = vpop.f32.mrf.mxu0
      %v1092 = vadd.f32 %v371, %v1091
      %v1093 = vpop.f32.mrf.mxu0
      %v1094 = vadd.f32 %v371, %v1093
      %1095 = vmatmul.bf16.gmra.mxu0 %v581
      %v1096 = vpop.f32.mrf.mxu0
      %v1097 = vadd.f32 %v371, %v1096
      %v1098 = vpop.f32.mrf.mxu0
      %v1099 = vadd.f32 %v371, %v1098
      %1100 = vmatmul.bf16.gmra.mxu0 %v589
      %v1101 = vpop.f32.mrf.mxu0
      %v1102 = vadd.f32 %v371, %v1101
      %v1103 = vpop.f32.mrf.mxu0
      %v1104 = vadd.f32 %v371, %v1103
      %1105 = vmatmul.bf16.gmra.mxu0 %v597
      %v1106 = vpop.f32.mrf.mxu0
      %v1107 = vadd.f32 %v371, %v1106
      %v1108 = vpop.f32.mrf.mxu0
      %v1109 = vadd.f32 %v371, %v1108
      %1110 = vmatmul.bf16.gmra.mxu0 %v605
      %v1111 = vpop.f32.mrf.mxu0
      %v1112 = vadd.f32 %v371, %v1111
      %v1113 = vpop.f32.mrf.mxu0
      %v1114 = vadd.f32 %v371, %v1113
      %1115 = vmatmul.bf16.gmra.mxu0 %v613
      %v1116 = vpop.f32.mrf.mxu0
      %v1117 = vadd.f32 %v371, %v1116
      %v1118 = vpop.f32.mrf.mxu0
      %v1119 = vadd.f32 %v371, %v1118
      %1120 = vmatmul.bf16.gmra.mxu0 %v621
      %v1121 = vpop.f32.mrf.mxu0
      %v1122 = vadd.f32 %v371, %v1121
      %v1123 = vpop.f32.mrf.mxu0
      %v1124 = vadd.f32 %v371, %v1123
      %1125 = vdwg.mxu0
      %1126 = vmatpush.bf16.msra.mxu0 %v964
      %1127 = vmatpush.bf16.msra.mxu0 %v963
      %1128 = vmatpush.bf16.msra.mxu0 %v962
      %1129 = vmatpush.bf16.msra.mxu0 %v961
      %1130 = vmatpush.bf16.msra.mxu0 %v960
      %1131 = vmatpush.bf16.msra.mxu0 %v959
      %1132 = vmatpush.bf16.msra.mxu0 %v958
      %1133 = vmatpush.bf16.msra.mxu0 %v957
      %1134 = vmatmul.bf16.gmra.mxu0 %v566
      %v1135 = vpop.f32.mrf.mxu0
      %v1136 = vadd.f32 %v1087, %v1135
      %v1137 = vpop.f32.mrf.mxu0
      %v1138 = vadd.f32 %v1089, %v1137
      %1139 = vmatmul.bf16.gmra.mxu0 %v574
      %v1140 = vpop.f32.mrf.mxu0
      %v1141 = vadd.f32 %v1092, %v1140
      %v1142 = vpop.f32.mrf.mxu0
      %v1143 = vadd.f32 %v1094, %v1142
      %1144 = vmatmul.bf16.gmra.mxu0 %v582
      %v1145 = vpop.f32.mrf.mxu0
      %v1146 = vadd.f32 %v1097, %v1145
      %v1147 = vpop.f32.mrf.mxu0
      %v1148 = vadd.f32 %v1099, %v1147
      %1149 = vmatmul.bf16.gmra.mxu0 %v590
      %v1150 = vpop.f32.mrf.mxu0
      %v1151 = vadd.f32 %v1102, %v1150
      %v1152 = vpop.f32.mrf.mxu0
      %v1153 = vadd.f32 %v1104, %v1152
      %1154 = vmatmul.bf16.gmra.mxu0 %v598
      %v1155 = vpop.f32.mrf.mxu0
      %v1156 = vadd.f32 %v1107, %v1155
      %v1157 = vpop.f32.mrf.mxu0
      %v1158 = vadd.f32 %v1109, %v1157
      %1159 = vmatmul.bf16.gmra.mxu0 %v606
      %v1160 = vpop.f32.mrf.mxu0
      %v1161 = vadd.f32 %v1112, %v1160
      %v1162 = vpop.f32.mrf.mxu0
      %v1163 = vadd.f32 %v1114, %v1162
      %1164 = vmatmul.bf16.gmra.mxu0 %v614
      %v1165 = vpop.f32.mrf.mxu0
      %v1166 = vadd.f32 %v1117, %v1165
      %v1167 = vpop.f32.mrf.mxu0
      %v1168 = vadd.f32 %v1119, %v1167
      %1169 = vmatmul.bf16.gmra.mxu0 %v622
      %v1170 = vpop.f32.mrf.mxu0
      %v1171 = vadd.f32 %v1122, %v1170
      %v1172 = vpop.f32.mrf.mxu0
      %v1173 = vadd.f32 %v1124, %v1172
      %1174 = vdwg.mxu0
      %1175 = vmatpush.bf16.msra.mxu0 %v972
      %1176 = vmatpush.bf16.msra.mxu0 %v971
      %1177 = vmatpush.bf16.msra.mxu0 %v970
      %1178 = vmatpush.bf16.msra.mxu0 %v969
      %1179 = vmatpush.bf16.msra.mxu0 %v968
      %1180 = vmatpush.bf16.msra.mxu0 %v967
      %1181 = vmatpush.bf16.msra.mxu0 %v966
      %1182 = vmatpush.bf16.msra.mxu0 %v965
      %1183 = vmatmul.bf16.gmra.mxu0 %v567
      %v1184 = vpop.f32.mrf.mxu0
      %v1185 = vadd.f32 %v1136, %v1184
      %v1186 = vpop.f32.mrf.mxu0
      %v1187 = vadd.f32 %v1138, %v1186
      %1188 = vmatmul.bf16.gmra.mxu0 %v575
      %v1189 = vpop.f32.mrf.mxu0
      %v1190 = vadd.f32 %v1141, %v1189
      %v1191 = vpop.f32.mrf.mxu0
      %v1192 = vadd.f32 %v1143, %v1191
      %1193 = vmatmul.bf16.gmra.mxu0 %v583
      %v1194 = vpop.f32.mrf.mxu0
      %v1195 = vadd.f32 %v1146, %v1194
      %v1196 = vpop.f32.mrf.mxu0
      %v1197 = vadd.f32 %v1148, %v1196
      %1198 = vmatmul.bf16.gmra.mxu0 %v591
      %v1199 = vpop.f32.mrf.mxu0
      %v1200 = vadd.f32 %v1151, %v1199
      %v1201 = vpop.f32.mrf.mxu0
      %v1202 = vadd.f32 %v1153, %v1201
      %1203 = vmatmul.bf16.gmra.mxu0 %v599
      %v1204 = vpop.f32.mrf.mxu0
      %v1205 = vadd.f32 %v1156, %v1204
      %v1206 = vpop.f32.mrf.mxu0
      %v1207 = vadd.f32 %v1158, %v1206
      %1208 = vmatmul.bf16.gmra.mxu0 %v607
      %v1209 = vpop.f32.mrf.mxu0
      %v1210 = vadd.f32 %v1161, %v1209
      %v1211 = vpop.f32.mrf.mxu0
      %v1212 = vadd.f32 %v1163, %v1211
      %1213 = vmatmul.bf16.gmra.mxu0 %v615
      %v1214 = vpop.f32.mrf.mxu0
      %v1215 = vadd.f32 %v1166, %v1214
      %v1216 = vpop.f32.mrf.mxu0
      %v1217 = vadd.f32 %v1168, %v1216
      %1218 = vmatmul.bf16.gmra.mxu0 %v623
      %v1219 = vpop.f32.mrf.mxu0
      %v1220 = vadd.f32 %v1171, %v1219
      %v1221 = vpop.f32.mrf.mxu0
      %v1222 = vadd.f32 %v1173, %v1221
      %1223 = vdwg.mxu0
      %1224 = vmatpush.bf16.msra.mxu0 %v980
      %1225 = vmatpush.bf16.msra.mxu0 %v979
      %1226 = vmatpush.bf16.msra.mxu0 %v978
      %1227 = vmatpush.bf16.msra.mxu0 %v977
      %1228 = vmatpush.bf16.msra.mxu0 %v976
      %1229 = vmatpush.bf16.msra.mxu0 %v975
      %1230 = vmatpush.bf16.msra.mxu0 %v974
      %1231 = vmatpush.bf16.msra.mxu0 %v973
      %1232 = vmatmul.bf16.gmra.mxu0 %v568
      %v1233 = vpop.f32.mrf.mxu0
      %v1234 = vadd.f32 %v1185, %v1233
      %v1235 = vpop.f32.mrf.mxu0
      %v1236 = vadd.f32 %v1187, %v1235
      %1237 = vmatmul.bf16.gmra.mxu0 %v576
      %v1238 = vpop.f32.mrf.mxu0
      %v1239 = vadd.f32 %v1190, %v1238
      %v1240 = vpop.f32.mrf.mxu0
      %v1241 = vadd.f32 %v1192, %v1240
      %1242 = vmatmul.bf16.gmra.mxu0 %v584
      %v1243 = vpop.f32.mrf.mxu0
      %v1244 = vadd.f32 %v1195, %v1243
      %v1245 = vpop.f32.mrf.mxu0
      %v1246 = vadd.f32 %v1197, %v1245
      %1247 = vmatmul.bf16.gmra.mxu0 %v592
      %v1248 = vpop.f32.mrf.mxu0
      %v1249 = vadd.f32 %v1200, %v1248
      %v1250 = vpop.f32.mrf.mxu0
      %v1251 = vadd.f32 %v1202, %v1250
      %1252 = vmatmul.bf16.gmra.mxu0 %v600
      %v1253 = vpop.f32.mrf.mxu0
      %v1254 = vadd.f32 %v1205, %v1253
      %v1255 = vpop.f32.mrf.mxu0
      %v1256 = vadd.f32 %v1207, %v1255
      %1257 = vmatmul.bf16.gmra.mxu0 %v608
      %v1258 = vpop.f32.mrf.mxu0
      %v1259 = vadd.f32 %v1210, %v1258
      %v1260 = vpop.f32.mrf.mxu0
      %v1261 = vadd.f32 %v1212, %v1260
      %1262 = vmatmul.bf16.gmra.mxu0 %v616
      %v1263 = vpop.f32.mrf.mxu0
      %v1264 = vadd.f32 %v1215, %v1263
      %v1265 = vpop.f32.mrf.mxu0
      %v1266 = vadd.f32 %v1217, %v1265
      %1267 = vmatmul.bf16.gmra.mxu0 %v624
      %v1268 = vpop.f32.mrf.mxu0
      %v1269 = vadd.f32 %v1220, %v1268
      %v1270 = vpop.f32.mrf.mxu0
      %v1271 = vadd.f32 %v1222, %v1270
      %1272 = vdwg.mxu0
      %1273 = vmatpush.bf16.msra.mxu0 %v988
      %1274 = vmatpush.bf16.msra.mxu0 %v987
      %1275 = vmatpush.bf16.msra.mxu0 %v986
      %1276 = vmatpush.bf16.msra.mxu0 %v985
      %1277 = vmatpush.bf16.msra.mxu0 %v984
      %1278 = vmatpush.bf16.msra.mxu0 %v983
      %1279 = vmatpush.bf16.msra.mxu0 %v982
      %1280 = vmatpush.bf16.msra.mxu0 %v981
      %1281 = vmatmul.bf16.gmra.mxu0 %v569
      %v1282 = vpop.f32.mrf.mxu0
      %v1283 = vadd.f32 %v1234, %v1282
      %v1284 = vpop.f32.mrf.mxu0
      %v1285 = vadd.f32 %v1236, %v1284
      %1286 = vmatmul.bf16.gmra.mxu0 %v577
      %v1287 = vpop.f32.mrf.mxu0
      %v1288 = vadd.f32 %v1239, %v1287
      %v1289 = vpop.f32.mrf.mxu0
      %v1290 = vadd.f32 %v1241, %v1289
      %1291 = vmatmul.bf16.gmra.mxu0 %v585
      %v1292 = vpop.f32.mrf.mxu0
      %v1293 = vadd.f32 %v1244, %v1292
      %v1294 = vpop.f32.mrf.mxu0
      %v1295 = vadd.f32 %v1246, %v1294
      %1296 = vmatmul.bf16.gmra.mxu0 %v593
      %v1297 = vpop.f32.mrf.mxu0
      %v1298 = vadd.f32 %v1249, %v1297
      %v1299 = vpop.f32.mrf.mxu0
      %v1300 = vadd.f32 %v1251, %v1299
      %1301 = vmatmul.bf16.gmra.mxu0 %v601
      %v1302 = vpop.f32.mrf.mxu0
      %v1303 = vadd.f32 %v1254, %v1302
      %v1304 = vpop.f32.mrf.mxu0
      %v1305 = vadd.f32 %v1256, %v1304
      %1306 = vmatmul.bf16.gmra.mxu0 %v609
      %v1307 = vpop.f32.mrf.mxu0
      %v1308 = vadd.f32 %v1259, %v1307
      %v1309 = vpop.f32.mrf.mxu0
      %v1310 = vadd.f32 %v1261, %v1309
      %1311 = vmatmul.bf16.gmra.mxu0 %v617
      %v1312 = vpop.f32.mrf.mxu0
      %v1313 = vadd.f32 %v1264, %v1312
      %v1314 = vpop.f32.mrf.mxu0
      %v1315 = vadd.f32 %v1266, %v1314
      %1316 = vmatmul.bf16.gmra.mxu0 %v625
      %v1317 = vpop.f32.mrf.mxu0
      %v1318 = vadd.f32 %v1269, %v1317
      %v1319 = vpop.f32.mrf.mxu0
      %v1320 = vadd.f32 %v1271, %v1319
      %1321 = vdwg.mxu0
      %1322 = vmatpush.bf16.msra.mxu0 %v996
      %1323 = vmatpush.bf16.msra.mxu0 %v995
      %1324 = vmatpush.bf16.msra.mxu0 %v994
      %1325 = vmatpush.bf16.msra.mxu0 %v993
      %1326 = vmatpush.bf16.msra.mxu0 %v992
      %1327 = vmatpush.bf16.msra.mxu0 %v991
      %1328 = vmatpush.bf16.msra.mxu0 %v990
      %1329 = vmatpush.bf16.msra.mxu0 %v989
      %1330 = vmatmul.bf16.gmra.mxu0 %v570
      %v1331 = vpop.f32.mrf.mxu0
      %v1332 = vadd.f32 %v1283, %v1331
      %v1333 = vpop.f32.mrf.mxu0
      %v1334 = vadd.f32 %v1285, %v1333
      %1335 = vmatmul.bf16.gmra.mxu0 %v578
      %v1336 = vpop.f32.mrf.mxu0
      %v1337 = vadd.f32 %v1288, %v1336
      %v1338 = vpop.f32.mrf.mxu0
      %v1339 = vadd.f32 %v1290, %v1338
      %1340 = vmatmul.bf16.gmra.mxu0 %v586
      %v1341 = vpop.f32.mrf.mxu0
      %v1342 = vadd.f32 %v1293, %v1341
      %v1343 = vpop.f32.mrf.mxu0
      %v1344 = vadd.f32 %v1295, %v1343
      %1345 = vmatmul.bf16.gmra.mxu0 %v594
      %v1346 = vpop.f32.mrf.mxu0
      %v1347 = vadd.f32 %v1298, %v1346
      %v1348 = vpop.f32.mrf.mxu0
      %v1349 = vadd.f32 %v1300, %v1348
      %1350 = vmatmul.bf16.gmra.mxu0 %v602
      %v1351 = vpop.f32.mrf.mxu0
      %v1352 = vadd.f32 %v1303, %v1351
      %v1353 = vpop.f32.mrf.mxu0
      %v1354 = vadd.f32 %v1305, %v1353
      %1355 = vmatmul.bf16.gmra.mxu0 %v610
      %v1356 = vpop.f32.mrf.mxu0
      %v1357 = vadd.f32 %v1308, %v1356
      %v1358 = vpop.f32.mrf.mxu0
      %v1359 = vadd.f32 %v1310, %v1358
      %1360 = vmatmul.bf16.gmra.mxu0 %v618
      %v1361 = vpop.f32.mrf.mxu0
      %v1362 = vadd.f32 %v1313, %v1361
      %v1363 = vpop.f32.mrf.mxu0
      %v1364 = vadd.f32 %v1315, %v1363
      %1365 = vmatmul.bf16.gmra.mxu0 %v626
      %v1366 = vpop.f32.mrf.mxu0
      %v1367 = vadd.f32 %v1318, %v1366
      %v1368 = vpop.f32.mrf.mxu0
      %v1369 = vadd.f32 %v1320, %v1368
      %1370 = vdwg.mxu0
      %1371 = vmatpush.bf16.msra.mxu0 %v1004
      %1372 = vmatpush.bf16.msra.mxu0 %v1003
      %1373 = vmatpush.bf16.msra.mxu0 %v1002
      %1374 = vmatpush.bf16.msra.mxu0 %v1001
      %1375 = vmatpush.bf16.msra.mxu0 %v1000
      %1376 = vmatpush.bf16.msra.mxu0 %v999
      %1377 = vmatpush.bf16.msra.mxu0 %v998
      %1378 = vmatpush.bf16.msra.mxu0 %v997
      %1379 = vmatmul.bf16.gmra.mxu0 %v571
      %v1380 = vpop.f32.mrf.mxu0
      %v1381 = vadd.f32 %v1332, %v1380
      %v1382 = vpop.f32.mrf.mxu0
      %v1383 = vadd.f32 %v1334, %v1382
      %1384 = vmatmul.bf16.gmra.mxu0 %v579
      %v1385 = vpop.f32.mrf.mxu0
      %v1386 = vadd.f32 %v1337, %v1385
      %v1387 = vpop.f32.mrf.mxu0
      %v1388 = vadd.f32 %v1339, %v1387
      %1389 = vmatmul.bf16.gmra.mxu0 %v587
      %v1390 = vpop.f32.mrf.mxu0
      %v1391 = vadd.f32 %v1342, %v1390
      %v1392 = vpop.f32.mrf.mxu0
      %v1393 = vadd.f32 %v1344, %v1392
      %1394 = vmatmul.bf16.gmra.mxu0 %v595
      %v1395 = vpop.f32.mrf.mxu0
      %v1396 = vadd.f32 %v1347, %v1395
      %v1397 = vpop.f32.mrf.mxu0
      %v1398 = vadd.f32 %v1349, %v1397
      %1399 = vmatmul.bf16.gmra.mxu0 %v603
      %v1400 = vpop.f32.mrf.mxu0
      %v1401 = vadd.f32 %v1352, %v1400
      %v1402 = vpop.f32.mrf.mxu0
      %v1403 = vadd.f32 %v1354, %v1402
      %1404 = vmatmul.bf16.gmra.mxu0 %v611
      %v1405 = vpop.f32.mrf.mxu0
      %v1406 = vadd.f32 %v1357, %v1405
      %v1407 = vpop.f32.mrf.mxu0
      %v1408 = vadd.f32 %v1359, %v1407
      %1409 = vmatmul.bf16.gmra.mxu0 %v619
      %v1410 = vpop.f32.mrf.mxu0
      %v1411 = vadd.f32 %v1362, %v1410
      %v1412 = vpop.f32.mrf.mxu0
      %v1413 = vadd.f32 %v1364, %v1412
      %1414 = vmatmul.bf16.gmra.mxu0 %v627
      %v1415 = vpop.f32.mrf.mxu0
      %v1416 = vadd.f32 %v1367, %v1415
      %v1417 = vpop.f32.mrf.mxu0
      %v1418 = vadd.f32 %v1369, %v1417
      %1419 = vdwg.mxu0
      %1420 = vmatpush.bf16.msra.mxu0 %v1012
      %1421 = vmatpush.bf16.msra.mxu0 %v1011
      %1422 = vmatpush.bf16.msra.mxu0 %v1010
      %1423 = vmatpush.bf16.msra.mxu0 %v1009
      %1424 = vmatpush.bf16.msra.mxu0 %v1008
      %1425 = vmatpush.bf16.msra.mxu0 %v1007
      %1426 = vmatpush.bf16.msra.mxu0 %v1006
      %1427 = vmatpush.bf16.msra.mxu0 %v1005
      %1428 = vmatmul.bf16.gmra.mxu0 %v572
      %v1429 = vpop.f32.mrf.mxu0
      %v1430 = vadd.f32 %v1381, %v1429
      %v1431 = vpop.f32.mrf.mxu0
      %v1432 = vadd.f32 %v1383, %v1431
      %1433 = vmatmul.bf16.gmra.mxu0 %v580
      %v1434 = vpop.f32.mrf.mxu0
      %v1435 = vadd.f32 %v1386, %v1434
      %v1436 = vpop.f32.mrf.mxu0
      %v1437 = vadd.f32 %v1388, %v1436
      %1438 = vmatmul.bf16.gmra.mxu0 %v588
      %v1439 = vpop.f32.mrf.mxu0
      %v1440 = vadd.f32 %v1391, %v1439
      %v1441 = vpop.f32.mrf.mxu0
      %v1442 = vadd.f32 %v1393, %v1441
      %1443 = vmatmul.bf16.gmra.mxu0 %v596
      %v1444 = vpop.f32.mrf.mxu0
      %v1445 = vadd.f32 %v1396, %v1444
      %v1446 = vpop.f32.mrf.mxu0
      %v1447 = vadd.f32 %v1398, %v1446
      %1448 = vmatmul.bf16.gmra.mxu0 %v604
      %v1449 = vpop.f32.mrf.mxu0
      %v1450 = vadd.f32 %v1401, %v1449
      %v1451 = vpop.f32.mrf.mxu0
      %v1452 = vadd.f32 %v1403, %v1451
      %1453 = vmatmul.bf16.gmra.mxu0 %v612
      %v1454 = vpop.f32.mrf.mxu0
      %v1455 = vadd.f32 %v1406, %v1454
      %v1456 = vpop.f32.mrf.mxu0
      %v1457 = vadd.f32 %v1408, %v1456
      %1458 = vmatmul.bf16.gmra.mxu0 %v620
      %v1459 = vpop.f32.mrf.mxu0
      %v1460 = vadd.f32 %v1411, %v1459
      %v1461 = vpop.f32.mrf.mxu0
      %v1462 = vadd.f32 %v1413, %v1461
      %1463 = vmatmul.bf16.gmra.mxu0 %v628
      %v1464 = vpop.f32.mrf.mxu0
      %v1465 = vadd.f32 %v1416, %v1464
      %v1466 = vpop.f32.mrf.mxu0
      %v1467 = vadd.f32 %v1418, %v1466
      %1468 = vdwg.mxu0
      %vm1469 = vcmp.ge.f32.partialorder %v1430, 0.0
      %vm1470 = vcmp.ge.f32.partialorder %v1432, 0.0
      %vm1471 = vcmp.ge.f32.partialorder %v1435, 0.0
      %vm1472 = vcmp.ge.f32.partialorder %v1437, 0.0
      %vm1473 = vcmp.ge.f32.partialorder %v1440, 0.0
      %vm1474 = vcmp.ge.f32.partialorder %v1442, 0.0
      %vm1475 = vcmp.ge.f32.partialorder %v1445, 0.0
      %vm1476 = vcmp.ge.f32.partialorder %v1447, 0.0
      %vm1477 = vcmp.ge.f32.partialorder %v1450, 0.0
      %vm1478 = vcmp.ge.f32.partialorder %v1452, 0.0
      %vm1479 = vcmp.ge.f32.partialorder %v1455, 0.0
      %vm1480 = vcmp.ge.f32.partialorder %v1457, 0.0
      %vm1481 = vcmp.ge.f32.partialorder %v1460, 0.0
      %vm1482 = vcmp.ge.f32.partialorder %v1462, 0.0
      %vm1483 = vcmp.ge.f32.partialorder %v1465, 0.0
      %vm1484 = vcmp.ge.f32.partialorder %v1467, 0.0
      %v1485 = vmul.f32 %v1430, 0.2
      %v1486 = vmul.f32 %v1432, 0.2
      %v1487 = vmul.f32 %v1435, 0.2
      %v1488 = vmul.f32 %v1437, 0.2
      %v1489 = vmul.f32 %v1440, 0.2
      %v1490 = vmul.f32 %v1442, 0.2
      %v1491 = vmul.f32 %v1445, 0.2
      %v1492 = vmul.f32 %v1447, 0.2
      %v1493 = vmul.f32 %v1450, 0.2
      %v1494 = vmul.f32 %v1452, 0.2
      %v1495 = vmul.f32 %v1455, 0.2
      %v1496 = vmul.f32 %v1457, 0.2
      %v1497 = vmul.f32 %v1460, 0.2
      %v1498 = vmul.f32 %v1462, 0.2
      %v1499 = vmul.f32 %v1465, 0.2
      %v1500 = vmul.f32 %v1467, 0.2
      %v1501 = vsel %vm1469, %v1430, %v1485
      %v1502 = vsel %vm1470, %v1432, %v1486
      %v1503 = vsel %vm1471, %v1435, %v1487
      %v1504 = vsel %vm1472, %v1437, %v1488
      %v1505 = vsel %vm1473, %v1440, %v1489
      %v1506 = vsel %vm1474, %v1442, %v1490
      %v1507 = vsel %vm1475, %v1445, %v1491
      %v1508 = vsel %vm1476, %v1447, %v1492
      %v1509 = vsel %vm1477, %v1450, %v1493
      %v1510 = vsel %vm1478, %v1452, %v1494
      %v1511 = vsel %vm1479, %v1455, %v1495
      %v1512 = vsel %vm1480, %v1457, %v1496
      %v1513 = vsel %vm1481, %v1460, %v1497
      %v1514 = vsel %vm1482, %v1462, %v1498
      %v1515 = vsel %vm1483, %v1465, %v1499
      %v1516 = vsel %vm1484, %v1467, %v1500
      %1517 = vst [vmem:[%s175] sm:$0xff] %v1501
      %1518 = vst [vmem:[%s175 + $0x8] sm:$0xff] %v1502
      %1519 = vst [vmem:[%s175 + $0x10] sm:$0xff] %v1503
      %1520 = vst [vmem:[%s175 + $0x18] sm:$0xff] %v1504
      %1521 = vst [vmem:[%s175 + $0x20] sm:$0xff] %v1505
      %1522 = vst [vmem:[%s175 + $0x28] sm:$0xff] %v1506
      %1523 = vst [vmem:[%s175 + $0x30] sm:$0xff] %v1507
      %1524 = vst [vmem:[%s175 + $0x38] sm:$0xff] %v1508
      %1525 = vst [vmem:[%s175 + $0x40] sm:$0xff] %v1509
      %1526 = vst [vmem:[%s175 + $0x48] sm:$0xff] %v1510
      %1527 = vst [vmem:[%s175 + $0x50] sm:$0xff] %v1511
      %1528 = vst [vmem:[%s175 + $0x58] sm:$0xff] %v1512
      %1529 = vst [vmem:[%s175 + $0x60] sm:$0xff] %v1513
      %1530 = vst [vmem:[%s175 + $0x68] sm:$0xff] %v1514
      %1531 = vst [vmem:[%s175 + $0x70] sm:$0xff] %v1515
      %1532 = vst [vmem:[%s175 + $0x78] sm:$0xff] %v1516
      %s1533 = smul.u32 16, %s14
      %p1534 = scmp.lt.s32.totalorder %s1533, 31
      %s1535 = scalar_select %p1534, %s1533, 31
      %s1536 = smul.addr %s1535, 8
      %s1537 = scalar_lea.vmem %s3, %s1536
      // Predicated region
      $region33: #{_feature_learning_impl.9} parent=31 // pred_check
        %p1538 = pneg %p100
      $region34: #{_feature_learning_impl.9} parent=31 // pred_check_branch
        %1540 = sbr.rel (%p1538) target = $region36
      $region35: #{_feature_learning_impl.9} parent=31 // pred_region
        %s1541 = smul.u32 16, %s14
      $region36: #{_feature_learning_impl.9} parent=31 // pred_fallthru
        _
    $region32: #{_feature_learning_impl.9} parent=5 // pred_fallthru
      _
    %p1542 = scmp.le.s32.totalorder 2, %s9
    // Predicated region
    $region37: #{_feature_learning_impl.9} parent=5 // pred_check
      %p1543 = pneg %p1542
    $region38: #{_feature_learning_impl.9} parent=5 // pred_check_branch
      %1545 = sbr.rel (%p1543) target = $region40
    $region39: #{_feature_learning_impl.9} parent=5 // pred_region
      %s1546 = ssub.s32 %s9, 2
      // Predicated region
      $region41: #{_feature_learning_impl.9} parent=39 // pred_check
        %p1547 = pneg %p106
      $region42: #{_feature_learning_impl.9} parent=39 // pred_check_branch
        %1549 = sbr.rel (%p1547) target = $region44
      $region43: #{_feature_learning_impl.9} parent=39 // pred_region
        %s1550 = smul.u32 16, %s15
        %p1551 = scmp.lt.s32.totalorder %s1550, 31
        %s1552 = scalar_select %p1551, %s1550, 31
        %s1553 = smul.addr %s1552, 8
        %s1554 = scalar_lea.vmem %s3, %s1553
      $region44: #{_feature_learning_impl.9} parent=39 // pred_fallthru
        _
    $region40: #{_feature_learning_impl.9} parent=5 // pred_fallthru
      _
  $region6: #{_feature_learning_impl.9} parent=0 // loop_footer
    %s13 = sadd.s32 1, %s9
  $region7: #{_feature_learning_impl.9} parent=0 // loop_footer_branch
    %8 = sbr.rel target = $region3
  $region8: #{_feature_learning_impl.9} parent=0 // loop_exit
    _

// kernel: _feature_learning_impl.10
$region0: #{_feature_learning_impl.10}
  #allocation0 [shape = 'u32[]', space=smem, size = 0x4, offset = 0x4, fixed_abs, tag = 'smem constant byte address 0x4 - core index']
  #allocation1 [shape = 'u32[72,128]{1,0:T(1,128)}', space=vmem, size = 0x9000, scoped, tag = 'internal scratch']
  %s0 = inlined_call_operand.vmem [shape: bf16[256,896], index: 0, kind: input, shape index: {}]
  %s1 = inlined_call_operand.vmem [shape: bf16[896,128], index: 1, kind: input, shape index: {}]
  %s2 = inlined_call_operand.vmem [shape: f32[1,128], index: 2, kind: input, shape index: {}]
  %s3 = inlined_call_operand.vmem [shape: f32[256,128], index: 3, kind: output, shape index: {}]
  %s4 = sld [smem:[#allocation0]]
  $region45: #{_feature_learning_impl.10} parent=0
    _
  %s6 = ssub.s32 1, %s4
  %s7 = scalar_select 0, %s6, %s4
  loop: start=0, step=1, limit=4
  $region2: #{_feature_learning_impl.10} parent=0 // loop_pre_header
    _
  $region3: #{_feature_learning_impl.10} parent=0 // loop_header
    %s9 = sphi 0, %s13
    %p10 = scmp.ge.s32.totalorder %s9, 4
    %s19 = sphi 0, %s21
    %s22 = sphi 0, %s19
    %s23 = sphi 0, %s22
    %s39 = sphi 0, %s23
    %s43 = sphi 0, %s43
    %s45 = sphi 0, %s43
    %s46 = sphi 0, %s45
    %s60 = sphi 0, %s46
    %s64 = sphi 0, %s64
    %s66 = sphi 0, %s64
    %s67 = sphi 0, %s66
    %s81 = sphi 0, %s67
    %s87 = sphi 0, %s89
    %s90 = sphi 0, %s87
    %s91 = sphi 0, %s90
    %s107 = sphi 0, %s91
  $region4: #{_feature_learning_impl.10} parent=0 // loop_header_branch
    %12 = sbr.rel (%p10) target = $region8
  $region5: #{_feature_learning_impl.10} parent=0 // loop_body
    %s14 = ssub.s32 %s9, 1
    %s15 = ssub.s32 %s9, 2
    %s16 = sadd.s32 %s9, 1
    %s17 = ssub.s32 %s9, %s16
    %p18 = scmp.eq.s32.totalorder %s17, 0
    %s20 = sadd.s32 %s19, 1
    %s21 = scalar_select %p18, %s19, %s20
    %p24 = pneg %p18
    %p25 = scmp.eq.s32.totalorder %s9, 1
    %p26 = por %p24, %p25
    %p27 = scmp.ne.s32.totalorder %s19, %s22
    %p28 = scmp.eq.s32.totalorder %s9, 0
    %p29 = por %p27, %p28
    %p30 = scmp.ne.s32.totalorder %s19, %s22
    %p31 = scmp.eq.s32.totalorder %s14, 1
    %p32 = por %p30, %p31
    %p33 = scmp.ne.s32.totalorder %s22, %s23
    %p34 = scmp.eq.s32.totalorder %s14, 0
    %p35 = por %p33, %p34
    %p36 = scmp.ne.s32.totalorder %s22, %s23
    %p37 = scmp.eq.s32.totalorder %s15, 1
    %p38 = por %p36, %p37
    %p40 = scmp.ne.s32.totalorder %s23, %s39
    %p41 = scmp.eq.s32.totalorder %s15, 0
    %p42 = por %p40, %p41
    %s44 = sadd.s32 %s43, 1
    %p47 = scmp.eq.s32.totalorder %s9, 1
    %p48 = scmp.ne.s32.totalorder %s43, %s45
    %p49 = scmp.eq.s32.totalorder %s9, 0
    %p50 = por %p48, %p49
    %p51 = scmp.ne.s32.totalorder %s43, %s45
    %p52 = scmp.eq.s32.totalorder %s14, 1
    %p53 = por %p51, %p52
    %p54 = scmp.ne.s32.totalorder %s45, %s46
    %p55 = scmp.eq.s32.totalorder %s14, 0
    %p56 = por %p54, %p55
    %p57 = scmp.ne.s32.totalorder %s45, %s46
    %p58 = scmp.eq.s32.totalorder %s15, 1
    %p59 = por %p57, %p58
    %p61 = scmp.ne.s32.totalorder %s46, %s60
    %p62 = scmp.eq.s32.totalorder %s15, 0
    %p63 = por %p61, %p62
    %s65 = sadd.s32 %s64, 1
    %p68 = scmp.eq.s32.totalorder %s9, 1
    %p69 = scmp.ne.s32.totalorder %s64, %s66
    %p70 = scmp.eq.s32.totalorder %s9, 0
    %p71 = por %p69, %p70
    %p72 = scmp.ne.s32.totalorder %s64, %s66
    %p73 = scmp.eq.s32.totalorder %s14, 1
    %p74 = por %p72, %p73
    %p75 = scmp.ne.s32.totalorder %s66, %s67
    %p76 = scmp.eq.s32.totalorder %s14, 0
    %p77 = por %p75, %p76
    %p78 = scmp.ne.s32.totalorder %s66, %s67
    %p79 = scmp.eq.s32.totalorder %s15, 1
    %p80 = por %p78, %p79
    %p82 = scmp.ne.s32.totalorder %s67, %s81
    %p83 = scmp.eq.s32.totalorder %s15, 0
    %p84 = por %p82, %p83
    %s85 = ssub.s32 %s9, %s16
    %p86 = scmp.eq.s32.totalorder %s85, 0
    %s88 = sadd.s32 %s87, 1
    %s89 = scalar_select %p86, %s87, %s88
    %p92 = pneg %p86
    %p93 = scmp.eq.s32.totalorder %s9, 1
    %p94 = por %p92, %p93
    %p95 = scmp.ne.s32.totalorder %s87, %s90
    %p96 = scmp.eq.s32.totalorder %s9, 0
    %p97 = por %p95, %p96
    %p98 = scmp.ne.s32.totalorder %s87, %s90
    %p99 = scmp.eq.s32.totalorder %s14, 1
    %p100 = por %p98, %p99
    %p101 = scmp.ne.s32.totalorder %s90, %s91
    %p102 = scmp.eq.s32.totalorder %s14, 0
    %p103 = por %p101, %p102
    %p104 = scmp.ne.s32.totalorder %s90, %s91
    %p105 = scmp.eq.s32.totalorder %s15, 1
    %p106 = por %p104, %p105
    %p108 = scmp.ne.s32.totalorder %s91, %s107
    %p109 = scmp.eq.s32.totalorder %s15, 0
    %p110 = por %p108, %p109
    %p111 = scmp.le.s32.totalorder 1, %s9
    %p112 = scmp.lt.s32.totalorder %s9, 3
    %p113 = pnand %p111, %p112
    %p114 = pneg %p113
    // Predicated region
    $region9: #{_feature_learning_impl.10} parent=5 // pred_check
      _
    $region10: #{_feature_learning_impl.10} parent=5 // pred_check_branch
      %116 = sbr.rel (%p113) target = $region12
    $region11: #{_feature_learning_impl.10} parent=5 // pred_region
      %s117 = ssub.s32 %s9, 1
      // Predicated region
      $region13: #{_feature_learning_impl.10} parent=11 // pred_check
        %p118 = pneg %p56
      $region14: #{_feature_learning_impl.10} parent=11 // pred_check_branch
        %120 = sbr.rel (%p118) target = $region16
      $region15: #{_feature_learning_impl.10} parent=11 // pred_region
        _
      $region16: #{_feature_learning_impl.10} parent=11 // pred_fallthru
        _
      // Predicated region
      $region17: #{_feature_learning_impl.10} parent=11 // pred_check
        %p121 = pneg %p77
      $region18: #{_feature_learning_impl.10} parent=11 // pred_check_branch
        %123 = sbr.rel (%p121) target = $region20
      $region19: #{_feature_learning_impl.10} parent=11 // pred_region
        _
      $region20: #{_feature_learning_impl.10} parent=11 // pred_fallthru
        _
    $region12: #{_feature_learning_impl.10} parent=5 // pred_fallthru
      _
    %p124 = scmp.lt.s32.totalorder %s9, 2
    // Predicated region
    $region21: #{_feature_learning_impl.10} parent=5 // pred_check
      %p125 = pneg %p124
    $region22: #{_feature_learning_impl.10} parent=5 // pred_check_branch
      %127 = sbr.rel (%p125) target = $region24
    $region23: #{_feature_learning_impl.10} parent=5 // pred_region
      // Predicated region
      $region25: #{_feature_learning_impl.10} parent=23 // pred_check
        %p128 = pneg %p29
      $region26: #{_feature_learning_impl.10} parent=23 // pred_check_branch
        %130 = sbr.rel (%p128) target = $region28
      $region27: #{_feature_learning_impl.10} parent=23 // pred_region
        %s131 = smul.u32 16, %s9
        %p132 = scmp.lt.s32.totalorder %s131, 31
        %s133 = scalar_select %p132, %s131, 31
        %s134 = smul.addr %s133, 7
        %s135 = smul.addr %s134, 4
        %s136 = scalar_lea.vmem %s0, %s135
        %s137 = smul.u32 16, %s9
      $region28: #{_feature_learning_impl.10} parent=23 // pred_fallthru
        _
    $region24: #{_feature_learning_impl.10} parent=5 // pred_fallthru
      _
    %p138 = scmp.le.s32.totalorder 1, %s9
    %p139 = scmp.lt.s32.totalorder %s9, 3
    %p140 = pnand %p138, %p139
    %p141 = pneg %p140
    // Predicated region
    $region29: #{_feature_learning_impl.10} parent=5 // pred_check
      _
    $region30: #{_feature_learning_impl.10} parent=5 // pred_check_branch
      %143 = sbr.rel (%p140) target = $region32
    $region31: #{_feature_learning_impl.10} parent=5 // pred_region
      %s144 = ssub.s32 %s9, 1
      %s145 = smul.u32 16, %s14
      %p146 = scmp.lt.s32.totalorder %s145, 31
      %s147 = scalar_select %p146, %s145, 31
      %s148 = smul.addr %s147, 7
      %s149 = smul.addr %s148, 4
      %s150 = scalar_lea.vmem %s0, %s149
      %p151 = pneg %p35
      %p152 = pneg %p32
      %p153 = pneg %p56
      %p154 = pneg %p53
      %p155 = pneg %p77
      %p156 = pneg %p74
      %p157 = pneg %p103
      %p158 = pneg %p100
      %s159 = smul.u32 16, %s14
      %p160 = scmp.lt.s32.totalorder %s159, 31
      %s161 = scalar_select %p160, %s159, 31
      %s162 = smul.addr %s161, 8
      %s163 = scalar_lea.vmem %s3, %s162
      %s164 = smul.u32 16, %s14
      %p165 = scmp.lt.s32.totalorder %s164, 31
      %s166 = scalar_select %p165, %s164, 31
      %s167 = smul.addr %s166, 7
      %s168 = smul.addr %s167, 4
      %s169 = scalar_lea.vmem %s0, %s168
      %s170 = smul.u32 16, %s14
      %s171 = smul.u32 16, %s14
      %p172 = scmp.lt.s32.totalorder %s171, 31
      %s173 = scalar_select %p172, %s171, 31
      %s174 = smul.addr %s173, 8
      %s175 = scalar_lea.vmem %s3, %s174
      %s176 = smul.u32 16, %s14
      %v177 = vld [vmem:[%s169] sm:$0xff]
      %v178 = vld [vmem:[%s169 + $0x8] sm:$0xff]
      %v179 = vld [vmem:[%s169 + $0x10] sm:$0xff]
      %v180 = vld [vmem:[%s169 + $0x18] sm:$0xf]
      %v181 = vld [vmem:[%s169 + $0x1c] sm:$0xff]
      %v182 = vld [vmem:[%s169 + $0x24] sm:$0xff]
      %v183 = vld [vmem:[%s169 + $0x2c] sm:$0xff]
      %v184 = vld [vmem:[%s169 + $0x34] sm:$0xf]
      %v185 = vld [vmem:[%s169 + $0x38] sm:$0xff]
      %v186 = vld [vmem:[%s169 + $0x40] sm:$0xff]
      %v187 = vld [vmem:[%s169 + $0x48] sm:$0xff]
      %v188 = vld [vmem:[%s169 + $0x50] sm:$0xf]
      %v189 = vld [vmem:[%s169 + $0x54] sm:$0xff]
      %v190 = vld [vmem:[%s169 + $0x5c] sm:$0xff]
      %v191 = vld [vmem:[%s169 + $0x64] sm:$0xff]
      %v192 = vld [vmem:[%s169 + $0x6c] sm:$0xf]
      %v193 = vld [vmem:[%s169 + $0x70] sm:$0xff]
      %v194 = vld [vmem:[%s169 + $0x78] sm:$0xff]
      %v195 = vld [vmem:[%s169 + $0x80] sm:$0xff]
      %v196 = vld [vmem:[%s169 + $0x88] sm:$0xf]
      %v197 = vld [vmem:[%s169 + $0x8c] sm:$0xff]
      %v198 = vld [vmem:[%s169 + $0x94] sm:$0xff]
      %v199 = vld [vmem:[%s169 + $0x9c] sm:$0xff]
      %v200 = vld [vmem:[%s169 + $0xa4] sm:$0xf]
      %v201 = vld [vmem:[%s169 + $0xa8] sm:$0xff]
      %v202 = vld [vmem:[%s169 + $0xb0] sm:$0xff]
      %v203 = vld [vmem:[%s169 + $0xb8] sm:$0xff]
      %v204 = vld [vmem:[%s169 + $0xc0] sm:$0xf]
      %v205 = vld [vmem:[%s169 + $0xc4] sm:$0xff]
      %v206 = vld [vmem:[%s169 + $0xcc] sm:$0xff]
      %v207 = vld [vmem:[%s169 + $0xd4] sm:$0xff]
      %v208 = vld [vmem:[%s169 + $0xdc] sm:$0xf]
      %v209 = vld [vmem:[%s169 + $0xe0] sm:$0xff]
      %v210 = vld [vmem:[%s169 + $0xe8] sm:$0xff]
      %v211 = vld [vmem:[%s169 + $0xf0] sm:$0xff]
      %v212 = vld [vmem:[%s169 + $0xf8] sm:$0xf]
      %v213 = vld [vmem:[%s169 + $0xfc] sm:$0xff]
      %v214 = vld [vmem:[%s169 + $0x104] sm:$0xff]
      %v215 = vld [vmem:[%s169 + $0x10c] sm:$0xff]
      %v216 = vld [vmem:[%s169 + $0x114] sm:$0xf]
      %v217 = vld [vmem:[%s169 + $0x118] sm:$0xff]
      %v218 = vld [vmem:[%s169 + $0x120] sm:$0xff]
      %v219 = vld [vmem:[%s169 + $0x128] sm:$0xff]
      %v220 = vld [vmem:[%s169 + $0x130] sm:$0xf]
      %v221 = vld [vmem:[%s169 + $0x134] sm:$0xff]
      %v222 = vld [vmem:[%s169 + $0x13c] sm:$0xff]
      %v223 = vld [vmem:[%s169 + $0x144] sm:$0xff]
      %v224 = vld [vmem:[%s169 + $0x14c] sm:$0xf]
      %v225 = vld [vmem:[%s169 + $0x150] sm:$0xff]
      %v226 = vld [vmem:[%s169 + $0x158] sm:$0xff]
      %v227 = vld [vmem:[%s169 + $0x160] sm:$0xff]
      %v228 = vld [vmem:[%s169 + $0x168] sm:$0xf]
      %v229 = vld [vmem:[%s169 + $0x16c] sm:$0xff]
      %v230 = vld [vmem:[%s169 + $0x174] sm:$0xff]
      %v231 = vld [vmem:[%s169 + $0x17c] sm:$0xff]
      %v232 = vld [vmem:[%s169 + $0x184] sm:$0xf]
      %v233 = vld [vmem:[%s169 + $0x188] sm:$0xff]
      %v234 = vld [vmem:[%s169 + $0x190] sm:$0xff]
      %v235 = vld [vmem:[%s169 + $0x198] sm:$0xff]
      %v236 = vld [vmem:[%s169 + $0x1a0] sm:$0xf]
      %v237 = vld [vmem:[%s169 + $0x1a4] sm:$0xff]
      %v238 = vld [vmem:[%s169 + $0x1ac] sm:$0xff]
      %v239 = vld [vmem:[%s169 + $0x1b4] sm:$0xff]
      %v240 = vld [vmem:[%s169 + $0x1bc] sm:$0xf]
      %v241 = vld [vmem:[%s1] sm:$0xf]
      %v242 = vld [vmem:[%s1 + $0x4] sm:$0xf]
      %v243 = vld [vmem:[%s1 + $0x8] sm:$0xf]
      %v244 = vld [vmem:[%s1 + $0xc] sm:$0xf]
      %v245 = vld [vmem:[%s1 + $0x10] sm:$0xf]
      %v246 = vld [vmem:[%s1 + $0x14] sm:$0xf]
      %v247 = vld [vmem:[%s1 + $0x18] sm:$0xf]
      %v248 = vld [vmem:[%s1 + $0x1c] sm:$0xf]
      %v249 = vld [vmem:[%s1 + $0x20] sm:$0xf]
      %v250 = vld [vmem:[%s1 + $0x24] sm:$0xf]
      %v251 = vld [vmem:[%s1 + $0x28] sm:$0xf]
      %v252 = vld [vmem:[%s1 + $0x2c] sm:$0xf]
      %v253 = vld [vmem:[%s1 + $0x30] sm:$0xf]
      %v254 = vld [vmem:[%s1 + $0x34] sm:$0xf]
      %v255 = vld [vmem:[%s1 + $0x38] sm:$0xf]
      %v256 = vld [vmem:[%s1 + $0x3c] sm:$0xf]
      %v257 = vld [vmem:[%s1 + $0x40] sm:$0xf]
      %v258 = vld [vmem:[%s1 + $0x44] sm:$0xf]
      %v259 = vld [vmem:[%s1 + $0x48] sm:$0xf]
      %v260 = vld [vmem:[%s1 + $0x4c] sm:$0xf]
      %v261 = vld [vmem:[%s1 + $0x50] sm:$0xf]
      %v262 = vld [vmem:[%s1 + $0x54] sm:$0xf]
      %v263 = vld [vmem:[%s1 + $0x58] sm:$0xf]
      %v264 = vld [vmem:[%s1 + $0x5c] sm:$0xf]
      %v265 = vld [vmem:[%s1 + $0x60] sm:$0xf]
      %v266 = vld [vmem:[%s1 + $0x64] sm:$0xf]
      %v267 = vld [vmem:[%s1 + $0x68] sm:$0xf]
      %v268 = vld [vmem:[%s1 + $0x6c] sm:$0xf]
      %v269 = vld [vmem:[%s1 + $0x70] sm:$0xf]
      %v270 = vld [vmem:[%s1 + $0x74] sm:$0xf]
      %v271 = vld [vmem:[%s1 + $0x78] sm:$0xf]
      %v272 = vld [vmem:[%s1 + $0x7c] sm:$0xf]
      %v273 = vld [vmem:[%s1 + $0x80] sm:$0xf]
      %v274 = vld [vmem:[%s1 + $0x84] sm:$0xf]
      %v275 = vld [vmem:[%s1 + $0x88] sm:$0xf]
      %v276 = vld [vmem:[%s1 + $0x8c] sm:$0xf]
      %v277 = vld [vmem:[%s1 + $0x90] sm:$0xf]
      %v278 = vld [vmem:[%s1 + $0x94] sm:$0xf]
      %v279 = vld [vmem:[%s1 + $0x98] sm:$0xf]
      %v280 = vld [vmem:[%s1 + $0x9c] sm:$0xf]
      %v281 = vld [vmem:[%s1 + $0xa0] sm:$0xf]
      %v282 = vld [vmem:[%s1 + $0xa4] sm:$0xf]
      %v283 = vld [vmem:[%s1 + $0xa8] sm:$0xf]
      %v284 = vld [vmem:[%s1 + $0xac] sm:$0xf]
      %v285 = vld [vmem:[%s1 + $0xb0] sm:$0xf]
      %v286 = vld [vmem:[%s1 + $0xb4] sm:$0xf]
      %v287 = vld [vmem:[%s1 + $0xb8] sm:$0xf]
      %v288 = vld [vmem:[%s1 + $0xbc] sm:$0xf]
      %v289 = vld [vmem:[%s1 + $0xc0] sm:$0xf]
      %v290 = vld [vmem:[%s1 + $0xc4] sm:$0xf]
      %v291 = vld [vmem:[%s1 + $0xc8] sm:$0xf]
      %v292 = vld [vmem:[%s1 + $0xcc] sm:$0xf]
      %v293 = vld [vmem:[%s1 + $0xd0] sm:$0xf]
      %v294 = vld [vmem:[%s1 + $0xd4] sm:$0xf]
      %v295 = vld [vmem:[%s1 + $0xd8] sm:$0xf]
      %v296 = vld [vmem:[%s1 + $0xdc] sm:$0xf]
      %v297 = vld [vmem:[%s1 + $0xe0] sm:$0xf]
      %v298 = vld [vmem:[%s1 + $0xe4] sm:$0xf]
      %v299 = vld [vmem:[%s1 + $0xe8] sm:$0xf]
      %v300 = vld [vmem:[%s1 + $0xec] sm:$0xf]
      %v301 = vld [vmem:[%s1 + $0xf0] sm:$0xf]
      %v302 = vld [vmem:[%s1 + $0xf4] sm:$0xf]
      %v303 = vld [vmem:[%s1 + $0xf8] sm:$0xf]
      %v304 = vld [vmem:[%s1 + $0xfc] sm:$0xf]
      %v305 = vld [vmem:[%s1 + $0x100] sm:$0xf]
      %v306 = vld [vmem:[%s1 + $0x104] sm:$0xf]
      %v307 = vld [vmem:[%s1 + $0x108] sm:$0xf]
      %v308 = vld [vmem:[%s1 + $0x10c] sm:$0xf]
      %v309 = vld [vmem:[%s1 + $0x110] sm:$0xf]
      %v310 = vld [vmem:[%s1 + $0x114] sm:$0xf]
      %v311 = vld [vmem:[%s1 + $0x118] sm:$0xf]
      %v312 = vld [vmem:[%s1 + $0x11c] sm:$0xf]
      %v313 = vld [vmem:[%s1 + $0x120] sm:$0xf]
      %v314 = vld [vmem:[%s1 + $0x124] sm:$0xf]
      %v315 = vld [vmem:[%s1 + $0x128] sm:$0xf]
      %v316 = vld [vmem:[%s1 + $0x12c] sm:$0xf]
      %v317 = vld [vmem:[%s1 + $0x130] sm:$0xf]
      %v318 = vld [vmem:[%s1 + $0x134] sm:$0xf]
      %v319 = vld [vmem:[%s1 + $0x138] sm:$0xf]
      %v320 = vld [vmem:[%s1 + $0x13c] sm:$0xf]
      %v321 = vld [vmem:[%s1 + $0x140] sm:$0xf]
      %v322 = vld [vmem:[%s1 + $0x144] sm:$0xf]
      %v323 = vld [vmem:[%s1 + $0x148] sm:$0xf]
      %v324 = vld [vmem:[%s1 + $0x14c] sm:$0xf]
      %v325 = vld [vmem:[%s1 + $0x150] sm:$0xf]
      %v326 = vld [vmem:[%s1 + $0x154] sm:$0xf]
      %v327 = vld [vmem:[%s1 + $0x158] sm:$0xf]
      %v328 = vld [vmem:[%s1 + $0x15c] sm:$0xf]
      %v329 = vld [vmem:[%s1 + $0x160] sm:$0xf]
      %v330 = vld [vmem:[%s1 + $0x164] sm:$0xf]
      %v331 = vld [vmem:[%s1 + $0x168] sm:$0xf]
      %v332 = vld [vmem:[%s1 + $0x16c] sm:$0xf]
      %v333 = vld [vmem:[%s1 + $0x170] sm:$0xf]
      %v334 = vld [vmem:[%s1 + $0x174] sm:$0xf]
      %v335 = vld [vmem:[%s1 + $0x178] sm:$0xf]
      %v336 = vld [vmem:[%s1 + $0x17c] sm:$0xf]
      %v337 = vld [vmem:[%s1 + $0x180] sm:$0xf]
      %v338 = vld [vmem:[%s1 + $0x184] sm:$0xf]
      %v339 = vld [vmem:[%s1 + $0x188] sm:$0xf]
      %v340 = vld [vmem:[%s1 + $0x18c] sm:$0xf]
      %v341 = vld [vmem:[%s1 + $0x190] sm:$0xf]
      %v342 = vld [vmem:[%s1 + $0x194] sm:$0xf]
      %v343 = vld [vmem:[%s1 + $0x198] sm:$0xf]
      %v344 = vld [vmem:[%s1 + $0x19c] sm:$0xf]
      %v345 = vld [vmem:[%s1 + $0x1a0] sm:$0xf]
      %v346 = vld [vmem:[%s1 + $0x1a4] sm:$0xf]
      %v347 = vld [vmem:[%s1 + $0x1a8] sm:$0xf]
      %v348 = vld [vmem:[%s1 + $0x1ac] sm:$0xf]
      %v349 = vld [vmem:[%s1 + $0x1b0] sm:$0xf]
      %v350 = vld [vmem:[%s1 + $0x1b4] sm:$0xf]
      %v351 = vld [vmem:[%s1 + $0x1b8] sm:$0xf]
      %v352 = vld [vmem:[%s1 + $0x1bc] sm:$0xf]
      %v353 = vld [vmem:[%s2] sm:$0x1]
      %v355 = vperm.slane %v353, 0
      %v421 = vunpack.c.l.b16 %v177
      %v422 = vunpack.c.h.b16 %v177
      %v423 = vunpack.c.l.b16 %v178
      %v424 = vunpack.c.h.b16 %v178
      %v425 = vunpack.c.l.b16 %v179
      %v426 = vunpack.c.h.b16 %v179
      %v427 = vunpack.c.l.b16 %v180
      %v428 = vunpack.c.l.b16 %v181
      %v429 = vunpack.c.h.b16 %v181
      %v430 = vunpack.c.l.b16 %v182
      %v431 = vunpack.c.h.b16 %v182
      %v432 = vunpack.c.l.b16 %v183
      %v433 = vunpack.c.h.b16 %v183
      %v434 = vunpack.c.l.b16 %v184
      %v435 = vunpack.c.l.b16 %v185
      %v436 = vunpack.c.h.b16 %v185
      %v437 = vunpack.c.l.b16 %v186
      %v438 = vunpack.c.h.b16 %v186
      %v439 = vunpack.c.l.b16 %v187
      %v440 = vunpack.c.h.b16 %v187
      %v441 = vunpack.c.l.b16 %v188
      %v442 = vunpack.c.l.b16 %v189
      %v443 = vunpack.c.h.b16 %v189
      %v444 = vunpack.c.l.b16 %v190
      %v445 = vunpack.c.h.b16 %v190
      %v446 = vunpack.c.l.b16 %v191
      %v447 = vunpack.c.h.b16 %v191
      %v448 = vunpack.c.l.b16 %v192
      %v449 = vunpack.c.l.b16 %v193
      %v450 = vunpack.c.h.b16 %v193
      %v451 = vunpack.c.l.b16 %v194
      %v452 = vunpack.c.h.b16 %v194
      %v453 = vunpack.c.l.b16 %v195
      %v454 = vunpack.c.h.b16 %v195
      %v455 = vunpack.c.l.b16 %v196
      %v456 = vunpack.c.l.b16 %v197
      %v457 = vunpack.c.h.b16 %v197
      %v458 = vunpack.c.l.b16 %v198
      %v459 = vunpack.c.h.b16 %v198
      %v460 = vunpack.c.l.b16 %v199
      %v461 = vunpack.c.h.b16 %v199
      %v462 = vunpack.c.l.b16 %v200
      %v463 = vunpack.c.l.b16 %v201
      %v464 = vunpack.c.h.b16 %v201
      %v465 = vunpack.c.l.b16 %v202
      %v466 = vunpack.c.h.b16 %v202
      %v467 = vunpack.c.l.b16 %v203
      %v468 = vunpack.c.h.b16 %v203
      %v469 = vunpack.c.l.b16 %v204
      %v470 = vunpack.c.l.b16 %v205
      %v471 = vunpack.c.h.b16 %v205
      %v472 = vunpack.c.l.b16 %v206
      %v473 = vunpack.c.h.b16 %v206
      %v474 = vunpack.c.l.b16 %v207
      %v475 = vunpack.c.h.b16 %v207
      %v476 = vunpack.c.l.b16 %v208
      %v477 = vunpack.c.l.b16 %v209
      %v478 = vunpack.c.h.b16 %v209
      %v479 = vunpack.c.l.b16 %v210
      %v480 = vunpack.c.h.b16 %v210
      %v481 = vunpack.c.l.b16 %v211
      %v482 = vunpack.c.h.b16 %v211
      %v483 = vunpack.c.l.b16 %v212
      %v484 = vunpack.c.l.b16 %v213
      %v485 = vunpack.c.h.b16 %v213
      %v486 = vunpack.c.l.b16 %v214
      %v487 = vunpack.c.h.b16 %v214
      %v488 = vunpack.c.l.b16 %v215
      %v489 = vunpack.c.h.b16 %v215
      %v490 = vunpack.c.l.b16 %v216
      %v491 = vunpack.c.l.b16 %v217
      %v492 = vunpack.c.h.b16 %v217
      %v493 = vunpack.c.l.b16 %v218
      %v494 = vunpack.c.h.b16 %v218
      %v495 = vunpack.c.l.b16 %v219
      %v496 = vunpack.c.h.b16 %v219
      %v497 = vunpack.c.l.b16 %v220
      %v498 = vunpack.c.l.b16 %v221
      %v499 = vunpack.c.h.b16 %v221
      %v500 = vunpack.c.l.b16 %v222
      %v501 = vunpack.c.h.b16 %v222
      %v502 = vunpack.c.l.b16 %v223
      %v503 = vunpack.c.h.b16 %v223
      %v504 = vunpack.c.l.b16 %v224
      %v505 = vunpack.c.l.b16 %v225
      %v506 = vunpack.c.h.b16 %v225
      %v507 = vunpack.c.l.b16 %v226
      %v508 = vunpack.c.h.b16 %v226
      %v509 = vunpack.c.l.b16 %v227
      %v510 = vunpack.c.h.b16 %v227
      %v511 = vunpack.c.l.b16 %v228
      %v512 = vunpack.c.l.b16 %v229
      %v513 = vunpack.c.h.b16 %v229
      %v514 = vunpack.c.l.b16 %v230
      %v515 = vunpack.c.h.b16 %v230
      %v516 = vunpack.c.l.b16 %v231
      %v517 = vunpack.c.h.b16 %v231
      %v518 = vunpack.c.l.b16 %v232
      %v519 = vunpack.c.l.b16 %v233
      %v520 = vunpack.c.h.b16 %v233
      %v521 = vunpack.c.l.b16 %v234
      %v522 = vunpack.c.h.b16 %v234
      %v523 = vunpack.c.l.b16 %v235
      %v524 = vunpack.c.h.b16 %v235
      %v525 = vunpack.c.l.b16 %v236
      %v526 = vunpack.c.l.b16 %v237
      %v527 = vunpack.c.h.b16 %v237
      %v528 = vunpack.c.l.b16 %v238
      %v529 = vunpack.c.h.b16 %v238
      %v530 = vunpack.c.l.b16 %v239
      %v531 = vunpack.c.h.b16 %v239
      %v532 = vunpack.c.l.b16 %v240
      %v533 = vpack.c.b16 %v428, %v421
      %v534 = vpack.c.b16 %v429, %v422
      %v535 = vpack.c.b16 %v430, %v423
      %v536 = vpack.c.b16 %v431, %v424
      %v537 = vpack.c.b16 %v432, %v425
      %v538 = vpack.c.b16 %v433, %v426
      %v539 = vpack.c.b16 %v434, %v427
      %v540 = vpack.c.b16 %v442, %v435
      %v541 = vpack.c.b16 %v443, %v436
      %v542 = vpack.c.b16 %v444, %v437
      %v543 = vpack.c.b16 %v445, %v438
      %v544 = vpack.c.b16 %v446, %v439
      %v545 = vpack.c.b16 %v447, %v440
      %v546 = vpack.c.b16 %v448, %v441
      %v547 = vpack.c.b16 %v456, %v449
      %v548 = vpack.c.b16 %v457, %v450
      %v549 = vpack.c.b16 %v458, %v451
      %v550 = vpack.c.b16 %v459, %v452
      %v551 = vpack.c.b16 %v460, %v453
      %v552 = vpack.c.b16 %v461, %v454
      %v553 = vpack.c.b16 %v462, %v455
      %v554 = vpack.c.b16 %v470, %v463
      %v555 = vpack.c.b16 %v471, %v464
      %v556 = vpack.c.b16 %v472, %v465
      %v557 = vpack.c.b16 %v473, %v466
      %v558 = vpack.c.b16 %v474, %v467
      %v559 = vpack.c.b16 %v475, %v468
      %v560 = vpack.c.b16 %v476, %v469
      %v561 = vpack.c.b16 %v484, %v477
      %v562 = vpack.c.b16 %v485, %v478
      %v563 = vpack.c.b16 %v486, %v479
      %v564 = vpack.c.b16 %v487, %v480
      %v565 = vpack.c.b16 %v488, %v481
      %v566 = vpack.c.b16 %v489, %v482
      %v567 = vpack.c.b16 %v490, %v483
      %v568 = vpack.c.b16 %v498, %v491
      %v569 = vpack.c.b16 %v499, %v492
      %v570 = vpack.c.b16 %v500, %v493
      %v571 = vpack.c.b16 %v501, %v494
      %v572 = vpack.c.b16 %v502, %v495
      %v573 = vpack.c.b16 %v503, %v496
      %v574 = vpack.c.b16 %v504, %v497
      %v575 = vpack.c.b16 %v512, %v505
      %v576 = vpack.c.b16 %v513, %v506
      %v577 = vpack.c.b16 %v514, %v507
      %v578 = vpack.c.b16 %v515, %v508
      %v579 = vpack.c.b16 %v516, %v509
      %v580 = vpack.c.b16 %v517, %v510
      %v581 = vpack.c.b16 %v518, %v511
      %v582 = vpack.c.b16 %v526, %v519
      %v583 = vpack.c.b16 %v527, %v520
      %v584 = vpack.c.b16 %v528, %v521
      %v585 = vpack.c.b16 %v529, %v522
      %v586 = vpack.c.b16 %v530, %v523
      %v587 = vpack.c.b16 %v531, %v524
      %v588 = vpack.c.b16 %v532, %v525
      %v757 = vunpack.c.l.b16 %v241
      %v758 = vunpack.c.l.b16 %v242
      %v759 = vunpack.c.l.b16 %v243
      %v760 = vunpack.c.l.b16 %v244
      %v761 = vunpack.c.l.b16 %v245
      %v762 = vunpack.c.l.b16 %v246
      %v763 = vunpack.c.l.b16 %v247
      %v764 = vunpack.c.l.b16 %v248
      %v765 = vunpack.c.l.b16 %v249
      %v766 = vunpack.c.l.b16 %v250
      %v767 = vunpack.c.l.b16 %v251
      %v768 = vunpack.c.l.b16 %v252
      %v769 = vunpack.c.l.b16 %v253
      %v770 = vunpack.c.l.b16 %v254
      %v771 = vunpack.c.l.b16 %v255
      %v772 = vunpack.c.l.b16 %v256
      %v773 = vunpack.c.l.b16 %v257
      %v774 = vunpack.c.l.b16 %v258
      %v775 = vunpack.c.l.b16 %v259
      %v776 = vunpack.c.l.b16 %v260
      %v777 = vunpack.c.l.b16 %v261
      %v778 = vunpack.c.l.b16 %v262
      %v779 = vunpack.c.l.b16 %v263
      %v780 = vunpack.c.l.b16 %v264
      %v781 = vunpack.c.l.b16 %v265
      %v782 = vunpack.c.l.b16 %v266
      %v783 = vunpack.c.l.b16 %v267
      %v784 = vunpack.c.l.b16 %v268
      %v785 = vunpack.c.l.b16 %v269
      %v786 = vunpack.c.l.b16 %v270
      %v787 = vunpack.c.l.b16 %v271
      %v788 = vunpack.c.l.b16 %v272
      %v789 = vunpack.c.l.b16 %v273
      %v790 = vunpack.c.l.b16 %v274
      %v791 = vunpack.c.l.b16 %v275
      %v792 = vunpack.c.l.b16 %v276
      %v793 = vunpack.c.l.b16 %v277
      %v794 = vunpack.c.l.b16 %v278
      %v795 = vunpack.c.l.b16 %v279
      %v796 = vunpack.c.l.b16 %v280
      %v797 = vunpack.c.l.b16 %v281
      %v798 = vunpack.c.l.b16 %v282
      %v799 = vunpack.c.l.b16 %v283
      %v800 = vunpack.c.l.b16 %v284
      %v801 = vunpack.c.l.b16 %v285
      %v802 = vunpack.c.l.b16 %v286
      %v803 = vunpack.c.l.b16 %v287
      %v804 = vunpack.c.l.b16 %v288
      %v805 = vunpack.c.l.b16 %v289
      %v806 = vunpack.c.l.b16 %v290
      %v807 = vunpack.c.l.b16 %v291
      %v808 = vunpack.c.l.b16 %v292
      %v809 = vunpack.c.l.b16 %v293
      %v810 = vunpack.c.l.b16 %v294
      %v811 = vunpack.c.l.b16 %v295
      %v812 = vunpack.c.l.b16 %v296
      %v813 = vunpack.c.l.b16 %v297
      %v814 = vunpack.c.l.b16 %v298
      %v815 = vunpack.c.l.b16 %v299
      %v816 = vunpack.c.l.b16 %v300
      %v817 = vunpack.c.l.b16 %v301
      %v818 = vunpack.c.l.b16 %v302
      %v819 = vunpack.c.l.b16 %v303
      %v820 = vunpack.c.l.b16 %v304
      %v821 = vunpack.c.l.b16 %v305
      %v822 = vunpack.c.l.b16 %v306
      %v823 = vunpack.c.l.b16 %v307
      %v824 = vunpack.c.l.b16 %v308
      %v825 = vunpack.c.l.b16 %v309
      %v826 = vunpack.c.l.b16 %v310
      %v827 = vunpack.c.l.b16 %v311
      %v828 = vunpack.c.l.b16 %v312
      %v829 = vunpack.c.l.b16 %v313
      %v830 = vunpack.c.l.b16 %v314
      %v831 = vunpack.c.l.b16 %v315
      %v832 = vunpack.c.l.b16 %v316
      %v833 = vunpack.c.l.b16 %v317
      %v834 = vunpack.c.l.b16 %v318
      %v835 = vunpack.c.l.b16 %v319
      %v836 = vunpack.c.l.b16 %v320
      %v837 = vunpack.c.l.b16 %v321
      %v838 = vunpack.c.l.b16 %v322
      %v839 = vunpack.c.l.b16 %v323
      %v840 = vunpack.c.l.b16 %v324
      %v841 = vunpack.c.l.b16 %v325
      %v842 = vunpack.c.l.b16 %v326
      %v843 = vunpack.c.l.b16 %v327
      %v844 = vunpack.c.l.b16 %v328
      %v845 = vunpack.c.l.b16 %v329
      %v846 = vunpack.c.l.b16 %v330
      %v847 = vunpack.c.l.b16 %v331
      %v848 = vunpack.c.l.b16 %v332
      %v849 = vunpack.c.l.b16 %v333
      %v850 = vunpack.c.l.b16 %v334
      %v851 = vunpack.c.l.b16 %v335
      %v852 = vunpack.c.l.b16 %v336
      %v853 = vunpack.c.l.b16 %v337
      %v854 = vunpack.c.l.b16 %v338
      %v855 = vunpack.c.l.b16 %v339
      %v856 = vunpack.c.l.b16 %v340
      %v857 = vunpack.c.l.b16 %v341
      %v858 = vunpack.c.l.b16 %v342
      %v859 = vunpack.c.l.b16 %v343
      %v860 = vunpack.c.l.b16 %v344
      %v861 = vunpack.c.l.b16 %v345
      %v862 = vunpack.c.l.b16 %v346
      %v863 = vunpack.c.l.b16 %v347
      %v864 = vunpack.c.l.b16 %v348
      %v865 = vunpack.c.l.b16 %v349
      %v866 = vunpack.c.l.b16 %v350
      %v867 = vunpack.c.l.b16 %v351
      %v868 = vunpack.c.l.b16 %v352
      %v869 = vpack.c.b16 %v758, %v757
      %v870 = vpack.c.b16 %v760, %v759
      %v871 = vpack.c.b16 %v762, %v761
      %v872 = vpack.c.b16 %v764, %v763
      %v873 = vpack.c.b16 %v766, %v765
      %v874 = vpack.c.b16 %v768, %v767
      %v875 = vpack.c.b16 %v770, %v769
      %v876 = vpack.c.b16 %v772, %v771
      %v877 = vpack.c.b16 %v774, %v773
      %v878 = vpack.c.b16 %v776, %v775
      %v879 = vpack.c.b16 %v778, %v777
      %v880 = vpack.c.b16 %v780, %v779
      %v881 = vpack.c.b16 %v782, %v781
      %v882 = vpack.c.b16 %v784, %v783
      %v883 = vpack.c.b16 %v786, %v785
      %v884 = vpack.c.b16 %v788, %v787
      %v885 = vpack.c.b16 %v790, %v789
      %v886 = vpack.c.b16 %v792, %v791
      %v887 = vpack.c.b16 %v794, %v793
      %v888 = vpack.c.b16 %v796, %v795
      %v889 = vpack.c.b16 %v798, %v797
      %v890 = vpack.c.b16 %v800, %v799
      %v891 = vpack.c.b16 %v802, %v801
      %v892 = vpack.c.b16 %v804, %v803
      %v893 = vpack.c.b16 %v806, %v805
      %v894 = vpack.c.b16 %v808, %v807
      %v895 = vpack.c.b16 %v810, %v809
      %v896 = vpack.c.b16 %v812, %v811
      %v897 = vpack.c.b16 %v814, %v813
      %v898 = vpack.c.b16 %v816, %v815
      %v899 = vpack.c.b16 %v818, %v817
      %v900 = vpack.c.b16 %v820, %v819
      %v901 = vpack.c.b16 %v822, %v821
      %v902 = vpack.c.b16 %v824, %v823
      %v903 = vpack.c.b16 %v826, %v825
      %v904 = vpack.c.b16 %v828, %v827
      %v905 = vpack.c.b16 %v830, %v829
      %v906 = vpack.c.b16 %v832, %v831
      %v907 = vpack.c.b16 %v834, %v833
      %v908 = vpack.c.b16 %v836, %v835
      %v909 = vpack.c.b16 %v838, %v837
      %v910 = vpack.c.b16 %v840, %v839
      %v911 = vpack.c.b16 %v842, %v841
      %v912 = vpack.c.b16 %v844, %v843
      %v913 = vpack.c.b16 %v846, %v845
      %v914 = vpack.c.b16 %v848, %v847
      %v915 = vpack.c.b16 %v850, %v849
      %v916 = vpack.c.b16 %v852, %v851
      %v917 = vpack.c.b16 %v854, %v853
      %v918 = vpack.c.b16 %v856, %v855
      %v919 = vpack.c.b16 %v858, %v857
      %v920 = vpack.c.b16 %v860, %v859
      %v921 = vpack.c.b16 %v862, %v861
      %v922 = vpack.c.b16 %v864, %v863
      %v923 = vpack.c.b16 %v866, %v865
      %v924 = vpack.c.b16 %v868, %v867
      %981 = vmatpush.bf16.msra.mxu0 %v876
      %982 = vmatpush.bf16.msra.mxu0 %v875
      %983 = vmatpush.bf16.msra.mxu0 %v874
      %984 = vmatpush.bf16.msra.mxu0 %v873
      %985 = vmatpush.bf16.msra.mxu0 %v872
      %986 = vmatpush.bf16.msra.mxu0 %v871
      %987 = vmatpush.bf16.msra.mxu0 %v870
      %988 = vmatpush.bf16.msra.mxu0 %v869
      %989 = vmatmul.bf16.gmra.mxu0 %v533
      %v990 = vpop.f32.mrf.mxu0
      %v991 = vadd.f32 %v355, %v990
      %v992 = vpop.f32.mrf.mxu0
      %v993 = vadd.f32 %v355, %v992
      %994 = vmatmul.bf16.gmra.mxu0 %v540
      %v995 = vpop.f32.mrf.mxu0
      %v996 = vadd.f32 %v355, %v995
      %v997 = vpop.f32.mrf.mxu0
      %v998 = vadd.f32 %v355, %v997
      %999 = vmatmul.bf16.gmra.mxu0 %v547
      %v1000 = vpop.f32.mrf.mxu0
      %v1001 = vadd.f32 %v355, %v1000
      %v1002 = vpop.f32.mrf.mxu0
      %v1003 = vadd.f32 %v355, %v1002
      %1004 = vmatmul.bf16.gmra.mxu0 %v554
      %v1005 = vpop.f32.mrf.mxu0
      %v1006 = vadd.f32 %v355, %v1005
      %v1007 = vpop.f32.mrf.mxu0
      %v1008 = vadd.f32 %v355, %v1007
      %1009 = vmatmul.bf16.gmra.mxu0 %v561
      %v1010 = vpop.f32.mrf.mxu0
      %v1011 = vadd.f32 %v355, %v1010
      %v1012 = vpop.f32.mrf.mxu0
      %v1013 = vadd.f32 %v355, %v1012
      %1014 = vmatmul.bf16.gmra.mxu0 %v568
      %v1015 = vpop.f32.mrf.mxu0
      %v1016 = vadd.f32 %v355, %v1015
      %v1017 = vpop.f32.mrf.mxu0
      %v1018 = vadd.f32 %v355, %v1017
      %1019 = vmatmul.bf16.gmra.mxu0 %v575
      %v1020 = vpop.f32.mrf.mxu0
      %v1021 = vadd.f32 %v355, %v1020
      %v1022 = vpop.f32.mrf.mxu0
      %v1023 = vadd.f32 %v355, %v1022
      %1024 = vmatmul.bf16.gmra.mxu0 %v582
      %v1025 = vpop.f32.mrf.mxu0
      %v1026 = vadd.f32 %v355, %v1025
      %v1027 = vpop.f32.mrf.mxu0
      %v1028 = vadd.f32 %v355, %v1027
      %1029 = vdwg.mxu0
      %1030 = vmatpush.bf16.msra.mxu0 %v884
      %1031 = vmatpush.bf16.msra.mxu0 %v883
      %1032 = vmatpush.bf16.msra.mxu0 %v882
      %1033 = vmatpush.bf16.msra.mxu0 %v881
      %1034 = vmatpush.bf16.msra.mxu0 %v880
      %1035 = vmatpush.bf16.msra.mxu0 %v879
      %1036 = vmatpush.bf16.msra.mxu0 %v878
      %1037 = vmatpush.bf16.msra.mxu0 %v877
      %1038 = vmatmul.bf16.gmra.mxu0 %v534
      %v1039 = vpop.f32.mrf.mxu0
      %v1040 = vadd.f32 %v991, %v1039
      %v1041 = vpop.f32.mrf.mxu0
      %v1042 = vadd.f32 %v993, %v1041
      %1043 = vmatmul.bf16.gmra.mxu0 %v541
      %v1044 = vpop.f32.mrf.mxu0
      %v1045 = vadd.f32 %v996, %v1044
      %v1046 = vpop.f32.mrf.mxu0
      %v1047 = vadd.f32 %v998, %v1046
      %1048 = vmatmul.bf16.gmra.mxu0 %v548
      %v1049 = vpop.f32.mrf.mxu0
      %v1050 = vadd.f32 %v1001, %v1049
      %v1051 = vpop.f32.mrf.mxu0
      %v1052 = vadd.f32 %v1003, %v1051
      %1053 = vmatmul.bf16.gmra.mxu0 %v555
      %v1054 = vpop.f32.mrf.mxu0
      %v1055 = vadd.f32 %v1006, %v1054
      %v1056 = vpop.f32.mrf.mxu0
      %v1057 = vadd.f32 %v1008, %v1056
      %1058 = vmatmul.bf16.gmra.mxu0 %v562
      %v1059 = vpop.f32.mrf.mxu0
      %v1060 = vadd.f32 %v1011, %v1059
      %v1061 = vpop.f32.mrf.mxu0
      %v1062 = vadd.f32 %v1013, %v1061
      %1063 = vmatmul.bf16.gmra.mxu0 %v569
      %v1064 = vpop.f32.mrf.mxu0
      %v1065 = vadd.f32 %v1016, %v1064
      %v1066 = vpop.f32.mrf.mxu0
      %v1067 = vadd.f32 %v1018, %v1066
      %1068 = vmatmul.bf16.gmra.mxu0 %v576
      %v1069 = vpop.f32.mrf.mxu0
      %v1070 = vadd.f32 %v1021, %v1069
      %v1071 = vpop.f32.mrf.mxu0
      %v1072 = vadd.f32 %v1023, %v1071
      %1073 = vmatmul.bf16.gmra.mxu0 %v583
      %v1074 = vpop.f32.mrf.mxu0
      %v1075 = vadd.f32 %v1026, %v1074
      %v1076 = vpop.f32.mrf.mxu0
      %v1077 = vadd.f32 %v1028, %v1076
      %1078 = vdwg.mxu0
      %1079 = vmatpush.bf16.msra.mxu0 %v892
      %1080 = vmatpush.bf16.msra.mxu0 %v891
      %1081 = vmatpush.bf16.msra.mxu0 %v890
      %1082 = vmatpush.bf16.msra.mxu0 %v889
      %1083 = vmatpush.bf16.msra.mxu0 %v888
      %1084 = vmatpush.bf16.msra.mxu0 %v887
      %1085 = vmatpush.bf16.msra.mxu0 %v886
      %1086 = vmatpush.bf16.msra.mxu0 %v885
      %1087 = vmatmul.bf16.gmra.mxu0 %v535
      %v1088 = vpop.f32.mrf.mxu0
      %v1089 = vadd.f32 %v1040, %v1088
      %v1090 = vpop.f32.mrf.mxu0
      %v1091 = vadd.f32 %v1042, %v1090
      %1092 = vmatmul.bf16.gmra.mxu0 %v542
      %v1093 = vpop.f32.mrf.mxu0
      %v1094 = vadd.f32 %v1045, %v1093
      %v1095 = vpop.f32.mrf.mxu0
      %v1096 = vadd.f32 %v1047, %v1095
      %1097 = vmatmul.bf16.gmra.mxu0 %v549
      %v1098 = vpop.f32.mrf.mxu0
      %v1099 = vadd.f32 %v1050, %v1098
      %v1100 = vpop.f32.mrf.mxu0
      %v1101 = vadd.f32 %v1052, %v1100
      %1102 = vmatmul.bf16.gmra.mxu0 %v556
      %v1103 = vpop.f32.mrf.mxu0
      %v1104 = vadd.f32 %v1055, %v1103
      %v1105 = vpop.f32.mrf.mxu0
      %v1106 = vadd.f32 %v1057, %v1105
      %1107 = vmatmul.bf16.gmra.mxu0 %v563
      %v1108 = vpop.f32.mrf.mxu0
      %v1109 = vadd.f32 %v1060, %v1108
      %v1110 = vpop.f32.mrf.mxu0
      %v1111 = vadd.f32 %v1062, %v1110
      %1112 = vmatmul.bf16.gmra.mxu0 %v570
      %v1113 = vpop.f32.mrf.mxu0
      %v1114 = vadd.f32 %v1065, %v1113
      %v1115 = vpop.f32.mrf.mxu0
      %v1116 = vadd.f32 %v1067, %v1115
      %1117 = vmatmul.bf16.gmra.mxu0 %v577
      %v1118 = vpop.f32.mrf.mxu0
      %v1119 = vadd.f32 %v1070, %v1118
      %v1120 = vpop.f32.mrf.mxu0
      %v1121 = vadd.f32 %v1072, %v1120
      %1122 = vmatmul.bf16.gmra.mxu0 %v584
      %v1123 = vpop.f32.mrf.mxu0
      %v1124 = vadd.f32 %v1075, %v1123
      %v1125 = vpop.f32.mrf.mxu0
      %v1126 = vadd.f32 %v1077, %v1125
      %1127 = vdwg.mxu0
      %1128 = vmatpush.bf16.msra.mxu0 %v900
      %1129 = vmatpush.bf16.msra.mxu0 %v899
      %1130 = vmatpush.bf16.msra.mxu0 %v898
      %1131 = vmatpush.bf16.msra.mxu0 %v897
      %1132 = vmatpush.bf16.msra.mxu0 %v896
      %1133 = vmatpush.bf16.msra.mxu0 %v895
      %1134 = vmatpush.bf16.msra.mxu0 %v894
      %1135 = vmatpush.bf16.msra.mxu0 %v893
      %1136 = vmatmul.bf16.gmra.mxu0 %v536
      %v1137 = vpop.f32.mrf.mxu0
      %v1138 = vadd.f32 %v1089, %v1137
      %v1139 = vpop.f32.mrf.mxu0
      %v1140 = vadd.f32 %v1091, %v1139
      %1141 = vmatmul.bf16.gmra.mxu0 %v543
      %v1142 = vpop.f32.mrf.mxu0
      %v1143 = vadd.f32 %v1094, %v1142
      %v1144 = vpop.f32.mrf.mxu0
      %v1145 = vadd.f32 %v1096, %v1144
      %1146 = vmatmul.bf16.gmra.mxu0 %v550
      %v1147 = vpop.f32.mrf.mxu0
      %v1148 = vadd.f32 %v1099, %v1147
      %v1149 = vpop.f32.mrf.mxu0
      %v1150 = vadd.f32 %v1101, %v1149
      %1151 = vmatmul.bf16.gmra.mxu0 %v557
      %v1152 = vpop.f32.mrf.mxu0
      %v1153 = vadd.f32 %v1104, %v1152
      %v1154 = vpop.f32.mrf.mxu0
      %v1155 = vadd.f32 %v1106, %v1154
      %1156 = vmatmul.bf16.gmra.mxu0 %v564
      %v1157 = vpop.f32.mrf.mxu0
      %v1158 = vadd.f32 %v1109, %v1157
      %v1159 = vpop.f32.mrf.mxu0
      %v1160 = vadd.f32 %v1111, %v1159
      %1161 = vmatmul.bf16.gmra.mxu0 %v571
      %v1162 = vpop.f32.mrf.mxu0
      %v1163 = vadd.f32 %v1114, %v1162
      %v1164 = vpop.f32.mrf.mxu0
      %v1165 = vadd.f32 %v1116, %v1164
      %1166 = vmatmul.bf16.gmra.mxu0 %v578
      %v1167 = vpop.f32.mrf.mxu0
      %v1168 = vadd.f32 %v1119, %v1167
      %v1169 = vpop.f32.mrf.mxu0
      %v1170 = vadd.f32 %v1121, %v1169
      %1171 = vmatmul.bf16.gmra.mxu0 %v585
      %v1172 = vpop.f32.mrf.mxu0
      %v1173 = vadd.f32 %v1124, %v1172
      %v1174 = vpop.f32.mrf.mxu0
      %v1175 = vadd.f32 %v1126, %v1174
      %1176 = vdwg.mxu0
      %1177 = vmatpush.bf16.msra.mxu0 %v908
      %1178 = vmatpush.bf16.msra.mxu0 %v907
      %1179 = vmatpush.bf16.msra.mxu0 %v906
      %1180 = vmatpush.bf16.msra.mxu0 %v905
      %1181 = vmatpush.bf16.msra.mxu0 %v904
      %1182 = vmatpush.bf16.msra.mxu0 %v903
      %1183 = vmatpush.bf16.msra.mxu0 %v902
      %1184 = vmatpush.bf16.msra.mxu0 %v901
      %1185 = vmatmul.bf16.gmra.mxu0 %v537
      %v1186 = vpop.f32.mrf.mxu0
      %v1187 = vadd.f32 %v1138, %v1186
      %v1188 = vpop.f32.mrf.mxu0
      %v1189 = vadd.f32 %v1140, %v1188
      %1190 = vmatmul.bf16.gmra.mxu0 %v544
      %v1191 = vpop.f32.mrf.mxu0
      %v1192 = vadd.f32 %v1143, %v1191
      %v1193 = vpop.f32.mrf.mxu0
      %v1194 = vadd.f32 %v1145, %v1193
      %1195 = vmatmul.bf16.gmra.mxu0 %v551
      %v1196 = vpop.f32.mrf.mxu0
      %v1197 = vadd.f32 %v1148, %v1196
      %v1198 = vpop.f32.mrf.mxu0
      %v1199 = vadd.f32 %v1150, %v1198
      %1200 = vmatmul.bf16.gmra.mxu0 %v558
      %v1201 = vpop.f32.mrf.mxu0
      %v1202 = vadd.f32 %v1153, %v1201
      %v1203 = vpop.f32.mrf.mxu0
      %v1204 = vadd.f32 %v1155, %v1203
      %1205 = vmatmul.bf16.gmra.mxu0 %v565
      %v1206 = vpop.f32.mrf.mxu0
      %v1207 = vadd.f32 %v1158, %v1206
      %v1208 = vpop.f32.mrf.mxu0
      %v1209 = vadd.f32 %v1160, %v1208
      %1210 = vmatmul.bf16.gmra.mxu0 %v572
      %v1211 = vpop.f32.mrf.mxu0
      %v1212 = vadd.f32 %v1163, %v1211
      %v1213 = vpop.f32.mrf.mxu0
      %v1214 = vadd.f32 %v1165, %v1213
      %1215 = vmatmul.bf16.gmra.mxu0 %v579
      %v1216 = vpop.f32.mrf.mxu0
      %v1217 = vadd.f32 %v1168, %v1216
      %v1218 = vpop.f32.mrf.mxu0
      %v1219 = vadd.f32 %v1170, %v1218
      %1220 = vmatmul.bf16.gmra.mxu0 %v586
      %v1221 = vpop.f32.mrf.mxu0
      %v1222 = vadd.f32 %v1173, %v1221
      %v1223 = vpop.f32.mrf.mxu0
      %v1224 = vadd.f32 %v1175, %v1223
      %1225 = vdwg.mxu0
      %1226 = vmatpush.bf16.msra.mxu0 %v916
      %1227 = vmatpush.bf16.msra.mxu0 %v915
      %1228 = vmatpush.bf16.msra.mxu0 %v914
      %1229 = vmatpush.bf16.msra.mxu0 %v913
      %1230 = vmatpush.bf16.msra.mxu0 %v912
      %1231 = vmatpush.bf16.msra.mxu0 %v911
      %1232 = vmatpush.bf16.msra.mxu0 %v910
      %1233 = vmatpush.bf16.msra.mxu0 %v909
      %1234 = vmatmul.bf16.gmra.mxu0 %v538
      %v1235 = vpop.f32.mrf.mxu0
      %v1236 = vadd.f32 %v1187, %v1235
      %v1237 = vpop.f32.mrf.mxu0
      %v1238 = vadd.f32 %v1189, %v1237
      %1239 = vmatmul.bf16.gmra.mxu0 %v545
      %v1240 = vpop.f32.mrf.mxu0
      %v1241 = vadd.f32 %v1192, %v1240
      %v1242 = vpop.f32.mrf.mxu0
      %v1243 = vadd.f32 %v1194, %v1242
      %1244 = vmatmul.bf16.gmra.mxu0 %v552
      %v1245 = vpop.f32.mrf.mxu0
      %v1246 = vadd.f32 %v1197, %v1245
      %v1247 = vpop.f32.mrf.mxu0
      %v1248 = vadd.f32 %v1199, %v1247
      %1249 = vmatmul.bf16.gmra.mxu0 %v559
      %v1250 = vpop.f32.mrf.mxu0
      %v1251 = vadd.f32 %v1202, %v1250
      %v1252 = vpop.f32.mrf.mxu0
      %v1253 = vadd.f32 %v1204, %v1252
      %1254 = vmatmul.bf16.gmra.mxu0 %v566
      %v1255 = vpop.f32.mrf.mxu0
      %v1256 = vadd.f32 %v1207, %v1255
      %v1257 = vpop.f32.mrf.mxu0
      %v1258 = vadd.f32 %v1209, %v1257
      %1259 = vmatmul.bf16.gmra.mxu0 %v573
      %v1260 = vpop.f32.mrf.mxu0
      %v1261 = vadd.f32 %v1212, %v1260
      %v1262 = vpop.f32.mrf.mxu0
      %v1263 = vadd.f32 %v1214, %v1262
      %1264 = vmatmul.bf16.gmra.mxu0 %v580
      %v1265 = vpop.f32.mrf.mxu0
      %v1266 = vadd.f32 %v1217, %v1265
      %v1267 = vpop.f32.mrf.mxu0
      %v1268 = vadd.f32 %v1219, %v1267
      %1269 = vmatmul.bf16.gmra.mxu0 %v587
      %v1270 = vpop.f32.mrf.mxu0
      %v1271 = vadd.f32 %v1222, %v1270
      %v1272 = vpop.f32.mrf.mxu0
      %v1273 = vadd.f32 %v1224, %v1272
      %1274 = vdwg.mxu0
      %1275 = vmatpush.bf16.msra.mxu0 %v924
      %1276 = vmatpush.bf16.msra.mxu0 %v923
      %1277 = vmatpush.bf16.msra.mxu0 %v922
      %1278 = vmatpush.bf16.msra.mxu0 %v921
      %1279 = vmatpush.bf16.msra.mxu0 %v920
      %1280 = vmatpush.bf16.msra.mxu0 %v919
      %1281 = vmatpush.bf16.msra.mxu0 %v918
      %1282 = vmatpush.bf16.msra.mxu0 %v917
      %1283 = vmatmul.bf16.gmra.mxu0 %v539
      %v1284 = vpop.f32.mrf.mxu0
      %v1285 = vadd.f32 %v1236, %v1284
      %v1286 = vpop.f32.mrf.mxu0
      %v1287 = vadd.f32 %v1238, %v1286
      %1288 = vmatmul.bf16.gmra.mxu0 %v546
      %v1289 = vpop.f32.mrf.mxu0
      %v1290 = vadd.f32 %v1241, %v1289
      %v1291 = vpop.f32.mrf.mxu0
      %v1292 = vadd.f32 %v1243, %v1291
      %1293 = vmatmul.bf16.gmra.mxu0 %v553
      %v1294 = vpop.f32.mrf.mxu0
      %v1295 = vadd.f32 %v1246, %v1294
      %v1296 = vpop.f32.mrf.mxu0
      %v1297 = vadd.f32 %v1248, %v1296
      %1298 = vmatmul.bf16.gmra.mxu0 %v560
      %v1299 = vpop.f32.mrf.mxu0
      %v1300 = vadd.f32 %v1251, %v1299
      %v1301 = vpop.f32.mrf.mxu0
      %v1302 = vadd.f32 %v1253, %v1301
      %1303 = vmatmul.bf16.gmra.mxu0 %v567
      %v1304 = vpop.f32.mrf.mxu0
      %v1305 = vadd.f32 %v1256, %v1304
      %v1306 = vpop.f32.mrf.mxu0
      %v1307 = vadd.f32 %v1258, %v1306
      %1308 = vmatmul.bf16.gmra.mxu0 %v574
      %v1309 = vpop.f32.mrf.mxu0
      %v1310 = vadd.f32 %v1261, %v1309
      %v1311 = vpop.f32.mrf.mxu0
      %v1312 = vadd.f32 %v1263, %v1311
      %1313 = vmatmul.bf16.gmra.mxu0 %v581
      %v1314 = vpop.f32.mrf.mxu0
      %v1315 = vadd.f32 %v1266, %v1314
      %v1316 = vpop.f32.mrf.mxu0
      %v1317 = vadd.f32 %v1268, %v1316
      %1318 = vmatmul.bf16.gmra.mxu0 %v588
      %v1319 = vpop.f32.mrf.mxu0
      %v1320 = vadd.f32 %v1271, %v1319
      %v1321 = vpop.f32.mrf.mxu0
      %v1322 = vadd.f32 %v1273, %v1321
      %1323 = vdwg.mxu0
      %vm1324 = vcmp.ge.f32.partialorder %v1285, 0.0
      %vm1325 = vcmp.ge.f32.partialorder %v1287, 0.0
      %vm1326 = vcmp.ge.f32.partialorder %v1290, 0.0
      %vm1327 = vcmp.ge.f32.partialorder %v1292, 0.0
      %vm1328 = vcmp.ge.f32.partialorder %v1295, 0.0
      %vm1329 = vcmp.ge.f32.partialorder %v1297, 0.0
      %vm1330 = vcmp.ge.f32.partialorder %v1300, 0.0
      %vm1331 = vcmp.ge.f32.partialorder %v1302, 0.0
      %vm1332 = vcmp.ge.f32.partialorder %v1305, 0.0
      %vm1333 = vcmp.ge.f32.partialorder %v1307, 0.0
      %vm1334 = vcmp.ge.f32.partialorder %v1310, 0.0
      %vm1335 = vcmp.ge.f32.partialorder %v1312, 0.0
      %vm1336 = vcmp.ge.f32.partialorder %v1315, 0.0
      %vm1337 = vcmp.ge.f32.partialorder %v1317, 0.0
      %vm1338 = vcmp.ge.f32.partialorder %v1320, 0.0
      %vm1339 = vcmp.ge.f32.partialorder %v1322, 0.0
      %v1340 = vmul.f32 %v1285, 0.2
      %v1341 = vmul.f32 %v1287, 0.2
      %v1342 = vmul.f32 %v1290, 0.2
      %v1343 = vmul.f32 %v1292, 0.2
      %v1344 = vmul.f32 %v1295, 0.2
      %v1345 = vmul.f32 %v1297, 0.2
      %v1346 = vmul.f32 %v1300, 0.2
      %v1347 = vmul.f32 %v1302, 0.2
      %v1348 = vmul.f32 %v1305, 0.2
      %v1349 = vmul.f32 %v1307, 0.2
      %v1350 = vmul.f32 %v1310, 0.2
      %v1351 = vmul.f32 %v1312, 0.2
      %v1352 = vmul.f32 %v1315, 0.2
      %v1353 = vmul.f32 %v1317, 0.2
      %v1354 = vmul.f32 %v1320, 0.2
      %v1355 = vmul.f32 %v1322, 0.2
      %v1356 = vsel %vm1324, %v1285, %v1340
      %v1357 = vsel %vm1325, %v1287, %v1341
      %v1358 = vsel %vm1326, %v1290, %v1342
      %v1359 = vsel %vm1327, %v1292, %v1343
      %v1360 = vsel %vm1328, %v1295, %v1344
      %v1361 = vsel %vm1329, %v1297, %v1345
      %v1362 = vsel %vm1330, %v1300, %v1346
      %v1363 = vsel %vm1331, %v1302, %v1347
      %v1364 = vsel %vm1332, %v1305, %v1348
      %v1365 = vsel %vm1333, %v1307, %v1349
      %v1366 = vsel %vm1334, %v1310, %v1350
      %v1367 = vsel %vm1335, %v1312, %v1351
      %v1368 = vsel %vm1336, %v1315, %v1352
      %v1369 = vsel %vm1337, %v1317, %v1353
      %v1370 = vsel %vm1338, %v1320, %v1354
      %v1371 = vsel %vm1339, %v1322, %v1355
      %1372 = vst [vmem:[%s175] sm:$0xff] %v1356
      %1373 = vst [vmem:[%s175 + $0x8] sm:$0xff] %v1357
      %1374 = vst [vmem:[%s175 + $0x10] sm:$0xff] %v1358
      %1375 = vst [vmem:[%s175 + $0x18] sm:$0xff] %v1359
      %1376 = vst [vmem:[%s175 + $0x20] sm:$0xff] %v1360
      %1377 = vst [vmem:[%s175 + $0x28] sm:$0xff] %v1361
      %1378 = vst [vmem:[%s175 + $0x30] sm:$0xff] %v1362
      %1379 = vst [vmem:[%s175 + $0x38] sm:$0xff] %v1363
      %1380 = vst [vmem:[%s175 + $0x40] sm:$0xff] %v1364
      %1381 = vst [vmem:[%s175 + $0x48] sm:$0xff] %v1365
      %1382 = vst [vmem:[%s175 + $0x50] sm:$0xff] %v1366
      %1383 = vst [vmem:[%s175 + $0x58] sm:$0xff] %v1367
      %1384 = vst [vmem:[%s175 + $0x60] sm:$0xff] %v1368
      %1385 = vst [vmem:[%s175 + $0x68] sm:$0xff] %v1369
      %1386 = vst [vmem:[%s175 + $0x70] sm:$0xff] %v1370
      %1387 = vst [vmem:[%s175 + $0x78] sm:$0xff] %v1371
      %s1388 = smul.u32 16, %s14
      %p1389 = scmp.lt.s32.totalorder %s1388, 31
      %s1390 = scalar_select %p1389, %s1388, 31
      %s1391 = smul.addr %s1390, 8
      %s1392 = scalar_lea.vmem %s3, %s1391
      // Predicated region
      $region33: #{_feature_learning_impl.10} parent=31 // pred_check
        %p1393 = pneg %p100
      $region34: #{_feature_learning_impl.10} parent=31 // pred_check_branch
        %1395 = sbr.rel (%p1393) target = $region36
      $region35: #{_feature_learning_impl.10} parent=31 // pred_region
        %s1396 = smul.u32 16, %s14
      $region36: #{_feature_learning_impl.10} parent=31 // pred_fallthru
        _
    $region32: #{_feature_learning_impl.10} parent=5 // pred_fallthru
      _
    %p1397 = scmp.le.s32.totalorder 2, %s9
    // Predicated region
    $region37: #{_feature_learning_impl.10} parent=5 // pred_check
      %p1398 = pneg %p1397
    $region38: #{_feature_learning_impl.10} parent=5 // pred_check_branch
      %1400 = sbr.rel (%p1398) target = $region40
    $region39: #{_feature_learning_impl.10} parent=5 // pred_region
      %s1401 = ssub.s32 %s9, 2
      // Predicated region
      $region41: #{_feature_learning_impl.10} parent=39 // pred_check
        %p1402 = pneg %p106
      $region42: #{_feature_learning_impl.10} parent=39 // pred_check_branch
        %1404 = sbr.rel (%p1402) target = $region44
      $region43: #{_feature_learning_impl.10} parent=39 // pred_region
        %s1405 = smul.u32 16, %s15
        %p1406 = scmp.lt.s32.totalorder %s1405, 31
        %s1407 = scalar_select %p1406, %s1405, 31
        %s1408 = smul.addr %s1407, 8
        %s1409 = scalar_lea.vmem %s3, %s1408
      $region44: #{_feature_learning_impl.10} parent=39 // pred_fallthru
        _
    $region40: #{_feature_learning_impl.10} parent=5 // pred_fallthru
      _
  $region6: #{_feature_learning_impl.10} parent=0 // loop_footer
    %s13 = sadd.s32 1, %s9
  $region7: #{_feature_learning_impl.10} parent=0 // loop_footer_branch
    %8 = sbr.rel target = $region3
  $region8: #{_feature_learning_impl.10} parent=0 // loop_exit
    _

</llo_original>
